<compile_context>
chip_gen: v7x
topology: tpu7x:2x2x1
jax: 0.10.0
libtpu: 0.0.40
codegen_flags: <defaults>
</compile_context>

<pallas_src>
import functools

import jax
import jax.numpy as jnp
from jax.experimental import pallas as pl
from jax.experimental.pallas import tpu as pltpu


# ----------------------------- Pallas kernel --------------------------------
def _bilstm_stack_kernel(x_ref, wihf_ref, wihb_ref, whhf_ref, whhb_ref,
                         bf_ref, bb_ref, h0_ref, c0_ref,
                         y_ref, hT_ref, cT_ref,
                         act_scr, gxf_scr, gxb_scr):
    """One grid step == one bidirectional LSTM layer (both directions, full sequence)."""
    layer = pl.program_id(0)
    n_layers = pl.num_programs(0)
    B = h0_ref.shape[2]
    H = h0_ref.shape[3]
    TB = act_scr.shape[0]
    T = TB // B

    # Layer 0 input = (padded) embedded tokens; later layers read the previous
    # layer's output, which was written into act_scr (stays resident in VMEM).
    @pl.when(layer == 0)
    def _():
        act_scr[...] = x_ref[...]

    # Hoisted input projection (no time dependence): one matmul per direction
    # over the whole sequence instead of one per timestep.
    xin = act_scr[...]                                                # (T*B, Din)
    gxf_scr[...] = (jnp.dot(xin, wihf_ref[0], preferred_element_type=jnp.float32)
                    + bf_ref[0])
    gxb_scr[...] = (jnp.dot(xin, wihb_ref[0], preferred_element_type=jnp.float32)
                    + bb_ref[0])

    whh_f = whhf_ref[0]                                               # (H, 4H)
    whh_b = whhb_ref[0]
    h_f = h0_ref[0, 0]
    c_f = c0_ref[0, 0]
    h_b = h0_ref[0, 1]
    c_b = c0_ref[0, 1]

    def cell(gates, c_prev):
        # g-gate columns were pre-scaled by 2 host-side, so one sigmoid over the
        # full (B, 4H) vreg covers all four gates: tanh(z) == 2*sigmoid(2z) - 1.
        s = jax.nn.sigmoid(gates)
        i = s[:, 0:H]
        f = s[:, H:2 * H]
        g = 2.0 * s[:, 2 * H:3 * H] - 1.0
        o = s[:, 3 * H:4 * H]
        c_new = f * c_prev + i * g
        h_new = o * jnp.tanh(c_new)
        return h_new, c_new

    # Statically unrolled time loop; fwd and bwd recurrences interleave and the
    # backward direction indexes reversed time directly (no materialized flip).
    for t in range(T):
        tr = T - 1 - t
        g_f = (jnp.dot(h_f, whh_f, preferred_element_type=jnp.float32)
               + gxf_scr[t * B:(t + 1) * B, :])
        g_b = (jnp.dot(h_b, whh_b, preferred_element_type=jnp.float32)
               + gxb_scr[tr * B:(tr + 1) * B, :])
        h_f, c_f = cell(g_f, c_f)
        h_b, c_b = cell(g_b, c_b)
        act_scr[t * B:(t + 1) * B, 0:H] = h_f
        act_scr[tr * B:(tr + 1) * B, H:2 * H] = h_b

    # Final states: written once per layer (these out-blocks follow the layer axis).
    hT_ref[0, 0] = h_f
    hT_ref[0, 1] = h_b
    cT_ref[0, 0] = c_f
    cT_ref[0, 1] = c_b

    # The sequence output only needs to leave VMEM after the last layer.
    @pl.when(layer == n_layers - 1)
    def _():
        y_ref[...] = act_scr[:, 0:2 * H]


# --------------------------- Decoder forward ---------------------------------
def decoder_forward(params, input_ids, end_state, n_layers):
    """Mirrors Decoder.forward(input, end_state) with a single fused Pallas call."""
    emb = params["embedding"][input_ids].astype(jnp.float32)   # (B, S, E)  gather (XLA glue)
    h0_all, c0_all = end_state                                 # (2L, B, H)
    B, S, E = emb.shape
    H = h0_all.shape[-1]
    L = n_layers
    Din = max(E, 2 * H)              # uniform (zero-padded) per-layer input width
    TB = S * B

    # time-major, flattened to (T*B, Din), feature-padded with zeros
    x_tb = jnp.transpose(emb, (1, 0, 2)).reshape(TB, E)
    x_flat = jnp.zeros((TB, Din), jnp.float32).at[:, :E].set(x_tb)

    # pre-scale the g-gate columns by 2 so the kernel needs only one sigmoid
    gscale = jnp.ones((4 * H,), jnp.float32).at[2 * H:3 * H].set(2.0)

    wihf, wihb, whhf, whhb, bf, bb = [], [], [], [], [], []
    for l in range(L):
        for d, name in enumerate(("fwd", "bwd")):
            p = params["lstm"][l][name]
            in_dim = p["w_ih"].shape[1]
            wih_t = (jnp.zeros((Din, 4 * H), jnp.float32)
                     .at[:in_dim, :].set(p["w_ih"].T.astype(jnp.float32))) * gscale
            whh_t = p["w_hh"].T.astype(jnp.float32) * gscale
            bias = ((p["b_ih"] + p["b_hh"]).astype(jnp.float32) * gscale).reshape(1, 4 * H)
            if d == 0:
                wihf.append(wih_t); whhf.append(whh_t); bf.append(bias)
            else:
                wihb.append(wih_t); whhb.append(whh_t); bb.append(bias)
    wihf = jnp.stack(wihf); wihb = jnp.stack(wihb)            # (L, Din, 4H)
    whhf = jnp.stack(whhf); whhb = jnp.stack(whhb)            # (L, H, 4H)
    bf = jnp.stack(bf); bb = jnp.stack(bb)                    # (L, 1, 4H)
    h0 = h0_all.astype(jnp.float32).reshape(L, 2, B, H)
    c0 = c0_all.astype(jnp.float32).reshape(L, 2, B, H)

    per_layer3 = lambda l: (l, 0, 0)
    per_layer4 = lambda l: (l, 0, 0, 0)
    whole2 = lambda l: (0, 0)

    grid_spec = pltpu.PrefetchScalarGridSpec(
        num_scalar_prefetch=0,
        grid=(L,),
        in_specs=[
            pl.BlockSpec((TB, Din), whole2),                  # layer-0 input
            pl.BlockSpec((1, Din, 4 * H), per_layer3),        # W_ih^T fwd
            pl.BlockSpec((1, Din, 4 * H), per_layer3),        # W_ih^T bwd
            pl.BlockSpec((1, H, 4 * H), per_layer3),          # W_hh^T fwd
            pl.BlockSpec((1, H, 4 * H), per_layer3),          # W_hh^T bwd
            pl.BlockSpec((1, 1, 4 * H), per_layer3),          # bias fwd
            pl.BlockSpec((1, 1, 4 * H), per_layer3),          # bias bwd
            pl.BlockSpec((1, 2, B, H), per_layer4),           # h0
            pl.BlockSpec((1, 2, B, H), per_layer4),           # c0
        ],
        out_specs=[
            pl.BlockSpec((TB, 2 * H), whole2),                # y (written once, last layer)
            pl.BlockSpec((1, 2, B, H), per_layer4),           # h_T
            pl.BlockSpec((1, 2, B, H), per_layer4),           # c_T
        ],
        scratch_shapes=[
            pltpu.VMEM((TB, Din), jnp.float32),               # layer activations (resident)
            pltpu.VMEM((TB, 4 * H), jnp.float32),             # hoisted x-projection, fwd
            pltpu.VMEM((TB, 4 * H), jnp.float32),             # hoisted x-projection, bwd
        ],
    )

    y_flat, hT, cT = pl.pallas_call(
        _bilstm_stack_kernel,
        grid_spec=grid_spec,
        out_shape=(
            jax.ShapeDtypeStruct((TB, 2 * H), jnp.float32),
            jax.ShapeDtypeStruct((L, 2, B, H), jnp.float32),
            jax.ShapeDtypeStruct((L, 2, B, H), jnp.float32),
        ),
        compiler_params=pltpu.CompilerParams(
            dimension_semantics=("arbitrary",)),              # layers are sequential
    )(x_flat, wihf, wihb, whhf, whhb, bf, bb, h0, c0)

    output = jnp.transpose(y_flat.reshape(S, B, 2 * H), (1, 0, 2))   # (B, S, 2H)
    hidden = hT.reshape(2 * L, B, H)
    cell = cT.reshape(2 * L, B, H)
    return output, (hidden, cell)


# ------------------------ deterministic param init ---------------------------
def init_params(key, vocab, embed_dim, hidden, n_layers):
    keys = jax.random.split(key, 1 + n_layers * 2 * 4)
    ki = iter(keys)
    params = {"embedding": jax.random.normal(next(ki), (vocab, embed_dim), jnp.float32)}
    bound = 1.0 / jnp.sqrt(hidden)
    lstm = []
    for l in range(n_layers):
        in_dim = embed_dim if l == 0 else 2 * hidden
        layer = {}
        for name in ("fwd", "bwd"):
            layer[name] = {
                "w_ih": jax.random.uniform(next(ki), (4 * hidden, in_dim), jnp.float32, -bound, bound),
                "w_hh": jax.random.uniform(next(ki), (4 * hidden, hidden), jnp.float32, -bound, bound),
                "b_ih": jax.random.uniform(next(ki), (4 * hidden,), jnp.float32, -bound, bound),
                "b_hh": jax.random.uniform(next(ki), (4 * hidden,), jnp.float32, -bound, bound),
            }
        lstm.append(layer)
    params["lstm"] = lstm
    return params


# ----------------------------- pure-JAX reference ----------------------------
def _lstm_cell_ref(x, h, c, w_ih, w_hh, b_ih, b_hh):
    gates = x @ w_ih.T + b_ih + h @ w_hh.T + b_hh
    H = h.shape[-1]
    i = jax.nn.sigmoid(gates[:, :H])
    f = jax.nn.sigmoid(gates[:, H:2 * H])
    g = jnp.tanh(gates[:, 2 * H:3 * H])
    o = jax.nn.sigmoid(gates[:, 3 * H:])
    c = f * c + i * g
    h = o * jnp.tanh(c)
    return h, c


def decoder_forward_ref(params, input_ids, end_state, n_layers):
    emb = params["embedding"][input_ids]
    h0_all, c0_all = end_state
    layer_in = jnp.transpose(emb, (1, 0, 2))
    T = layer_in.shape[0]
    h_finals, c_finals = [], []
    for l in range(n_layers):
        outs = {}
        for d, name in enumerate(("fwd", "bwd")):
            p = params["lstm"][l][name]
            h, c = h0_all[2 * l + d], c0_all[2 * l + d]
            seq = range(T) if d == 0 else range(T - 1, -1, -1)
            ys = [None] * T
            for t in seq:
                h, c = _lstm_cell_ref(layer_in[t], h, c,
                                      p["w_ih"], p["w_hh"], p["b_ih"], p["b_hh"])
                ys[t] = h
            outs[name] = jnp.stack(ys, axis=0)
            h_finals.append(h)
            c_finals.append(c)
        layer_in = jnp.concatenate([outs["fwd"], outs["bwd"]], axis=-1)
    return (jnp.transpose(layer_in, (1, 0, 2)),
            (jnp.stack(h_finals), jnp.stack(c_finals)))


# ----------------------------------- main ------------------------------------
if __name__ == "__main__":
    # module hyperparameters (small)
    embed_dim, hidden_size, n_layers = 16, 32, 2
    input_size = 50           # vocab
    batch, seq = 2, 8
    # output_size / dropout / max_length are unused by Decoder.forward

    key = jax.random.PRNGKey(0)
    kp, kt, kh, kc = jax.random.split(key, 4)
    params = init_params(kp, input_size, embed_dim, hidden_size, n_layers)

    input_ids = jax.random.randint(kt, (batch, seq), 0, input_size, jnp.int32)
    h0 = jax.random.normal(kh, (2 * n_layers, batch, hidden_size), jnp.float32)
    c0 = jax.random.normal(kc, (2 * n_layers, batch, hidden_size), jnp.float32)
    end_state = (h0, c0)

    fwd = functools.partial(decoder_forward, n_layers=n_layers)
    output, (hidden, cell) = jax.jit(fwd)(params, input_ids, end_state)
    jax.block_until_ready((output, hidden, cell))

    # correctness check against a pure-JAX reference
    out_ref, (hid_ref, cell_ref) = decoder_forward_ref(params, input_ids, end_state, n_layers)
    assert output.shape == (batch, seq, 2 * hidden_size)
    assert hidden.shape == (2 * n_layers, batch, hidden_size)
    assert cell.shape == (2 * n_layers, batch, hidden_size)
    assert jnp.allclose(output, out_ref, atol=1e-4, rtol=1e-4)
    assert jnp.allclose(hidden, hid_ref, atol=1e-4, rtol=1e-4)
    assert jnp.allclose(cell, cell_ref, atol=1e-4, rtol=1e-4)

    print("KERNEL_OK")
</pallas_src>

<mosaic_0001>
module attributes {stable_mosaic.version = 11 : i64} {
  func.func @_bilstm_stack_kernel(%arg0: i32, %arg1: memref<16x64xf32, #tpu.memory_space<vmem>>, %arg2: memref<1x64x128xf32, #tpu.memory_space<vmem>>, %arg3: memref<1x64x128xf32, #tpu.memory_space<vmem>>, %arg4: memref<1x32x128xf32, #tpu.memory_space<vmem>>, %arg5: memref<1x32x128xf32, #tpu.memory_space<vmem>>, %arg6: memref<1x1x128xf32, #tpu.memory_space<vmem>>, %arg7: memref<1x1x128xf32, #tpu.memory_space<vmem>>, %arg8: memref<1x2x2x32xf32, #tpu.memory_space<vmem>>, %arg9: memref<1x2x2x32xf32, #tpu.memory_space<vmem>>, %arg10: memref<16x64xf32, #tpu.memory_space<vmem>>, %arg11: memref<1x2x2x32xf32, #tpu.memory_space<vmem>>, %arg12: memref<1x2x2x32xf32, #tpu.memory_space<vmem>>, %arg13: memref<16x64xf32, #tpu.memory_space<vmem>>, %arg14: memref<16x128xf32, #tpu.memory_space<vmem>>, %arg15: memref<16x128xf32, #tpu.memory_space<vmem>>) attributes {dimension_semantics = [#tpu.dimension_semantics<arbitrary>], iteration_bounds = array<i64: 2>, scalar_prefetch = 0 : i64, scratch_operands = 3 : i64, tpu.core_type = #tpu.core_type<tc>, window_params = [{pipeline_mode = #tpu.pipeline_mode<synchronous>, transform_indices = @transform_0, window_bounds = array<i64: 16, 64>}, {transform_indices = @transform_1, window_bounds = array<i64: 1, 64, 128>}, {transform_indices = @transform_2, window_bounds = array<i64: 1, 64, 128>}, {transform_indices = @transform_3, window_bounds = array<i64: 1, 32, 128>}, {transform_indices = @transform_4, window_bounds = array<i64: 1, 32, 128>}, {transform_indices = @transform_5, window_bounds = array<i64: 1, 1, 128>}, {transform_indices = @transform_6, window_bounds = array<i64: 1, 1, 128>}, {transform_indices = @transform_7, window_bounds = array<i64: 1, 2, 2, 32>}, {transform_indices = @transform_8, window_bounds = array<i64: 1, 2, 2, 32>}, {pipeline_mode = #tpu.pipeline_mode<synchronous>, transform_indices = @transform_9, window_bounds = array<i64: 16, 64>}, {transform_indices = @transform_10, window_bounds = array<i64: 1, 2, 2, 32>}, {transform_indices = @transform_11, window_bounds = array<i64: 1, 2, 2, 32>}]} {
    %c0_i32 = arith.constant 0 : i32
    %0 = arith.cmpi eq, %arg0, %c0_i32 : i32
    %1 = arith.extui %0 : i1 to i32
    %c0_i32_0 = arith.constant 0 : i32
    %2 = arith.cmpi ne, %1, %c0_i32_0 : i32
    scf.if %2 {
      %c0_177 = arith.constant 0 : index
      %c0_178 = arith.constant 0 : index
      %399 = vector.load %arg1[%c0_177, %c0_178] : memref<16x64xf32, #tpu.memory_space<vmem>>, vector<16x64xf32>
      %c0_179 = arith.constant 0 : index
      %c0_180 = arith.constant 0 : index
      %400 = vector.load %arg13[%c0_179, %c0_180] : memref<16x64xf32, #tpu.memory_space<vmem>>, vector<16x64xf32>
      tpu.vector_store %arg13[%c0_179, %c0_180], %399 {strides = array<i32>} : memref<16x64xf32, #tpu.memory_space<vmem>>, vector<16x64xf32>,
    } else {
    }
    %c0 = arith.constant 0 : index
    %c0_1 = arith.constant 0 : index
    %3 = vector.load %arg13[%c0, %c0_1] : memref<16x64xf32, #tpu.memory_space<vmem>>, vector<16x64xf32>
    %c0_2 = arith.constant 0 : index
    %c0_3 = arith.constant 0 : index
    %c0_4 = arith.constant 0 : index
    %4 = vector.load %arg2[%c0_2, %c0_3, %c0_4] : memref<1x64x128xf32, #tpu.memory_space<vmem>>, vector<1x64x128xf32>
    %5 = vector.shape_cast %4 : vector<1x64x128xf32> to vector<64x128xf32>
    %cst = arith.constant dense<0.000000e+00> : vector<16x128xf32>
    %6 = tpu.matmul %3, %5, %cst {dimension_numbers = #tpu.dot_dimension_numbers<[1], [0], [0], [1], [0, 0, 1, 1], [], []>} : vector<16x64xf32>, vector<64x128xf32>, vector<16x128xf32> -> vector<16x128xf32>
    %c0_5 = arith.constant 0 : index
    %c0_6 = arith.constant 0 : index
    %c0_7 = arith.constant 0 : index
    %7 = vector.load %arg6[%c0_5, %c0_6, %c0_7] : memref<1x1x128xf32, #tpu.memory_space<vmem>>, vector<1x1x128xf32>
    %8 = vector.shape_cast %7 : vector<1x1x128xf32> to vector<1x128xf32>
    %9 = vector.broadcast %8 : vector<1x128xf32> to vector<16x128xf32>
    %10 = arith.addf %6, %9 : vector<16x128xf32>
    %c0_8 = arith.constant 0 : index
    %c0_9 = arith.constant 0 : index
    %11 = vector.load %arg14[%c0_8, %c0_9] : memref<16x128xf32, #tpu.memory_space<vmem>>, vector<16x128xf32>
    tpu.vector_store %arg14[%c0_8, %c0_9], %10 {strides = array<i32>} : memref<16x128xf32, #tpu.memory_space<vmem>>, vector<16x128xf32>,
    %c0_10 = arith.constant 0 : index
    %c0_11 = arith.constant 0 : index
    %c0_12 = arith.constant 0 : index
    %12 = vector.load %arg3[%c0_10, %c0_11, %c0_12] : memref<1x64x128xf32, #tpu.memory_space<vmem>>, vector<1x64x128xf32>
    %13 = vector.shape_cast %12 : vector<1x64x128xf32> to vector<64x128xf32>
    %cst_13 = arith.constant dense<0.000000e+00> : vector<16x128xf32>
    %14 = tpu.matmul %3, %13, %cst_13 {dimension_numbers = #tpu.dot_dimension_numbers<[1], [0], [0], [1], [0, 0, 1, 1], [], []>} : vector<16x64xf32>, vector<64x128xf32>, vector<16x128xf32> -> vector<16x128xf32>
    %c0_14 = arith.constant 0 : index
    %c0_15 = arith.constant 0 : index
    %c0_16 = arith.constant 0 : index
    %15 = vector.load %arg7[%c0_14, %c0_15, %c0_16] : memref<1x1x128xf32, #tpu.memory_space<vmem>>, vector<1x1x128xf32>
    %16 = vector.shape_cast %15 : vector<1x1x128xf32> to vector<1x128xf32>
    %17 = vector.broadcast %16 : vector<1x128xf32> to vector<16x128xf32>
    %18 = arith.addf %14, %17 : vector<16x128xf32>
    %c0_17 = arith.constant 0 : index
    %c0_18 = arith.constant 0 : index
    %19 = vector.load %arg15[%c0_17, %c0_18] : memref<16x128xf32, #tpu.memory_space<vmem>>, vector<16x128xf32>
    tpu.vector_store %arg15[%c0_17, %c0_18], %18 {strides = array<i32>} : memref<16x128xf32, #tpu.memory_space<vmem>>, vector<16x128xf32>,
    %c0_19 = arith.constant 0 : index
    %c0_20 = arith.constant 0 : index
    %c0_21 = arith.constant 0 : index
    %20 = vector.load %arg4[%c0_19, %c0_20, %c0_21] : memref<1x32x128xf32, #tpu.memory_space<vmem>>, vector<1x32x128xf32>
    %21 = vector.shape_cast %20 : vector<1x32x128xf32> to vector<32x128xf32>
    %c0_22 = arith.constant 0 : index
    %c0_23 = arith.constant 0 : index
    %c0_24 = arith.constant 0 : index
    %22 = vector.load %arg5[%c0_22, %c0_23, %c0_24] : memref<1x32x128xf32, #tpu.memory_space<vmem>>, vector<1x32x128xf32>
    %23 = vector.shape_cast %22 : vector<1x32x128xf32> to vector<32x128xf32>
    %c0_25 = arith.constant 0 : index
    %c0_26 = arith.constant 0 : index
    %c0_27 = arith.constant 0 : index
    %c0_28 = arith.constant 0 : index
    %24 = vector.load %arg8[%c0_25, %c0_26, %c0_27, %c0_28] : memref<1x2x2x32xf32, #tpu.memory_space<vmem>>, vector<1x1x2x32xf32>
    %25 = vector.shape_cast %24 : vector<1x1x2x32xf32> to vector<2x32xf32>
    %c0_29 = arith.constant 0 : index
    %c0_30 = arith.constant 0 : index
    %c0_31 = arith.constant 0 : index
    %c0_32 = arith.constant 0 : index
    %26 = vector.load %arg9[%c0_29, %c0_30, %c0_31, %c0_32] : memref<1x2x2x32xf32, #tpu.memory_space<vmem>>, vector<1x1x2x32xf32>
    %27 = vector.shape_cast %26 : vector<1x1x2x32xf32> to vector<2x32xf32>
    %c0_33 = arith.constant 0 : index
    %c1 = arith.constant 1 : index
    %c0_34 = arith.constant 0 : index
    %c0_35 = arith.constant 0 : index
    %28 = vector.load %arg8[%c0_33, %c1, %c0_34, %c0_35] : memref<1x2x2x32xf32, #tpu.memory_space<vmem>>, vector<1x1x2x32xf32>
    %29 = vector.shape_cast %28 : vector<1x1x2x32xf32> to vector<2x32xf32>
    %c0_36 = arith.constant 0 : index
    %c1_37 = arith.constant 1 : index
    %c0_38 = arith.constant 0 : index
    %c0_39 = arith.constant 0 : index
    %30 = vector.load %arg9[%c0_36, %c1_37, %c0_38, %c0_39] : memref<1x2x2x32xf32, #tpu.memory_space<vmem>>, vector<1x1x2x32xf32>
    %31 = vector.shape_cast %30 : vector<1x1x2x32xf32> to vector<2x32xf32>
    %cst_40 = arith.constant dense<0.000000e+00> : vector<2x128xf32>
    %32 = tpu.matmul %25, %21, %cst_40 {dimension_numbers = #tpu.dot_dimension_numbers<[1], [0], [0], [1], [0, 0, 1, 1], [], []>} : vector<2x32xf32>, vector<32x128xf32>, vector<2x128xf32> -> vector<2x128xf32>
    %c0_41 = arith.constant 0 : index
    %c0_42 = arith.constant 0 : index
    %33 = vector.load %arg14[%c0_41, %c0_42] : memref<16x128xf32, #tpu.memory_space<vmem>>, vector<2x128xf32>
    %34 = arith.addf %32, %33 : vector<2x128xf32>
    %cst_43 = arith.constant dense<0.000000e+00> : vector<2x128xf32>
    %35 = tpu.matmul %29, %23, %cst_43 {dimension_numbers = #tpu.dot_dimension_numbers<[1], [0], [0], [1], [0, 0, 1, 1], [], []>} : vector<2x32xf32>, vector<32x128xf32>, vector<2x128xf32> -> vector<2x128xf32>
    %c14 = arith.constant 14 : index
    %c0_44 = arith.constant 0 : index
    %36 = vector.load %arg15[%c14, %c0_44] : memref<16x128xf32, #tpu.memory_space<vmem>>, vector<2x128xf32>
    %37 = arith.addf %35, %36 : vector<2x128xf32>
    %38 = arith.negf %34 : vector<2x128xf32>
    %39 = math.exp %38 : vector<2x128xf32>
    %cst_45 = arith.constant 1.000000e+00 : f32
    %40 = vector.broadcast %cst_45 : f32 to vector<2x128xf32>
    %41 = arith.addf %40, %39 : vector<2x128xf32>
    %42 = arith.divf %40, %41 : vector<2x128xf32>
    %43 = vector.extract_strided_slice %42 {offsets = [0, 0], sizes = [2, 32], strides = [1, 1]} : vector<2x128xf32> to vector<2x32xf32>
    %44 = vector.extract_strided_slice %42 {offsets = [0, 32], sizes = [2, 32], strides = [1, 1]} : vector<2x128xf32> to vector<2x32xf32>
    %45 = vector.extract_strided_slice %42 {offsets = [0, 64], sizes = [2, 32], strides = [1, 1]} : vector<2x128xf32> to vector<2x32xf32>
    %cst_46 = arith.constant 2.000000e+00 : f32
    %46 = vector.broadcast %cst_46 : f32 to vector<2x32xf32>
    %47 = arith.mulf %46, %45 : vector<2x32xf32>
    %cst_47 = arith.constant 1.000000e+00 : f32
    %48 = vector.broadcast %cst_47 : f32 to vector<2x32xf32>
    %49 = arith.subf %47, %48 : vector<2x32xf32>
    %50 = vector.extract_strided_slice %42 {offsets = [0, 96], sizes = [2, 32], strides = [1, 1]} : vector<2x128xf32> to vector<2x32xf32>
    %51 = arith.mulf %44, %27 : vector<2x32xf32>
    %52 = arith.mulf %43, %49 : vector<2x32xf32>
    %53 = arith.addf %51, %52 : vector<2x32xf32>
    %54 = math.tanh %53 : vector<2x32xf32>
    %55 = arith.mulf %50, %54 : vector<2x32xf32>
    %56 = arith.negf %37 : vector<2x128xf32>
    %57 = math.exp %56 : vector<2x128xf32>
    %cst_48 = arith.constant 1.000000e+00 : f32
    %58 = vector.broadcast %cst_48 : f32 to vector<2x128xf32>
    %59 = arith.addf %58, %57 : vector<2x128xf32>
    %60 = arith.divf %58, %59 : vector<2x128xf32>
    %61 = vector.extract_strided_slice %60 {offsets = [0, 0], sizes = [2, 32], strides = [1, 1]} : vector<2x128xf32> to vector<2x32xf32>
    %62 = vector.extract_strided_slice %60 {offsets = [0, 32], sizes = [2, 32], strides = [1, 1]} : vector<2x128xf32> to vector<2x32xf32>
    %63 = vector.extract_strided_slice %60 {offsets = [0, 64], sizes = [2, 32], strides = [1, 1]} : vector<2x128xf32> to vector<2x32xf32>
    %cst_49 = arith.constant 2.000000e+00 : f32
    %64 = vector.broadcast %cst_49 : f32 to vector<2x32xf32>
    %65 = arith.mulf %64, %63 : vector<2x32xf32>
    %cst_50 = arith.constant 1.000000e+00 : f32
    %66 = vector.broadcast %cst_50 : f32 to vector<2x32xf32>
    %67 = arith.subf %65, %66 : vector<2x32xf32>
    %68 = vector.extract_strided_slice %60 {offsets = [0, 96], sizes = [2, 32], strides = [1, 1]} : vector<2x128xf32> to vector<2x32xf32>
    %69 = arith.mulf %62, %31 : vector<2x32xf32>
    %70 = arith.mulf %61, %67 : vector<2x32xf32>
    %71 = arith.addf %69, %70 : vector<2x32xf32>
    %72 = math.tanh %71 : vector<2x32xf32>
    %73 = arith.mulf %68, %72 : vector<2x32xf32>
    %c0_51 = arith.constant 0 : index
    %c0_52 = arith.constant 0 : index
    %74 = vector.load %arg13[%c0_51, %c0_52] : memref<16x64xf32, #tpu.memory_space<vmem>>, vector<2x32xf32>
    tpu.vector_store %arg13[%c0_51, %c0_52], %55 {strides = array<i32>} : memref<16x64xf32, #tpu.memory_space<vmem>>, vector<2x32xf32>,
    %c14_53 = arith.constant 14 : index
    %c32 = arith.constant 32 : index
    %75 = vector.load %arg13[%c14_53, %c32] : memref<16x64xf32, #tpu.memory_space<vmem>>, vector<2x32xf32>
    tpu.vector_store %arg13[%c14_53, %c32], %73 {strides = array<i32>} : memref<16x64xf32, #tpu.memory_space<vmem>>, vector<2x32xf32>,
    %cst_54 = arith.constant dense<0.000000e+00> : vector<2x128xf32>
    %76 = tpu.matmul %55, %21, %cst_54 {dimension_numbers = #tpu.dot_dimension_numbers<[1], [0], [0], [1], [0, 0, 1, 1], [], []>} : vector<2x32xf32>, vector<32x128xf32>, vector<2x128xf32> -> vector<2x128xf32>
    %c2 = arith.constant 2 : index
    %c0_55 = arith.constant 0 : index
    %77 = vector.load %arg14[%c2, %c0_55] : memref<16x128xf32, #tpu.memory_space<vmem>>, vector<2x128xf32>
    %78 = arith.addf %76, %77 : vector<2x128xf32>
    %cst_56 = arith.constant dense<0.000000e+00> : vector<2x128xf32>
    %79 = tpu.matmul %73, %23, %cst_56 {dimension_numbers = #tpu.dot_dimension_numbers<[1], [0], [0], [1], [0, 0, 1, 1], [], []>} : vector<2x32xf32>, vector<32x128xf32>, vector<2x128xf32> -> vector<2x128xf32>
    %c12 = arith.constant 12 : index
    %c0_57 = arith.constant 0 : index
    %80 = vector.load %arg15[%c12, %c0_57] : memref<16x128xf32, #tpu.memory_space<vmem>>, vector<2x128xf32>
    %81 = arith.addf %79, %80 : vector<2x128xf32>
    %82 = arith.negf %78 : vector<2x128xf32>
    %83 = math.exp %82 : vector<2x128xf32>
    %cst_58 = arith.constant 1.000000e+00 : f32
    %84 = vector.broadcast %cst_58 : f32 to vector<2x128xf32>
    %85 = arith.addf %84, %83 : vector<2x128xf32>
    %86 = arith.divf %84, %85 : vector<2x128xf32>
    %87 = vector.extract_strided_slice %86 {offsets = [0, 0], sizes = [2, 32], strides = [1, 1]} : vector<2x128xf32> to vector<2x32xf32>
    %88 = vector.extract_strided_slice %86 {offsets = [0, 32], sizes = [2, 32], strides = [1, 1]} : vector<2x128xf32> to vector<2x32xf32>
    %89 = vector.extract_strided_slice %86 {offsets = [0, 64], sizes = [2, 32], strides = [1, 1]} : vector<2x128xf32> to vector<2x32xf32>
    %cst_59 = arith.constant 2.000000e+00 : f32
    %90 = vector.broadcast %cst_59 : f32 to vector<2x32xf32>
    %91 = arith.mulf %90, %89 : vector<2x32xf32>
    %cst_60 = arith.constant 1.000000e+00 : f32
    %92 = vector.broadcast %cst_60 : f32 to vector<2x32xf32>
    %93 = arith.subf %91, %92 : vector<2x32xf32>
    %94 = vector.extract_strided_slice %86 {offsets = [0, 96], sizes = [2, 32], strides = [1, 1]} : vector<2x128xf32> to vector<2x32xf32>
    %95 = arith.mulf %88, %53 : vector<2x32xf32>
    %96 = arith.mulf %87, %93 : vector<2x32xf32>
    %97 = arith.addf %95, %96 : vector<2x32xf32>
    %98 = math.tanh %97 : vector<2x32xf32>
    %99 = arith.mulf %94, %98 : vector<2x32xf32>
    %100 = arith.negf %81 : vector<2x128xf32>
    %101 = math.exp %100 : vector<2x128xf32>
    %cst_61 = arith.constant 1.000000e+00 : f32
    %102 = vector.broadcast %cst_61 : f32 to vector<2x128xf32>
    %103 = arith.addf %102, %101 : vector<2x128xf32>
    %104 = arith.divf %102, %103 : vector<2x128xf32>
    %105 = vector.extract_strided_slice %104 {offsets = [0, 0], sizes = [2, 32], strides = [1, 1]} : vector<2x128xf32> to vector<2x32xf32>
    %106 = vector.extract_strided_slice %104 {offsets = [0, 32], sizes = [2, 32], strides = [1, 1]} : vector<2x128xf32> to vector<2x32xf32>
    %107 = vector.extract_strided_slice %104 {offsets = [0, 64], sizes = [2, 32], strides = [1, 1]} : vector<2x128xf32> to vector<2x32xf32>
    %cst_62 = arith.constant 2.000000e+00 : f32
    %108 = vector.broadcast %cst_62 : f32 to vector<2x32xf32>
    %109 = arith.mulf %108, %107 : vector<2x32xf32>
    %cst_63 = arith.constant 1.000000e+00 : f32
    %110 = vector.broadcast %cst_63 : f32 to vector<2x32xf32>
    %111 = arith.subf %109, %110 : vector<2x32xf32>
    %112 = vector.extract_strided_slice %104 {offsets = [0, 96], sizes = [2, 32], strides = [1, 1]} : vector<2x128xf32> to vector<2x32xf32>
    %113 = arith.mulf %106, %71 : vector<2x32xf32>
    %114 = arith.mulf %105, %111 : vector<2x32xf32>
    %115 = arith.addf %113, %114 : vector<2x32xf32>
    %116 = math.tanh %115 : vector<2x32xf32>
    %117 = arith.mulf %112, %116 : vector<2x32xf32>
    %c2_64 = arith.constant 2 : index
    %c0_65 = arith.constant 0 : index
    %118 = vector.load %arg13[%c2_64, %c0_65] : memref<16x64xf32, #tpu.memory_space<vmem>>, vector<2x32xf32>
    tpu.vector_store %arg13[%c2_64, %c0_65], %99 {strides = array<i32>} : memref<16x64xf32, #tpu.memory_space<vmem>>, vector<2x32xf32>,
    %c12_66 = arith.constant 12 : index
    %c32_67 = arith.constant 32 : index
    %119 = vector.load %arg13[%c12_66, %c32_67] : memref<16x64xf32, #tpu.memory_space<vmem>>, vector<2x32xf32>
    tpu.vector_store %arg13[%c12_66, %c32_67], %117 {strides = array<i32>} : memref<16x64xf32, #tpu.memory_space<vmem>>, vector<2x32xf32>,
    %cst_68 = arith.constant dense<0.000000e+00> : vector<2x128xf32>
    %120 = tpu.matmul %99, %21, %cst_68 {dimension_numbers = #tpu.dot_dimension_numbers<[1], [0], [0], [1], [0, 0, 1, 1], [], []>} : vector<2x32xf32>, vector<32x128xf32>, vector<2x128xf32> -> vector<2x128xf32>
    %c4 = arith.constant 4 : index
    %c0_69 = arith.constant 0 : index
    %121 = vector.load %arg14[%c4, %c0_69] : memref<16x128xf32, #tpu.memory_space<vmem>>, vector<2x128xf32>
    %122 = arith.addf %120, %121 : vector<2x128xf32>
    %cst_70 = arith.constant dense<0.000000e+00> : vector<2x128xf32>
    %123 = tpu.matmul %117, %23, %cst_70 {dimension_numbers = #tpu.dot_dimension_numbers<[1], [0], [0], [1], [0, 0, 1, 1], [], []>} : vector<2x32xf32>, vector<32x128xf32>, vector<2x128xf32> -> vector<2x128xf32>
    %c10 = arith.constant 10 : index
    %c0_71 = arith.constant 0 : index
    %124 = vector.load %arg15[%c10, %c0_71] : memref<16x128xf32, #tpu.memory_space<vmem>>, vector<2x128xf32>
    %125 = arith.addf %123, %124 : vector<2x128xf32>
    %126 = arith.negf %122 : vector<2x128xf32>
    %127 = math.exp %126 : vector<2x128xf32>
    %cst_72 = arith.constant 1.000000e+00 : f32
    %128 = vector.broadcast %cst_72 : f32 to vector<2x128xf32>
    %129 = arith.addf %128, %127 : vector<2x128xf32>
    %130 = arith.divf %128, %129 : vector<2x128xf32>
    %131 = vector.extract_strided_slice %130 {offsets = [0, 0], sizes = [2, 32], strides = [1, 1]} : vector<2x128xf32> to vector<2x32xf32>
    %132 = vector.extract_strided_slice %130 {offsets = [0, 32], sizes = [2, 32], strides = [1, 1]} : vector<2x128xf32> to vector<2x32xf32>
    %133 = vector.extract_strided_slice %130 {offsets = [0, 64], sizes = [2, 32], strides = [1, 1]} : vector<2x128xf32> to vector<2x32xf32>
    %cst_73 = arith.constant 2.000000e+00 : f32
    %134 = vector.broadcast %cst_73 : f32 to vector<2x32xf32>
    %135 = arith.mulf %134, %133 : vector<2x32xf32>
    %cst_74 = arith.constant 1.000000e+00 : f32
    %136 = vector.broadcast %cst_74 : f32 to vector<2x32xf32>
    %137 = arith.subf %135, %136 : vector<2x32xf32>
    %138 = vector.extract_strided_slice %130 {offsets = [0, 96], sizes = [2, 32], strides = [1, 1]} : vector<2x128xf32> to vector<2x32xf32>
    %139 = arith.mulf %132, %97 : vector<2x32xf32>
    %140 = arith.mulf %131, %137 : vector<2x32xf32>
    %141 = arith.addf %139, %140 : vector<2x32xf32>
    %142 = math.tanh %141 : vector<2x32xf32>
    %143 = arith.mulf %138, %142 : vector<2x32xf32>
    %144 = arith.negf %125 : vector<2x128xf32>
    %145 = math.exp %144 : vector<2x128xf32>
    %cst_75 = arith.constant 1.000000e+00 : f32
    %146 = vector.broadcast %cst_75 : f32 to vector<2x128xf32>
    %147 = arith.addf %146, %145 : vector<2x128xf32>
    %148 = arith.divf %146, %147 : vector<2x128xf32>
    %149 = vector.extract_strided_slice %148 {offsets = [0, 0], sizes = [2, 32], strides = [1, 1]} : vector<2x128xf32> to vector<2x32xf32>
    %150 = vector.extract_strided_slice %148 {offsets = [0, 32], sizes = [2, 32], strides = [1, 1]} : vector<2x128xf32> to vector<2x32xf32>
    %151 = vector.extract_strided_slice %148 {offsets = [0, 64], sizes = [2, 32], strides = [1, 1]} : vector<2x128xf32> to vector<2x32xf32>
    %cst_76 = arith.constant 2.000000e+00 : f32
    %152 = vector.broadcast %cst_76 : f32 to vector<2x32xf32>
    %153 = arith.mulf %152, %151 : vector<2x32xf32>
    %cst_77 = arith.constant 1.000000e+00 : f32
    %154 = vector.broadcast %cst_77 : f32 to vector<2x32xf32>
    %155 = arith.subf %153, %154 : vector<2x32xf32>
    %156 = vector.extract_strided_slice %148 {offsets = [0, 96], sizes = [2, 32], strides = [1, 1]} : vector<2x128xf32> to vector<2x32xf32>
    %157 = arith.mulf %150, %115 : vector<2x32xf32>
    %158 = arith.mulf %149, %155 : vector<2x32xf32>
    %159 = arith.addf %157, %158 : vector<2x32xf32>
    %160 = math.tanh %159 : vector<2x32xf32>
    %161 = arith.mulf %156, %160 : vector<2x32xf32>
    %c4_78 = arith.constant 4 : index
    %c0_79 = arith.constant 0 : index
    %162 = vector.load %arg13[%c4_78, %c0_79] : memref<16x64xf32, #tpu.memory_space<vmem>>, vector<2x32xf32>
    tpu.vector_store %arg13[%c4_78, %c0_79], %143 {strides = array<i32>} : memref<16x64xf32, #tpu.memory_space<vmem>>, vector<2x32xf32>,
    %c10_80 = arith.constant 10 : index
    %c32_81 = arith.constant 32 : index
    %163 = vector.load %arg13[%c10_80, %c32_81] : memref<16x64xf32, #tpu.memory_space<vmem>>, vector<2x32xf32>
    tpu.vector_store %arg13[%c10_80, %c32_81], %161 {strides = array<i32>} : memref<16x64xf32, #tpu.memory_space<vmem>>, vector<2x32xf32>,
    %cst_82 = arith.constant dense<0.000000e+00> : vector<2x128xf32>
    %164 = tpu.matmul %143, %21, %cst_82 {dimension_numbers = #tpu.dot_dimension_numbers<[1], [0], [0], [1], [0, 0, 1, 1], [], []>} : vector<2x32xf32>, vector<32x128xf32>, vector<2x128xf32> -> vector<2x128xf32>
    %c6 = arith.constant 6 : index
    %c0_83 = arith.constant 0 : index
    %165 = vector.load %arg14[%c6, %c0_83] : memref<16x128xf32, #tpu.memory_space<vmem>>, vector<2x128xf32>
    %166 = arith.addf %164, %165 : vector<2x128xf32>
    %cst_84 = arith.constant dense<0.000000e+00> : vector<2x128xf32>
    %167 = tpu.matmul %161, %23, %cst_84 {dimension_numbers = #tpu.dot_dimension_numbers<[1], [0], [0], [1], [0, 0, 1, 1], [], []>} : vector<2x32xf32>, vector<32x128xf32>, vector<2x128xf32> -> vector<2x128xf32>
    %c8 = arith.constant 8 : index
    %c0_85 = arith.constant 0 : index
    %168 = vector.load %arg15[%c8, %c0_85] : memref<16x128xf32, #tpu.memory_space<vmem>>, vector<2x128xf32>
    %169 = arith.addf %167, %168 : vector<2x128xf32>
    %170 = arith.negf %166 : vector<2x128xf32>
    %171 = math.exp %170 : vector<2x128xf32>
    %cst_86 = arith.constant 1.000000e+00 : f32
    %172 = vector.broadcast %cst_86 : f32 to vector<2x128xf32>
    %173 = arith.addf %172, %171 : vector<2x128xf32>
    %174 = arith.divf %172, %173 : vector<2x128xf32>
    %175 = vector.extract_strided_slice %174 {offsets = [0, 0], sizes = [2, 32], strides = [1, 1]} : vector<2x128xf32> to vector<2x32xf32>
    %176 = vector.extract_strided_slice %174 {offsets = [0, 32], sizes = [2, 32], strides = [1, 1]} : vector<2x128xf32> to vector<2x32xf32>
    %177 = vector.extract_strided_slice %174 {offsets = [0, 64], sizes = [2, 32], strides = [1, 1]} : vector<2x128xf32> to vector<2x32xf32>
    %cst_87 = arith.constant 2.000000e+00 : f32
    %178 = vector.broadcast %cst_87 : f32 to vector<2x32xf32>
    %179 = arith.mulf %178, %177 : vector<2x32xf32>
    %cst_88 = arith.constant 1.000000e+00 : f32
    %180 = vector.broadcast %cst_88 : f32 to vector<2x32xf32>
    %181 = arith.subf %179, %180 : vector<2x32xf32>
    %182 = vector.extract_strided_slice %174 {offsets = [0, 96], sizes = [2, 32], strides = [1, 1]} : vector<2x128xf32> to vector<2x32xf32>
    %183 = arith.mulf %176, %141 : vector<2x32xf32>
    %184 = arith.mulf %175, %181 : vector<2x32xf32>
    %185 = arith.addf %183, %184 : vector<2x32xf32>
    %186 = math.tanh %185 : vector<2x32xf32>
    %187 = arith.mulf %182, %186 : vector<2x32xf32>
    %188 = arith.negf %169 : vector<2x128xf32>
    %189 = math.exp %188 : vector<2x128xf32>
    %cst_89 = arith.constant 1.000000e+00 : f32
    %190 = vector.broadcast %cst_89 : f32 to vector<2x128xf32>
    %191 = arith.addf %190, %189 : vector<2x128xf32>
    %192 = arith.divf %190, %191 : vector<2x128xf32>
    %193 = vector.extract_strided_slice %192 {offsets = [0, 0], sizes = [2, 32], strides = [1, 1]} : vector<2x128xf32> to vector<2x32xf32>
    %194 = vector.extract_strided_slice %192 {offsets = [0, 32], sizes = [2, 32], strides = [1, 1]} : vector<2x128xf32> to vector<2x32xf32>
    %195 = vector.extract_strided_slice %192 {offsets = [0, 64], sizes = [2, 32], strides = [1, 1]} : vector<2x128xf32> to vector<2x32xf32>
    %cst_90 = arith.constant 2.000000e+00 : f32
    %196 = vector.broadcast %cst_90 : f32 to vector<2x32xf32>
    %197 = arith.mulf %196, %195 : vector<2x32xf32>
    %cst_91 = arith.constant 1.000000e+00 : f32
    %198 = vector.broadcast %cst_91 : f32 to vector<2x32xf32>
    %199 = arith.subf %197, %198 : vector<2x32xf32>
    %200 = vector.extract_strided_slice %192 {offsets = [0, 96], sizes = [2, 32], strides = [1, 1]} : vector<2x128xf32> to vector<2x32xf32>
    %201 = arith.mulf %194, %159 : vector<2x32xf32>
    %202 = arith.mulf %193, %199 : vector<2x32xf32>
    %203 = arith.addf %201, %202 : vector<2x32xf32>
    %204 = math.tanh %203 : vector<2x32xf32>
    %205 = arith.mulf %200, %204 : vector<2x32xf32>
    %c6_92 = arith.constant 6 : index
    %c0_93 = arith.constant 0 : index
    %206 = vector.load %arg13[%c6_92, %c0_93] : memref<16x64xf32, #tpu.memory_space<vmem>>, vector<2x32xf32>
    tpu.vector_store %arg13[%c6_92, %c0_93], %187 {strides = array<i32>} : memref<16x64xf32, #tpu.memory_space<vmem>>, vector<2x32xf32>,
    %c8_94 = arith.constant 8 : index
    %c32_95 = arith.constant 32 : index
    %207 = vector.load %arg13[%c8_94, %c32_95] : memref<16x64xf32, #tpu.memory_space<vmem>>, vector<2x32xf32>
    tpu.vector_store %arg13[%c8_94, %c32_95], %205 {strides = array<i32>} : memref<16x64xf32, #tpu.memory_space<vmem>>, vector<2x32xf32>,
    %cst_96 = arith.constant dense<0.000000e+00> : vector<2x128xf32>
    %208 = tpu.matmul %187, %21, %cst_96 {dimension_numbers = #tpu.dot_dimension_numbers<[1], [0], [0], [1], [0, 0, 1, 1], [], []>} : vector<2x32xf32>, vector<32x128xf32>, vector<2x128xf32> -> vector<2x128xf32>
    %c8_97 = arith.constant 8 : index
    %c0_98 = arith.constant 0 : index
    %209 = vector.load %arg14[%c8_97, %c0_98] : memref<16x128xf32, #tpu.memory_space<vmem>>, vector<2x128xf32>
    %210 = arith.addf %208, %209 : vector<2x128xf32>
    %cst_99 = arith.constant dense<0.000000e+00> : vector<2x128xf32>
    %211 = tpu.matmul %205, %23, %cst_99 {dimension_numbers = #tpu.dot_dimension_numbers<[1], [0], [0], [1], [0, 0, 1, 1], [], []>} : vector<2x32xf32>, vector<32x128xf32>, vector<2x128xf32> -> vector<2x128xf32>
    %c6_100 = arith.constant 6 : index
    %c0_101 = arith.constant 0 : index
    %212 = vector.load %arg15[%c6_100, %c0_101] : memref<16x128xf32, #tpu.memory_space<vmem>>, vector<2x128xf32>
    %213 = arith.addf %211, %212 : vector<2x128xf32>
    %214 = arith.negf %210 : vector<2x128xf32>
    %215 = math.exp %214 : vector<2x128xf32>
    %cst_102 = arith.constant 1.000000e+00 : f32
    %216 = vector.broadcast %cst_102 : f32 to vector<2x128xf32>
    %217 = arith.addf %216, %215 : vector<2x128xf32>
    %218 = arith.divf %216, %217 : vector<2x128xf32>
    %219 = vector.extract_strided_slice %218 {offsets = [0, 0], sizes = [2, 32], strides = [1, 1]} : vector<2x128xf32> to vector<2x32xf32>
    %220 = vector.extract_strided_slice %218 {offsets = [0, 32], sizes = [2, 32], strides = [1, 1]} : vector<2x128xf32> to vector<2x32xf32>
    %221 = vector.extract_strided_slice %218 {offsets = [0, 64], sizes = [2, 32], strides = [1, 1]} : vector<2x128xf32> to vector<2x32xf32>
    %cst_103 = arith.constant 2.000000e+00 : f32
    %222 = vector.broadcast %cst_103 : f32 to vector<2x32xf32>
    %223 = arith.mulf %222, %221 : vector<2x32xf32>
    %cst_104 = arith.constant 1.000000e+00 : f32
    %224 = vector.broadcast %cst_104 : f32 to vector<2x32xf32>
    %225 = arith.subf %223, %224 : vector<2x32xf32>
    %226 = vector.extract_strided_slice %218 {offsets = [0, 96], sizes = [2, 32], strides = [1, 1]} : vector<2x128xf32> to vector<2x32xf32>
    %227 = arith.mulf %220, %185 : vector<2x32xf32>
    %228 = arith.mulf %219, %225 : vector<2x32xf32>
    %229 = arith.addf %227, %228 : vector<2x32xf32>
    %230 = math.tanh %229 : vector<2x32xf32>
    %231 = arith.mulf %226, %230 : vector<2x32xf32>
    %232 = arith.negf %213 : vector<2x128xf32>
    %233 = math.exp %232 : vector<2x128xf32>
    %cst_105 = arith.constant 1.000000e+00 : f32
    %234 = vector.broadcast %cst_105 : f32 to vector<2x128xf32>
    %235 = arith.addf %234, %233 : vector<2x128xf32>
    %236 = arith.divf %234, %235 : vector<2x128xf32>
    %237 = vector.extract_strided_slice %236 {offsets = [0, 0], sizes = [2, 32], strides = [1, 1]} : vector<2x128xf32> to vector<2x32xf32>
    %238 = vector.extract_strided_slice %236 {offsets = [0, 32], sizes = [2, 32], strides = [1, 1]} : vector<2x128xf32> to vector<2x32xf32>
    %239 = vector.extract_strided_slice %236 {offsets = [0, 64], sizes = [2, 32], strides = [1, 1]} : vector<2x128xf32> to vector<2x32xf32>
    %cst_106 = arith.constant 2.000000e+00 : f32
    %240 = vector.broadcast %cst_106 : f32 to vector<2x32xf32>
    %241 = arith.mulf %240, %239 : vector<2x32xf32>
    %cst_107 = arith.constant 1.000000e+00 : f32
    %242 = vector.broadcast %cst_107 : f32 to vector<2x32xf32>
    %243 = arith.subf %241, %242 : vector<2x32xf32>
    %244 = vector.extract_strided_slice %236 {offsets = [0, 96], sizes = [2, 32], strides = [1, 1]} : vector<2x128xf32> to vector<2x32xf32>
    %245 = arith.mulf %238, %203 : vector<2x32xf32>
    %246 = arith.mulf %237, %243 : vector<2x32xf32>
    %247 = arith.addf %245, %246 : vector<2x32xf32>
    %248 = math.tanh %247 : vector<2x32xf32>
    %249 = arith.mulf %244, %248 : vector<2x32xf32>
    %c8_108 = arith.constant 8 : index
    %c0_109 = arith.constant 0 : index
    %250 = vector.load %arg13[%c8_108, %c0_109] : memref<16x64xf32, #tpu.memory_space<vmem>>, vector<2x32xf32>
    tpu.vector_store %arg13[%c8_108, %c0_109], %231 {strides = array<i32>} : memref<16x64xf32, #tpu.memory_space<vmem>>, vector<2x32xf32>,
    %c6_110 = arith.constant 6 : index
    %c32_111 = arith.constant 32 : index
    %251 = vector.load %arg13[%c6_110, %c32_111] : memref<16x64xf32, #tpu.memory_space<vmem>>, vector<2x32xf32>
    tpu.vector_store %arg13[%c6_110, %c32_111], %249 {strides = array<i32>} : memref<16x64xf32, #tpu.memory_space<vmem>>, vector<2x32xf32>,
    %cst_112 = arith.constant dense<0.000000e+00> : vector<2x128xf32>
    %252 = tpu.matmul %231, %21, %cst_112 {dimension_numbers = #tpu.dot_dimension_numbers<[1], [0], [0], [1], [0, 0, 1, 1], [], []>} : vector<2x32xf32>, vector<32x128xf32>, vector<2x128xf32> -> vector<2x128xf32>
    %c10_113 = arith.constant 10 : index
    %c0_114 = arith.constant 0 : index
    %253 = vector.load %arg14[%c10_113, %c0_114] : memref<16x128xf32, #tpu.memory_space<vmem>>, vector<2x128xf32>
    %254 = arith.addf %252, %253 : vector<2x128xf32>
    %cst_115 = arith.constant dense<0.000000e+00> : vector<2x128xf32>
    %255 = tpu.matmul %249, %23, %cst_115 {dimension_numbers = #tpu.dot_dimension_numbers<[1], [0], [0], [1], [0, 0, 1, 1], [], []>} : vector<2x32xf32>, vector<32x128xf32>, vector<2x128xf32> -> vector<2x128xf32>
    %c4_116 = arith.constant 4 : index
    %c0_117 = arith.constant 0 : index
    %256 = vector.load %arg15[%c4_116, %c0_117] : memref<16x128xf32, #tpu.memory_space<vmem>>, vector<2x128xf32>
    %257 = arith.addf %255, %256 : vector<2x128xf32>
    %258 = arith.negf %254 : vector<2x128xf32>
    %259 = math.exp %258 : vector<2x128xf32>
    %cst_118 = arith.constant 1.000000e+00 : f32
    %260 = vector.broadcast %cst_118 : f32 to vector<2x128xf32>
    %261 = arith.addf %260, %259 : vector<2x128xf32>
    %262 = arith.divf %260, %261 : vector<2x128xf32>
    %263 = vector.extract_strided_slice %262 {offsets = [0, 0], sizes = [2, 32], strides = [1, 1]} : vector<2x128xf32> to vector<2x32xf32>
    %264 = vector.extract_strided_slice %262 {offsets = [0, 32], sizes = [2, 32], strides = [1, 1]} : vector<2x128xf32> to vector<2x32xf32>
    %265 = vector.extract_strided_slice %262 {offsets = [0, 64], sizes = [2, 32], strides = [1, 1]} : vector<2x128xf32> to vector<2x32xf32>
    %cst_119 = arith.constant 2.000000e+00 : f32
    %266 = vector.broadcast %cst_119 : f32 to vector<2x32xf32>
    %267 = arith.mulf %266, %265 : vector<2x32xf32>
    %cst_120 = arith.constant 1.000000e+00 : f32
    %268 = vector.broadcast %cst_120 : f32 to vector<2x32xf32>
    %269 = arith.subf %267, %268 : vector<2x32xf32>
    %270 = vector.extract_strided_slice %262 {offsets = [0, 96], sizes = [2, 32], strides = [1, 1]} : vector<2x128xf32> to vector<2x32xf32>
    %271 = arith.mulf %264, %229 : vector<2x32xf32>
    %272 = arith.mulf %263, %269 : vector<2x32xf32>
    %273 = arith.addf %271, %272 : vector<2x32xf32>
    %274 = math.tanh %273 : vector<2x32xf32>
    %275 = arith.mulf %270, %274 : vector<2x32xf32>
    %276 = arith.negf %257 : vector<2x128xf32>
    %277 = math.exp %276 : vector<2x128xf32>
    %cst_121 = arith.constant 1.000000e+00 : f32
    %278 = vector.broadcast %cst_121 : f32 to vector<2x128xf32>
    %279 = arith.addf %278, %277 : vector<2x128xf32>
    %280 = arith.divf %278, %279 : vector<2x128xf32>
    %281 = vector.extract_strided_slice %280 {offsets = [0, 0], sizes = [2, 32], strides = [1, 1]} : vector<2x128xf32> to vector<2x32xf32>
    %282 = vector.extract_strided_slice %280 {offsets = [0, 32], sizes = [2, 32], strides = [1, 1]} : vector<2x128xf32> to vector<2x32xf32>
    %283 = vector.extract_strided_slice %280 {offsets = [0, 64], sizes = [2, 32], strides = [1, 1]} : vector<2x128xf32> to vector<2x32xf32>
    %cst_122 = arith.constant 2.000000e+00 : f32
    %284 = vector.broadcast %cst_122 : f32 to vector<2x32xf32>
    %285 = arith.mulf %284, %283 : vector<2x32xf32>
    %cst_123 = arith.constant 1.000000e+00 : f32
    %286 = vector.broadcast %cst_123 : f32 to vector<2x32xf32>
    %287 = arith.subf %285, %286 : vector<2x32xf32>
    %288 = vector.extract_strided_slice %280 {offsets = [0, 96], sizes = [2, 32], strides = [1, 1]} : vector<2x128xf32> to vector<2x32xf32>
    %289 = arith.mulf %282, %247 : vector<2x32xf32>
    %290 = arith.mulf %281, %287 : vector<2x32xf32>
    %291 = arith.addf %289, %290 : vector<2x32xf32>
    %292 = math.tanh %291 : vector<2x32xf32>
    %293 = arith.mulf %288, %292 : vector<2x32xf32>
    %c10_124 = arith.constant 10 : index
    %c0_125 = arith.constant 0 : index
    %294 = vector.load %arg13[%c10_124, %c0_125] : memref<16x64xf32, #tpu.memory_space<vmem>>, vector<2x32xf32>
    tpu.vector_store %arg13[%c10_124, %c0_125], %275 {strides = array<i32>} : memref<16x64xf32, #tpu.memory_space<vmem>>, vector<2x32xf32>,
    %c4_126 = arith.constant 4 : index
    %c32_127 = arith.constant 32 : index
    %295 = vector.load %arg13[%c4_126, %c32_127] : memref<16x64xf32, #tpu.memory_space<vmem>>, vector<2x32xf32>
    tpu.vector_store %arg13[%c4_126, %c32_127], %293 {strides = array<i32>} : memref<16x64xf32, #tpu.memory_space<vmem>>, vector<2x32xf32>,
    %cst_128 = arith.constant dense<0.000000e+00> : vector<2x128xf32>
    %296 = tpu.matmul %275, %21, %cst_128 {dimension_numbers = #tpu.dot_dimension_numbers<[1], [0], [0], [1], [0, 0, 1, 1], [], []>} : vector<2x32xf32>, vector<32x128xf32>, vector<2x128xf32> -> vector<2x128xf32>
    %c12_129 = arith.constant 12 : index
    %c0_130 = arith.constant 0 : index
    %297 = vector.load %arg14[%c12_129, %c0_130] : memref<16x128xf32, #tpu.memory_space<vmem>>, vector<2x128xf32>
    %298 = arith.addf %296, %297 : vector<2x128xf32>
    %cst_131 = arith.constant dense<0.000000e+00> : vector<2x128xf32>
    %299 = tpu.matmul %293, %23, %cst_131 {dimension_numbers = #tpu.dot_dimension_numbers<[1], [0], [0], [1], [0, 0, 1, 1], [], []>} : vector<2x32xf32>, vector<32x128xf32>, vector<2x128xf32> -> vector<2x128xf32>
    %c2_132 = arith.constant 2 : index
    %c0_133 = arith.constant 0 : index
    %300 = vector.load %arg15[%c2_132, %c0_133] : memref<16x128xf32, #tpu.memory_space<vmem>>, vector<2x128xf32>
    %301 = arith.addf %299, %300 : vector<2x128xf32>
    %302 = arith.negf %298 : vector<2x128xf32>
    %303 = math.exp %302 : vector<2x128xf32>
    %cst_134 = arith.constant 1.000000e+00 : f32
    %304 = vector.broadcast %cst_134 : f32 to vector<2x128xf32>
    %305 = arith.addf %304, %303 : vector<2x128xf32>
    %306 = arith.divf %304, %305 : vector<2x128xf32>
    %307 = vector.extract_strided_slice %306 {offsets = [0, 0], sizes = [2, 32], strides = [1, 1]} : vector<2x128xf32> to vector<2x32xf32>
    %308 = vector.extract_strided_slice %306 {offsets = [0, 32], sizes = [2, 32], strides = [1, 1]} : vector<2x128xf32> to vector<2x32xf32>
    %309 = vector.extract_strided_slice %306 {offsets = [0, 64], sizes = [2, 32], strides = [1, 1]} : vector<2x128xf32> to vector<2x32xf32>
    %cst_135 = arith.constant 2.000000e+00 : f32
    %310 = vector.broadcast %cst_135 : f32 to vector<2x32xf32>
    %311 = arith.mulf %310, %309 : vector<2x32xf32>
    %cst_136 = arith.constant 1.000000e+00 : f32
    %312 = vector.broadcast %cst_136 : f32 to vector<2x32xf32>
    %313 = arith.subf %311, %312 : vector<2x32xf32>
    %314 = vector.extract_strided_slice %306 {offsets = [0, 96], sizes = [2, 32], strides = [1, 1]} : vector<2x128xf32> to vector<2x32xf32>
    %315 = arith.mulf %308, %273 : vector<2x32xf32>
    %316 = arith.mulf %307, %313 : vector<2x32xf32>
    %317 = arith.addf %315, %316 : vector<2x32xf32>
    %318 = math.tanh %317 : vector<2x32xf32>
    %319 = arith.mulf %314, %318 : vector<2x32xf32>
    %320 = arith.negf %301 : vector<2x128xf32>
    %321 = math.exp %320 : vector<2x128xf32>
    %cst_137 = arith.constant 1.000000e+00 : f32
    %322 = vector.broadcast %cst_137 : f32 to vector<2x128xf32>
    %323 = arith.addf %322, %321 : vector<2x128xf32>
    %324 = arith.divf %322, %323 : vector<2x128xf32>
    %325 = vector.extract_strided_slice %324 {offsets = [0, 0], sizes = [2, 32], strides = [1, 1]} : vector<2x128xf32> to vector<2x32xf32>
    %326 = vector.extract_strided_slice %324 {offsets = [0, 32], sizes = [2, 32], strides = [1, 1]} : vector<2x128xf32> to vector<2x32xf32>
    %327 = vector.extract_strided_slice %324 {offsets = [0, 64], sizes = [2, 32], strides = [1, 1]} : vector<2x128xf32> to vector<2x32xf32>
    %cst_138 = arith.constant 2.000000e+00 : f32
    %328 = vector.broadcast %cst_138 : f32 to vector<2x32xf32>
    %329 = arith.mulf %328, %327 : vector<2x32xf32>
    %cst_139 = arith.constant 1.000000e+00 : f32
    %330 = vector.broadcast %cst_139 : f32 to vector<2x32xf32>
    %331 = arith.subf %329, %330 : vector<2x32xf32>
    %332 = vector.extract_strided_slice %324 {offsets = [0, 96], sizes = [2, 32], strides = [1, 1]} : vector<2x128xf32> to vector<2x32xf32>
    %333 = arith.mulf %326, %291 : vector<2x32xf32>
    %334 = arith.mulf %325, %331 : vector<2x32xf32>
    %335 = arith.addf %333, %334 : vector<2x32xf32>
    %336 = math.tanh %335 : vector<2x32xf32>
    %337 = arith.mulf %332, %336 : vector<2x32xf32>
    %c12_140 = arith.constant 12 : index
    %c0_141 = arith.constant 0 : index
    %338 = vector.load %arg13[%c12_140, %c0_141] : memref<16x64xf32, #tpu.memory_space<vmem>>, vector<2x32xf32>
    tpu.vector_store %arg13[%c12_140, %c0_141], %319 {strides = array<i32>} : memref<16x64xf32, #tpu.memory_space<vmem>>, vector<2x32xf32>,
    %c2_142 = arith.constant 2 : index
    %c32_143 = arith.constant 32 : index
    %339 = vector.load %arg13[%c2_142, %c32_143] : memref<16x64xf32, #tpu.memory_space<vmem>>, vector<2x32xf32>
    tpu.vector_store %arg13[%c2_142, %c32_143], %337 {strides = array<i32>} : memref<16x64xf32, #tpu.memory_space<vmem>>, vector<2x32xf32>,
    %cst_144 = arith.constant dense<0.000000e+00> : vector<2x128xf32>
    %340 = tpu.matmul %319, %21, %cst_144 {dimension_numbers = #tpu.dot_dimension_numbers<[1], [0], [0], [1], [0, 0, 1, 1], [], []>} : vector<2x32xf32>, vector<32x128xf32>, vector<2x128xf32> -> vector<2x128xf32>
    %c14_145 = arith.constant 14 : index
    %c0_146 = arith.constant 0 : index
    %341 = vector.load %arg14[%c14_145, %c0_146] : memref<16x128xf32, #tpu.memory_space<vmem>>, vector<2x128xf32>
    %342 = arith.addf %340, %341 : vector<2x128xf32>
    %cst_147 = arith.constant dense<0.000000e+00> : vector<2x128xf32>
    %343 = tpu.matmul %337, %23, %cst_147 {dimension_numbers = #tpu.dot_dimension_numbers<[1], [0], [0], [1], [0, 0, 1, 1], [], []>} : vector<2x32xf32>, vector<32x128xf32>, vector<2x128xf32> -> vector<2x128xf32>
    %c0_148 = arith.constant 0 : index
    %c0_149 = arith.constant 0 : index
    %344 = vector.load %arg15[%c0_148, %c0_149] : memref<16x128xf32, #tpu.memory_space<vmem>>, vector<2x128xf32>
    %345 = arith.addf %343, %344 : vector<2x128xf32>
    %346 = arith.negf %342 : vector<2x128xf32>
    %347 = math.exp %346 : vector<2x128xf32>
    %cst_150 = arith.constant 1.000000e+00 : f32
    %348 = vector.broadcast %cst_150 : f32 to vector<2x128xf32>
    %349 = arith.addf %348, %347 : vector<2x128xf32>
    %350 = arith.divf %348, %349 : vector<2x128xf32>
    %351 = vector.extract_strided_slice %350 {offsets = [0, 0], sizes = [2, 32], strides = [1, 1]} : vector<2x128xf32> to vector<2x32xf32>
    %352 = vector.extract_strided_slice %350 {offsets = [0, 32], sizes = [2, 32], strides = [1, 1]} : vector<2x128xf32> to vector<2x32xf32>
    %353 = vector.extract_strided_slice %350 {offsets = [0, 64], sizes = [2, 32], strides = [1, 1]} : vector<2x128xf32> to vector<2x32xf32>
    %cst_151 = arith.constant 2.000000e+00 : f32
    %354 = vector.broadcast %cst_151 : f32 to vector<2x32xf32>
    %355 = arith.mulf %354, %353 : vector<2x32xf32>
    %cst_152 = arith.constant 1.000000e+00 : f32
    %356 = vector.broadcast %cst_152 : f32 to vector<2x32xf32>
    %357 = arith.subf %355, %356 : vector<2x32xf32>
    %358 = vector.extract_strided_slice %350 {offsets = [0, 96], sizes = [2, 32], strides = [1, 1]} : vector<2x128xf32> to vector<2x32xf32>
    %359 = arith.mulf %352, %317 : vector<2x32xf32>
    %360 = arith.mulf %351, %357 : vector<2x32xf32>
    %361 = arith.addf %359, %360 : vector<2x32xf32>
    %362 = math.tanh %361 : vector<2x32xf32>
    %363 = arith.mulf %358, %362 : vector<2x32xf32>
    %364 = arith.negf %345 : vector<2x128xf32>
    %365 = math.exp %364 : vector<2x128xf32>
    %cst_153 = arith.constant 1.000000e+00 : f32
    %366 = vector.broadcast %cst_153 : f32 to vector<2x128xf32>
    %367 = arith.addf %366, %365 : vector<2x128xf32>
    %368 = arith.divf %366, %367 : vector<2x128xf32>
    %369 = vector.extract_strided_slice %368 {offsets = [0, 0], sizes = [2, 32], strides = [1, 1]} : vector<2x128xf32> to vector<2x32xf32>
    %370 = vector.extract_strided_slice %368 {offsets = [0, 32], sizes = [2, 32], strides = [1, 1]} : vector<2x128xf32> to vector<2x32xf32>
    %371 = vector.extract_strided_slice %368 {offsets = [0, 64], sizes = [2, 32], strides = [1, 1]} : vector<2x128xf32> to vector<2x32xf32>
    %cst_154 = arith.constant 2.000000e+00 : f32
    %372 = vector.broadcast %cst_154 : f32 to vector<2x32xf32>
    %373 = arith.mulf %372, %371 : vector<2x32xf32>
    %cst_155 = arith.constant 1.000000e+00 : f32
    %374 = vector.broadcast %cst_155 : f32 to vector<2x32xf32>
    %375 = arith.subf %373, %374 : vector<2x32xf32>
    %376 = vector.extract_strided_slice %368 {offsets = [0, 96], sizes = [2, 32], strides = [1, 1]} : vector<2x128xf32> to vector<2x32xf32>
    %377 = arith.mulf %370, %335 : vector<2x32xf32>
    %378 = arith.mulf %369, %375 : vector<2x32xf32>
    %379 = arith.addf %377, %378 : vector<2x32xf32>
    %380 = math.tanh %379 : vector<2x32xf32>
    %381 = arith.mulf %376, %380 : vector<2x32xf32>
    %c14_156 = arith.constant 14 : index
    %c0_157 = arith.constant 0 : index
    %382 = vector.load %arg13[%c14_156, %c0_157] : memref<16x64xf32, #tpu.memory_space<vmem>>, vector<2x32xf32>
    tpu.vector_store %arg13[%c14_156, %c0_157], %363 {strides = array<i32>} : memref<16x64xf32, #tpu.memory_space<vmem>>, vector<2x32xf32>,
    %c0_158 = arith.constant 0 : index
    %c32_159 = arith.constant 32 : index
    %383 = vector.load %arg13[%c0_158, %c32_159] : memref<16x64xf32, #tpu.memory_space<vmem>>, vector<2x32xf32>
    tpu.vector_store %arg13[%c0_158, %c32_159], %381 {strides = array<i32>} : memref<16x64xf32, #tpu.memory_space<vmem>>, vector<2x32xf32>,
    %c0_160 = arith.constant 0 : index
    %c0_161 = arith.constant 0 : index
    %c0_162 = arith.constant 0 : index
    %c0_163 = arith.constant 0 : index
    %384 = vector.load %arg11[%c0_160, %c0_161, %c0_162, %c0_163] : memref<1x2x2x32xf32, #tpu.memory_space<vmem>>, vector<1x1x2x32xf32>
    %385 = vector.shape_cast %384 : vector<1x1x2x32xf32> to vector<2x32xf32>
    %386 = vector.shape_cast %363 : vector<2x32xf32> to vector<1x1x2x32xf32>
    tpu.vector_store %arg11[%c0_160, %c0_161, %c0_162, %c0_163], %386 {strides = array<i32>} : memref<1x2x2x32xf32, #tpu.memory_space<vmem>>, vector<1x1x2x32xf32>,
    %c0_164 = arith.constant 0 : index
    %c1_165 = arith.constant 1 : index
    %c0_166 = arith.constant 0 : index
    %c0_167 = arith.constant 0 : index
    %387 = vector.load %arg11[%c0_164, %c1_165, %c0_166, %c0_167] : memref<1x2x2x32xf32, #tpu.memory_space<vmem>>, vector<1x1x2x32xf32>
    %388 = vector.shape_cast %387 : vector<1x1x2x32xf32> to vector<2x32xf32>
    %389 = vector.shape_cast %381 : vector<2x32xf32> to vector<1x1x2x32xf32>
    tpu.vector_store %arg11[%c0_164, %c1_165, %c0_166, %c0_167], %389 {strides = array<i32>} : memref<1x2x2x32xf32, #tpu.memory_space<vmem>>, vector<1x1x2x32xf32>,
    %c0_168 = arith.constant 0 : index
    %c0_169 = arith.constant 0 : index
    %c0_170 = arith.constant 0 : index
    %c0_171 = arith.constant 0 : index
    %390 = vector.load %arg12[%c0_168, %c0_169, %c0_170, %c0_171] : memref<1x2x2x32xf32, #tpu.memory_space<vmem>>, vector<1x1x2x32xf32>
    %391 = vector.shape_cast %390 : vector<1x1x2x32xf32> to vector<2x32xf32>
    %392 = vector.shape_cast %361 : vector<2x32xf32> to vector<1x1x2x32xf32>
    tpu.vector_store %arg12[%c0_168, %c0_169, %c0_170, %c0_171], %392 {strides = array<i32>} : memref<1x2x2x32xf32, #tpu.memory_space<vmem>>, vector<1x1x2x32xf32>,
    %c0_172 = arith.constant 0 : index
    %c1_173 = arith.constant 1 : index
    %c0_174 = arith.constant 0 : index
    %c0_175 = arith.constant 0 : index
    %393 = vector.load %arg12[%c0_172, %c1_173, %c0_174, %c0_175] : memref<1x2x2x32xf32, #tpu.memory_space<vmem>>, vector<1x1x2x32xf32>
    %394 = vector.shape_cast %393 : vector<1x1x2x32xf32> to vector<2x32xf32>
    %395 = vector.shape_cast %379 : vector<2x32xf32> to vector<1x1x2x32xf32>
    tpu.vector_store %arg12[%c0_172, %c1_173, %c0_174, %c0_175], %395 {strides = array<i32>} : memref<1x2x2x32xf32, #tpu.memory_space<vmem>>, vector<1x1x2x32xf32>,
    %c1_i32 = arith.constant 1 : i32
    %396 = arith.cmpi eq, %arg0, %c1_i32 : i32
    %397 = arith.extui %396 : i1 to i32
    %c0_i32_176 = arith.constant 0 : i32
    %398 = arith.cmpi ne, %397, %c0_i32_176 : i32
    scf.if %398 {
      %c0_177 = arith.constant 0 : index
      %c0_178 = arith.constant 0 : index
      %399 = vector.load %arg13[%c0_177, %c0_178] : memref<16x64xf32, #tpu.memory_space<vmem>>, vector<16x64xf32>
      %c0_179 = arith.constant 0 : index
      %c0_180 = arith.constant 0 : index
      %400 = vector.load %arg10[%c0_179, %c0_180] : memref<16x64xf32, #tpu.memory_space<vmem>>, vector<16x64xf32>
      tpu.vector_store %arg10[%c0_179, %c0_180], %399 {strides = array<i32>} : memref<16x64xf32, #tpu.memory_space<vmem>>, vector<16x64xf32>,
    } else {
    }
    return
  }
  func.func @transform_0(%arg0: i32) -> (i32, i32) {
    %c0_i32 = arith.constant 0 : i32
    %c0_i32_0 = arith.constant 0 : i32
    %c0_i32_1 = arith.constant 0 : i32
    return %c0_i32, %c0_i32_0 : i32, i32
  }
  func.func @transform_1(%arg0: i32) -> (i32, i32, i32) {
    %c0_i32 = arith.constant 0 : i32
    %c0_i32_0 = arith.constant 0 : i32
    %c0_i32_1 = arith.constant 0 : i32
    return %arg0, %c0_i32, %c0_i32_0 : i32, i32, i32
  }
  func.func @transform_2(%arg0: i32) -> (i32, i32, i32) {
    %c0_i32 = arith.constant 0 : i32
    %c0_i32_0 = arith.constant 0 : i32
    %c0_i32_1 = arith.constant 0 : i32
    return %arg0, %c0_i32, %c0_i32_0 : i32, i32, i32
  }
  func.func @transform_3(%arg0: i32) -> (i32, i32, i32) {
    %c0_i32 = arith.constant 0 : i32
    %c0_i32_0 = arith.constant 0 : i32
    %c0_i32_1 = arith.constant 0 : i32
    return %arg0, %c0_i32, %c0_i32_0 : i32, i32, i32
  }
  func.func @transform_4(%arg0: i32) -> (i32, i32, i32) {
    %c0_i32 = arith.constant 0 : i32
    %c0_i32_0 = arith.constant 0 : i32
    %c0_i32_1 = arith.constant 0 : i32
    return %arg0, %c0_i32, %c0_i32_0 : i32, i32, i32
  }
  func.func @transform_5(%arg0: i32) -> (i32, i32, i32) {
    %c0_i32 = arith.constant 0 : i32
    %c0_i32_0 = arith.constant 0 : i32
    %c0_i32_1 = arith.constant 0 : i32
    return %arg0, %c0_i32, %c0_i32_0 : i32, i32, i32
  }
  func.func @transform_6(%arg0: i32) -> (i32, i32, i32) {
    %c0_i32 = arith.constant 0 : i32
    %c0_i32_0 = arith.constant 0 : i32
    %c0_i32_1 = arith.constant 0 : i32
    return %arg0, %c0_i32, %c0_i32_0 : i32, i32, i32
  }
  func.func @transform_7(%arg0: i32) -> (i32, i32, i32, i32) {
    %c0_i32 = arith.constant 0 : i32
    %c0_i32_0 = arith.constant 0 : i32
    %c0_i32_1 = arith.constant 0 : i32
    %c0_i32_2 = arith.constant 0 : i32
    return %arg0, %c0_i32, %c0_i32_0, %c0_i32_1 : i32, i32, i32, i32
  }
  func.func @transform_8(%arg0: i32) -> (i32, i32, i32, i32) {
    %c0_i32 = arith.constant 0 : i32
    %c0_i32_0 = arith.constant 0 : i32
    %c0_i32_1 = arith.constant 0 : i32
    %c0_i32_2 = arith.constant 0 : i32
    return %arg0, %c0_i32, %c0_i32_0, %c0_i32_1 : i32, i32, i32, i32
  }
  func.func @transform_9(%arg0: i32) -> (i32, i32) {
    %c0_i32 = arith.constant 0 : i32
    %c0_i32_0 = arith.constant 0 : i32
    %c0_i32_1 = arith.constant 0 : i32
    return %c0_i32, %c0_i32_0 : i32, i32
  }
  func.func @transform_10(%arg0: i32) -> (i32, i32, i32, i32) {
    %c0_i32 = arith.constant 0 : i32
    %c0_i32_0 = arith.constant 0 : i32
    %c0_i32_1 = arith.constant 0 : i32
    %c0_i32_2 = arith.constant 0 : i32
    return %arg0, %c0_i32, %c0_i32_0, %c0_i32_1 : i32, i32, i32, i32
  }
  func.func @transform_11(%arg0: i32) -> (i32, i32, i32, i32) {
    %c0_i32 = arith.constant 0 : i32
    %c0_i32_0 = arith.constant 0 : i32
    %c0_i32_1 = arith.constant 0 : i32
    %c0_i32_2 = arith.constant 0 : i32
    return %arg0, %c0_i32, %c0_i32_0, %c0_i32_1 : i32, i32, i32, i32
  }
}

</mosaic_0001>

<llo_original>
// kernel: decoder_forward.1
$region0: #{decoder_forward.1}
  #allocation0 [shape = 'u32[]', space=smem, size = 0x4, offset = 0x4, fixed_abs, tag = 'smem constant byte address 0x4 - core index']
  #allocation1 [shape = 'u32[144,128]{1,0:T(1,128)}', space=vmem, size = 0x12000, scoped, tag = 'internal scratch']
  #allocation2 [shape = 'f32[16,64]{1,0:T(8,128)}', space=vmem, size = 0x2000, scoped, tag = 'scratch operand']
  #allocation3 [shape = 'f32[16,128]{1,0:T(8,128)}', space=vmem, size = 0x2000, scoped, tag = 'scratch operand']
  #allocation4 [shape = 'f32[16,128]{1,0:T(8,128)}', space=vmem, size = 0x2000, scoped, tag = 'scratch operand']
  %s0 = inlined_call_operand.vmem [shape: f32[16,64], index: 0, kind: input, shape index: {}]
  %s1 = inlined_call_operand.vmem [shape: f32[2,64,128], index: 1, kind: input, shape index: {}]
  %s2 = inlined_call_operand.vmem [shape: f32[2,64,128], index: 2, kind: input, shape index: {}]
  %s3 = inlined_call_operand.vmem [shape: f32[2,32,128], index: 3, kind: input, shape index: {}]
  %s4 = inlined_call_operand.vmem [shape: f32[2,32,128], index: 4, kind: input, shape index: {}]
  %s5 = inlined_call_operand.vmem [shape: f32[2,1,128], index: 5, kind: input, shape index: {}]
  %s6 = inlined_call_operand.vmem [shape: f32[2,1,128], index: 6, kind: input, shape index: {}]
  %s7 = inlined_call_operand.vmem [shape: f32[2,2,2,32], index: 7, kind: input, shape index: {}]
  %s8 = inlined_call_operand.vmem [shape: f32[2,2,2,32], index: 8, kind: input, shape index: {}]
  %s9 = inlined_call_operand.vmem [shape: f32[16,64], index: 9, kind: output, shape index: {0}]
  %s10 = inlined_call_operand.hbm [shape: f32[2,2,2,32], index: 10, kind: output, shape index: {1}]
  %s11 = inlined_call_operand.hbm [shape: f32[2,2,2,32], index: 11, kind: output, shape index: {2}]
  %12 = xla_tuple %s9, %s10, %s11
  %s13 = sld [smem:[#allocation0]]
  $region93: #{decoder_forward.1} parent=0
    _
  %s15 = ssub.s32 1, %s13
  %s16 = scalar_select 0, %s15, %s13
  $region1: #{decoder_forward.1} parent=0
    #allocation5 [shape = 'u8[4096]{0}', space=vmem, size = 0x1000, scoped, tag = 'output window, operand 1']
    #allocation6 [shape = 's32[2]{0}', space=sflag, size = 0x8, scoped, tag = 'scoped memory for decoder_forward.1']
    #allocation7 [shape = 'u8[4096]{0}', space=vmem, size = 0x1000, scoped, tag = 'output window, operand 2']
    #allocation8 [shape = 's32[2]{0}', space=sflag, size = 0x8, scoped, tag = 'scoped memory for decoder_forward.1']
    %17 = vsyncpa [#allocation6], 0
    %s18 = scalar_lea.sflag [#allocation6], 1
    %19 = vsyncpa %s18, 0
    %20 = vsyncpa [#allocation8], 0
    %s21 = scalar_lea.sflag [#allocation8], 1
    %22 = vsyncpa %s21, 0
    loop: start=0, step=1, limit=4
    $region2: #{decoder_forward.1} parent=1 // loop_pre_header
      _
    $region3: #{decoder_forward.1} parent=1 // loop_header
      %s24 = sphi 0, %s28
      %p25 = scmp.ge.s32.totalorder %s24, 4
      %s32 = sphi 0, %s32
      %s34 = sphi 0, %s32
      %s35 = sphi 0, %s34
      %s49 = sphi 0, %s35
      %s55 = sphi 0, %s57
      %s58 = sphi 0, %s55
      %s59 = sphi 0, %s58
      %s75 = sphi 0, %s59
      %s81 = sphi 0, %s83
      %s84 = sphi 0, %s81
      %s85 = sphi 0, %s84
      %s101 = sphi 0, %s85
      %s107 = sphi 0, %s109
      %s110 = sphi 0, %s107
      %s111 = sphi 0, %s110
      %s127 = sphi 0, %s111
      %s133 = sphi 0, %s135
      %s136 = sphi 0, %s133
      %s137 = sphi 0, %s136
      %s153 = sphi 0, %s137
      %s159 = sphi 0, %s161
      %s162 = sphi 0, %s159
      %s163 = sphi 0, %s162
      %s179 = sphi 0, %s163
      %s185 = sphi 0, %s187
      %s188 = sphi 0, %s185
      %s189 = sphi 0, %s188
      %s205 = sphi 0, %s189
      %s211 = sphi 0, %s213
      %s214 = sphi 0, %s211
      %s215 = sphi 0, %s214
      %s231 = sphi 0, %s215
      %s237 = sphi 0, %s239
      %s240 = sphi 0, %s237
      %s241 = sphi 0, %s240
      %s257 = sphi 0, %s241
      %s261 = sphi 0, %s261
      %s263 = sphi 0, %s261
      %s264 = sphi 0, %s263
      %s278 = sphi 0, %s264
      %s284 = sphi 0, %s286
      %s287 = sphi 0, %s284
      %s288 = sphi 0, %s287
      %s304 = sphi 0, %s288
      %s310 = sphi 0, %s312
      %s313 = sphi 0, %s310
      %s314 = sphi 0, %s313
      %s330 = sphi 0, %s314
    $region4: #{decoder_forward.1} parent=1 // loop_header_branch
      %27 = sbr.rel (%p25) target = $region8
    $region5: #{decoder_forward.1} parent=1 // loop_body
      %s29 = ssub.s32 %s24, 1
      %s30 = ssub.s32 %s24, 2
      %s31 = sadd.s32 %s24, 1
      %s33 = sadd.s32 %s32, 1
      %p36 = scmp.eq.s32.totalorder %s24, 1
      %p37 = scmp.ne.s32.totalorder %s32, %s34
      %p38 = scmp.eq.s32.totalorder %s24, 0
      %p39 = por %p37, %p38
      %p40 = scmp.ne.s32.totalorder %s32, %s34
      %p41 = scmp.eq.s32.totalorder %s29, 1
      %p42 = por %p40, %p41
      %p43 = scmp.ne.s32.totalorder %s34, %s35
      %p44 = scmp.eq.s32.totalorder %s29, 0
      %p45 = por %p43, %p44
      %p46 = scmp.ne.s32.totalorder %s34, %s35
      %p47 = scmp.eq.s32.totalorder %s30, 1
      %p48 = por %p46, %p47
      %p50 = scmp.ne.s32.totalorder %s35, %s49
      %p51 = scmp.eq.s32.totalorder %s30, 0
      %p52 = por %p50, %p51
      %s53 = ssub.s32 %s24, %s31
      %p54 = scmp.eq.s32.totalorder %s53, 0
      %s56 = sadd.s32 %s55, 1
      %s57 = scalar_select %p54, %s55, %s56
      %p60 = pneg %p54
      %p61 = scmp.eq.s32.totalorder %s24, 1
      %p62 = por %p60, %p61
      %p63 = scmp.ne.s32.totalorder %s55, %s58
      %p64 = scmp.eq.s32.totalorder %s24, 0
      %p65 = por %p63, %p64
      %p66 = scmp.ne.s32.totalorder %s55, %s58
      %p67 = scmp.eq.s32.totalorder %s29, 1
      %p68 = por %p66, %p67
      %p69 = scmp.ne.s32.totalorder %s58, %s59
      %p70 = scmp.eq.s32.totalorder %s29, 0
      %p71 = por %p69, %p70
      %p72 = scmp.ne.s32.totalorder %s58, %s59
      %p73 = scmp.eq.s32.totalorder %s30, 1
      %p74 = por %p72, %p73
      %p76 = scmp.ne.s32.totalorder %s59, %s75
      %p77 = scmp.eq.s32.totalorder %s30, 0
      %p78 = por %p76, %p77
      %s79 = ssub.s32 %s24, %s31
      %p80 = scmp.eq.s32.totalorder %s79, 0
      %s82 = sadd.s32 %s81, 1
      %s83 = scalar_select %p80, %s81, %s82
      %p86 = pneg %p80
      %p87 = scmp.eq.s32.totalorder %s24, 1
      %p88 = por %p86, %p87
      %p89 = scmp.ne.s32.totalorder %s81, %s84
      %p90 = scmp.eq.s32.totalorder %s24, 0
      %p91 = por %p89, %p90
      %p92 = scmp.ne.s32.totalorder %s81, %s84
      %p93 = scmp.eq.s32.totalorder %s29, 1
      %p94 = por %p92, %p93
      %p95 = scmp.ne.s32.totalorder %s84, %s85
      %p96 = scmp.eq.s32.totalorder %s29, 0
      %p97 = por %p95, %p96
      %p98 = scmp.ne.s32.totalorder %s84, %s85
      %p99 = scmp.eq.s32.totalorder %s30, 1
      %p100 = por %p98, %p99
      %p102 = scmp.ne.s32.totalorder %s85, %s101
      %p103 = scmp.eq.s32.totalorder %s30, 0
      %p104 = por %p102, %p103
      %s105 = ssub.s32 %s24, %s31
      %p106 = scmp.eq.s32.totalorder %s105, 0
      %s108 = sadd.s32 %s107, 1
      %s109 = scalar_select %p106, %s107, %s108
      %p112 = pneg %p106
      %p113 = scmp.eq.s32.totalorder %s24, 1
      %p114 = por %p112, %p113
      %p115 = scmp.ne.s32.totalorder %s107, %s110
      %p116 = scmp.eq.s32.totalorder %s24, 0
      %p117 = por %p115, %p116
      %p118 = scmp.ne.s32.totalorder %s107, %s110
      %p119 = scmp.eq.s32.totalorder %s29, 1
      %p120 = por %p118, %p119
      %p121 = scmp.ne.s32.totalorder %s110, %s111
      %p122 = scmp.eq.s32.totalorder %s29, 0
      %p123 = por %p121, %p122
      %p124 = scmp.ne.s32.totalorder %s110, %s111
      %p125 = scmp.eq.s32.totalorder %s30, 1
      %p126 = por %p124, %p125
      %p128 = scmp.ne.s32.totalorder %s111, %s127
      %p129 = scmp.eq.s32.totalorder %s30, 0
      %p130 = por %p128, %p129
      %s131 = ssub.s32 %s24, %s31
      %p132 = scmp.eq.s32.totalorder %s131, 0
      %s134 = sadd.s32 %s133, 1
      %s135 = scalar_select %p132, %s133, %s134
      %p138 = pneg %p132
      %p139 = scmp.eq.s32.totalorder %s24, 1
      %p140 = por %p138, %p139
      %p141 = scmp.ne.s32.totalorder %s133, %s136
      %p142 = scmp.eq.s32.totalorder %s24, 0
      %p143 = por %p141, %p142
      %p144 = scmp.ne.s32.totalorder %s133, %s136
      %p145 = scmp.eq.s32.totalorder %s29, 1
      %p146 = por %p144, %p145
      %p147 = scmp.ne.s32.totalorder %s136, %s137
      %p148 = scmp.eq.s32.totalorder %s29, 0
      %p149 = por %p147, %p148
      %p150 = scmp.ne.s32.totalorder %s136, %s137
      %p151 = scmp.eq.s32.totalorder %s30, 1
      %p152 = por %p150, %p151
      %p154 = scmp.ne.s32.totalorder %s137, %s153
      %p155 = scmp.eq.s32.totalorder %s30, 0
      %p156 = por %p154, %p155
      %s157 = ssub.s32 %s24, %s31
      %p158 = scmp.eq.s32.totalorder %s157, 0
      %s160 = sadd.s32 %s159, 1
      %s161 = scalar_select %p158, %s159, %s160
      %p164 = pneg %p158
      %p165 = scmp.eq.s32.totalorder %s24, 1
      %p166 = por %p164, %p165
      %p167 = scmp.ne.s32.totalorder %s159, %s162
      %p168 = scmp.eq.s32.totalorder %s24, 0
      %p169 = por %p167, %p168
      %p170 = scmp.ne.s32.totalorder %s159, %s162
      %p171 = scmp.eq.s32.totalorder %s29, 1
      %p172 = por %p170, %p171
      %p173 = scmp.ne.s32.totalorder %s162, %s163
      %p174 = scmp.eq.s32.totalorder %s29, 0
      %p175 = por %p173, %p174
      %p176 = scmp.ne.s32.totalorder %s162, %s163
      %p177 = scmp.eq.s32.totalorder %s30, 1
      %p178 = por %p176, %p177
      %p180 = scmp.ne.s32.totalorder %s163, %s179
      %p181 = scmp.eq.s32.totalorder %s30, 0
      %p182 = por %p180, %p181
      %s183 = ssub.s32 %s24, %s31
      %p184 = scmp.eq.s32.totalorder %s183, 0
      %s186 = sadd.s32 %s185, 1
      %s187 = scalar_select %p184, %s185, %s186
      %p190 = pneg %p184
      %p191 = scmp.eq.s32.totalorder %s24, 1
      %p192 = por %p190, %p191
      %p193 = scmp.ne.s32.totalorder %s185, %s188
      %p194 = scmp.eq.s32.totalorder %s24, 0
      %p195 = por %p193, %p194
      %p196 = scmp.ne.s32.totalorder %s185, %s188
      %p197 = scmp.eq.s32.totalorder %s29, 1
      %p198 = por %p196, %p197
      %p199 = scmp.ne.s32.totalorder %s188, %s189
      %p200 = scmp.eq.s32.totalorder %s29, 0
      %p201 = por %p199, %p200
      %p202 = scmp.ne.s32.totalorder %s188, %s189
      %p203 = scmp.eq.s32.totalorder %s30, 1
      %p204 = por %p202, %p203
      %p206 = scmp.ne.s32.totalorder %s189, %s205
      %p207 = scmp.eq.s32.totalorder %s30, 0
      %p208 = por %p206, %p207
      %s209 = ssub.s32 %s24, %s31
      %p210 = scmp.eq.s32.totalorder %s209, 0
      %s212 = sadd.s32 %s211, 1
      %s213 = scalar_select %p210, %s211, %s212
      %p216 = pneg %p210
      %p217 = scmp.eq.s32.totalorder %s24, 1
      %p218 = por %p216, %p217
      %p219 = scmp.ne.s32.totalorder %s211, %s214
      %p220 = scmp.eq.s32.totalorder %s24, 0
      %p221 = por %p219, %p220
      %p222 = scmp.ne.s32.totalorder %s211, %s214
      %p223 = scmp.eq.s32.totalorder %s29, 1
      %p224 = por %p222, %p223
      %p225 = scmp.ne.s32.totalorder %s214, %s215
      %p226 = scmp.eq.s32.totalorder %s29, 0
      %p227 = por %p225, %p226
      %p228 = scmp.ne.s32.totalorder %s214, %s215
      %p229 = scmp.eq.s32.totalorder %s30, 1
      %p230 = por %p228, %p229
      %p232 = scmp.ne.s32.totalorder %s215, %s231
      %p233 = scmp.eq.s32.totalorder %s30, 0
      %p234 = por %p232, %p233
      %s235 = ssub.s32 %s24, %s31
      %p236 = scmp.eq.s32.totalorder %s235, 0
      %s238 = sadd.s32 %s237, 1
      %s239 = scalar_select %p236, %s237, %s238
      %p242 = pneg %p236
      %p243 = scmp.eq.s32.totalorder %s24, 1
      %p244 = por %p242, %p243
      %p245 = scmp.ne.s32.totalorder %s237, %s240
      %p246 = scmp.eq.s32.totalorder %s24, 0
      %p247 = por %p245, %p246
      %p248 = scmp.ne.s32.totalorder %s237, %s240
      %p249 = scmp.eq.s32.totalorder %s29, 1
      %p250 = por %p248, %p249
      %p251 = scmp.ne.s32.totalorder %s240, %s241
      %p252 = scmp.eq.s32.totalorder %s29, 0
      %p253 = por %p251, %p252
      %p254 = scmp.ne.s32.totalorder %s240, %s241
      %p255 = scmp.eq.s32.totalorder %s30, 1
      %p256 = por %p254, %p255
      %p258 = scmp.ne.s32.totalorder %s241, %s257
      %p259 = scmp.eq.s32.totalorder %s30, 0
      %p260 = por %p258, %p259
      %s262 = sadd.s32 %s261, 1
      %p265 = scmp.eq.s32.totalorder %s24, 1
      %p266 = scmp.ne.s32.totalorder %s261, %s263
      %p267 = scmp.eq.s32.totalorder %s24, 0
      %p268 = por %p266, %p267
      %p269 = scmp.ne.s32.totalorder %s261, %s263
      %p270 = scmp.eq.s32.totalorder %s29, 1
      %p271 = por %p269, %p270
      %p272 = scmp.ne.s32.totalorder %s263, %s264
      %p273 = scmp.eq.s32.totalorder %s29, 0
      %p274 = por %p272, %p273
      %p275 = scmp.ne.s32.totalorder %s263, %s264
      %p276 = scmp.eq.s32.totalorder %s30, 1
      %p277 = por %p275, %p276
      %p279 = scmp.ne.s32.totalorder %s264, %s278
      %p280 = scmp.eq.s32.totalorder %s30, 0
      %p281 = por %p279, %p280
      %s282 = ssub.s32 %s24, %s31
      %p283 = scmp.eq.s32.totalorder %s282, 0
      %s285 = sadd.s32 %s284, 1
      %s286 = scalar_select %p283, %s284, %s285
      %p289 = pneg %p283
      %p290 = scmp.eq.s32.totalorder %s24, 1
      %p291 = por %p289, %p290
      %p292 = scmp.ne.s32.totalorder %s284, %s287
      %p293 = scmp.eq.s32.totalorder %s24, 0
      %p294 = por %p292, %p293
      %p295 = scmp.ne.s32.totalorder %s284, %s287
      %p296 = scmp.eq.s32.totalorder %s29, 1
      %p297 = por %p295, %p296
      %p298 = scmp.ne.s32.totalorder %s287, %s288
      %p299 = scmp.eq.s32.totalorder %s29, 0
      %p300 = por %p298, %p299
      %p301 = scmp.ne.s32.totalorder %s287, %s288
      %p302 = scmp.eq.s32.totalorder %s30, 1
      %p303 = por %p301, %p302
      %p305 = scmp.ne.s32.totalorder %s288, %s304
      %p306 = scmp.eq.s32.totalorder %s30, 0
      %p307 = por %p305, %p306
      %s308 = ssub.s32 %s24, %s31
      %p309 = scmp.eq.s32.totalorder %s308, 0
      %s311 = sadd.s32 %s310, 1
      %s312 = scalar_select %p309, %s310, %s311
      %p315 = pneg %p309
      %p316 = scmp.eq.s32.totalorder %s24, 1
      %p317 = por %p315, %p316
      %p318 = scmp.ne.s32.totalorder %s310, %s313
      %p319 = scmp.eq.s32.totalorder %s24, 0
      %p320 = por %p318, %p319
      %p321 = scmp.ne.s32.totalorder %s310, %s313
      %p322 = scmp.eq.s32.totalorder %s29, 1
      %p323 = por %p321, %p322
      %p324 = scmp.ne.s32.totalorder %s313, %s314
      %p325 = scmp.eq.s32.totalorder %s29, 0
      %p326 = por %p324, %p325
      %p327 = scmp.ne.s32.totalorder %s313, %s314
      %p328 = scmp.eq.s32.totalorder %s30, 1
      %p329 = por %p327, %p328
      %p331 = scmp.ne.s32.totalorder %s314, %s330
      %p332 = scmp.eq.s32.totalorder %s30, 0
      %p333 = por %p331, %p332
      %p334 = scmp.le.s32.totalorder 1, %s24
      %p335 = scmp.lt.s32.totalorder %s24, 3
      %p336 = pnand %p334, %p335
      %p337 = pneg %p336
      // Predicated region
      $region9: #{decoder_forward.1} parent=5 // pred_check
        _
      $region10: #{decoder_forward.1} parent=5 // pred_check_branch
        %339 = sbr.rel (%p336) target = $region12
      $region11: #{decoder_forward.1} parent=5 // pred_region
        %s340 = ssub.s32 %s24, 1
        // Predicated region
        $region13: #{decoder_forward.1} parent=11 // pred_check
          %p341 = pneg %p45
        $region14: #{decoder_forward.1} parent=11 // pred_check_branch
          %343 = sbr.rel (%p341) target = $region16
        $region15: #{decoder_forward.1} parent=11 // pred_region
          _
        $region16: #{decoder_forward.1} parent=11 // pred_fallthru
          _
      $region12: #{decoder_forward.1} parent=5 // pred_fallthru
        _
      %p344 = scmp.lt.s32.totalorder %s24, 2
      // Predicated region
      $region17: #{decoder_forward.1} parent=5 // pred_check
        %p345 = pneg %p344
      $region18: #{decoder_forward.1} parent=5 // pred_check_branch
        %347 = sbr.rel (%p345) target = $region20
      $region19: #{decoder_forward.1} parent=5 // pred_region
        // Predicated region
        $region21: #{decoder_forward.1} parent=19 // pred_check
          %p348 = pneg %p65
        $region22: #{decoder_forward.1} parent=19 // pred_check_branch
          %350 = sbr.rel (%p348) target = $region24
        $region23: #{decoder_forward.1} parent=19 // pred_region
          %p351 = scmp.lt.s32.totalorder %s24, 1
          %s352 = scalar_select %p351, %s24, 1
          %s353 = smul.addr %s352, 8
          %s354 = smul.addr %s353, 8
          %s355 = scalar_lea.vmem %s1, %s354
        $region24: #{decoder_forward.1} parent=19 // pred_fallthru
          _
        // Predicated region
        $region25: #{decoder_forward.1} parent=19 // pred_check
          %p356 = pneg %p91
        $region26: #{decoder_forward.1} parent=19 // pred_check_branch
          %358 = sbr.rel (%p356) target = $region28
        $region27: #{decoder_forward.1} parent=19 // pred_region
          %p359 = scmp.lt.s32.totalorder %s24, 1
          %s360 = scalar_select %p359, %s24, 1
          %s361 = smul.addr %s360, 8
          %s362 = smul.addr %s361, 8
          %s363 = scalar_lea.vmem %s2, %s362
        $region28: #{decoder_forward.1} parent=19 // pred_fallthru
          _
        // Predicated region
        $region29: #{decoder_forward.1} parent=19 // pred_check
          %p364 = pneg %p117
        $region30: #{decoder_forward.1} parent=19 // pred_check_branch
          %366 = sbr.rel (%p364) target = $region32
        $region31: #{decoder_forward.1} parent=19 // pred_region
          %p367 = scmp.lt.s32.totalorder %s24, 1
          %s368 = scalar_select %p367, %s24, 1
          %s369 = smul.addr %s368, 4
          %s370 = smul.addr %s369, 8
          %s371 = scalar_lea.vmem %s3, %s370
        $region32: #{decoder_forward.1} parent=19 // pred_fallthru
          _
        // Predicated region
        $region33: #{decoder_forward.1} parent=19 // pred_check
          %p372 = pneg %p143
        $region34: #{decoder_forward.1} parent=19 // pred_check_branch
          %374 = sbr.rel (%p372) target = $region36
        $region35: #{decoder_forward.1} parent=19 // pred_region
          %p375 = scmp.lt.s32.totalorder %s24, 1
          %s376 = scalar_select %p375, %s24, 1
          %s377 = smul.addr %s376, 4
          %s378 = smul.addr %s377, 8
          %s379 = scalar_lea.vmem %s4, %s378
        $region36: #{decoder_forward.1} parent=19 // pred_fallthru
          _
        // Predicated region
        $region37: #{decoder_forward.1} parent=19 // pred_check
          %p380 = pneg %p169
        $region38: #{decoder_forward.1} parent=19 // pred_check_branch
          %382 = sbr.rel (%p380) target = $region40
        $region39: #{decoder_forward.1} parent=19 // pred_region
          %p383 = scmp.lt.s32.totalorder %s24, 1
          %s384 = scalar_select %p383, %s24, 1
          %s385 = scalar_lea.vmem %s5, %s384
        $region40: #{decoder_forward.1} parent=19 // pred_fallthru
          _
        // Predicated region
        $region41: #{decoder_forward.1} parent=19 // pred_check
          %p386 = pneg %p195
        $region42: #{decoder_forward.1} parent=19 // pred_check_branch
          %388 = sbr.rel (%p386) target = $region44
        $region43: #{decoder_forward.1} parent=19 // pred_region
          %p389 = scmp.lt.s32.totalorder %s24, 1
          %s390 = scalar_select %p389, %s24, 1
          %s391 = scalar_lea.vmem %s6, %s390
        $region44: #{decoder_forward.1} parent=19 // pred_fallthru
          _
        // Predicated region
        $region45: #{decoder_forward.1} parent=19 // pred_check
          %p392 = pneg %p221
        $region46: #{decoder_forward.1} parent=19 // pred_check_branch
          %394 = sbr.rel (%p392) target = $region48
        $region47: #{decoder_forward.1} parent=19 // pred_region
          %p395 = scmp.lt.s32.totalorder %s24, 1
          %s396 = scalar_select %p395, %s24, 1
          %s397 = smul.addr %s396, 2
          %s398 = smul.addr %s397, 2
          %s399 = scalar_lea.vmem %s7, %s398
        $region48: #{decoder_forward.1} parent=19 // pred_fallthru
          _
        // Predicated region
        $region49: #{decoder_forward.1} parent=19 // pred_check
          %p400 = pneg %p247
        $region50: #{decoder_forward.1} parent=19 // pred_check_branch
          %402 = sbr.rel (%p400) target = $region52
        $region51: #{decoder_forward.1} parent=19 // pred_region
          %p403 = scmp.lt.s32.totalorder %s24, 1
          %s404 = scalar_select %p403, %s24, 1
          %s405 = smul.addr %s404, 2
          %s406 = smul.addr %s405, 2
          %s407 = scalar_lea.vmem %s8, %s406
        $region52: #{decoder_forward.1} parent=19 // pred_fallthru
          _
      $region20: #{decoder_forward.1} parent=5 // pred_fallthru
        _
      %p408 = scmp.le.s32.totalorder 1, %s24
      %p409 = scmp.lt.s32.totalorder %s24, 3
      %p410 = pnand %p408, %p409
      %p411 = pneg %p410
      // Predicated region
      $region53: #{decoder_forward.1} parent=5 // pred_check
        _
      $region54: #{decoder_forward.1} parent=5 // pred_check_branch
        %413 = sbr.rel (%p410) target = $region56
      $region55: #{decoder_forward.1} parent=5 // pred_region
        %s414 = ssub.s32 %s24, 1
        %p415 = pneg %p45
        %p416 = pneg %p42
        %p417 = scmp.lt.s32.totalorder %s29, 1
        %s418 = scalar_select %p417, %s29, 1
        %s419 = smul.addr %s418, 8
        %s420 = smul.addr %s419, 8
        %s421 = scalar_lea.vmem %s1, %s420
        %p422 = pneg %p71
        %p423 = pneg %p68
        %p424 = scmp.lt.s32.totalorder %s29, 1
        %s425 = scalar_select %p424, %s29, 1
        %s426 = smul.addr %s425, 8
        %s427 = smul.addr %s426, 8
        %s428 = scalar_lea.vmem %s2, %s427
        %p429 = pneg %p97
        %p430 = pneg %p94
        %p431 = scmp.lt.s32.totalorder %s29, 1
        %s432 = scalar_select %p431, %s29, 1
        %s433 = smul.addr %s432, 4
        %s434 = smul.addr %s433, 8
        %s435 = scalar_lea.vmem %s3, %s434
        %p436 = pneg %p123
        %p437 = pneg %p120
        %p438 = scmp.lt.s32.totalorder %s29, 1
        %s439 = scalar_select %p438, %s29, 1
        %s440 = smul.addr %s439, 4
        %s441 = smul.addr %s440, 8
        %s442 = scalar_lea.vmem %s4, %s441
        %p443 = pneg %p149
        %p444 = pneg %p146
        %p445 = scmp.lt.s32.totalorder %s29, 1
        %s446 = scalar_select %p445, %s29, 1
        %s447 = scalar_lea.vmem %s5, %s446
        %p448 = pneg %p175
        %p449 = pneg %p172
        %p450 = scmp.lt.s32.totalorder %s29, 1
        %s451 = scalar_select %p450, %s29, 1
        %s452 = scalar_lea.vmem %s6, %s451
        %p453 = pneg %p201
        %p454 = pneg %p198
        %p455 = scmp.lt.s32.totalorder %s29, 1
        %s456 = scalar_select %p455, %s29, 1
        %s457 = smul.addr %s456, 2
        %s458 = smul.addr %s457, 2
        %s459 = scalar_lea.vmem %s7, %s458
        %p460 = pneg %p227
        %p461 = pneg %p224
        %p462 = scmp.lt.s32.totalorder %s29, 1
        %s463 = scalar_select %p462, %s29, 1
        %s464 = smul.addr %s463, 2
        %s465 = smul.addr %s464, 2
        %s466 = scalar_lea.vmem %s8, %s465
        %p467 = pneg %p253
        %p468 = pneg %p250
        %p469 = pneg %p274
        %p470 = pneg %p271
        %p471 = pneg %p300
        %p472 = pneg %p297
        %s473 = sand.u32 %s287, 1
        %s474 = scalar_lea.sflag [#allocation6], %s473
        %s475 = sand.u32 %s287, 1
        %s476 = smul.addr %s475, 4
        %s477 = scalar_lea.vmem [#allocation5], %s476
        %p478 = pneg %p326
        %p479 = pneg %p323
        %s480 = sand.u32 %s313, 1
        %s481 = scalar_lea.sflag [#allocation8], %s480
        %s482 = sand.u32 %s313, 1
        %s483 = smul.addr %s482, 4
        %s484 = scalar_lea.vmem [#allocation7], %s483
        %p485 = scmp.lt.s32.totalorder %s29, 1
        %s486 = scalar_select %p485, %s29, 1
        %s487 = smul.addr %s486, 8
        %s488 = smul.addr %s487, 8
        %s489 = scalar_lea.vmem %s1, %s488
        %p490 = scmp.lt.s32.totalorder %s29, 1
        %s491 = scalar_select %p490, %s29, 1
        %s492 = smul.addr %s491, 8
        %s493 = smul.addr %s492, 8
        %s494 = scalar_lea.vmem %s2, %s493
        %p495 = scmp.lt.s32.totalorder %s29, 1
        %s496 = scalar_select %p495, %s29, 1
        %s497 = smul.addr %s496, 4
        %s498 = smul.addr %s497, 8
        %s499 = scalar_lea.vmem %s3, %s498
        %p500 = scmp.lt.s32.totalorder %s29, 1
        %s501 = scalar_select %p500, %s29, 1
        %s502 = smul.addr %s501, 4
        %s503 = smul.addr %s502, 8
        %s504 = scalar_lea.vmem %s4, %s503
        %p505 = scmp.lt.s32.totalorder %s29, 1
        %s506 = scalar_select %p505, %s29, 1
        %s507 = scalar_lea.vmem %s5, %s506
        %p508 = scmp.lt.s32.totalorder %s29, 1
        %s509 = scalar_select %p508, %s29, 1
        %s510 = scalar_lea.vmem %s6, %s509
        %p511 = scmp.lt.s32.totalorder %s29, 1
        %s512 = scalar_select %p511, %s29, 1
        %s513 = smul.addr %s512, 2
        %s514 = smul.addr %s513, 2
        %s515 = scalar_lea.vmem %s7, %s514
        %p516 = scmp.lt.s32.totalorder %s29, 1
        %s517 = scalar_select %p516, %s29, 1
        %s518 = smul.addr %s517, 2
        %s519 = smul.addr %s518, 2
        %s520 = scalar_lea.vmem %s8, %s519
        %p521 = scmp.eq.s32.totalorder %s29, 0
        // Predicated region
        $region57: #{decoder_forward.1} parent=55 // pred_check
          %p522 = pneg %p521
        $region58: #{decoder_forward.1} parent=55 // pred_check_branch
          %524 = sbr.rel (%p522) target = $region60
        $region59: #{decoder_forward.1} parent=55 // pred_region
          %v525 = vld [vmem:[%s0] sm:$0xff]
          %v526 = vld [vmem:[%s0 + $0x8] sm:$0xff]
          %vm527 = vcmask 523264
          %528 = vst.msk [vmem:[#allocation2] sm:$0xff] %vm527, %v525
          %529 = vst.msk [vmem:[#allocation2 + $0x8] sm:$0xff] %vm527, %v526
        $region60: #{decoder_forward.1} parent=55 // pred_fallthru
          _
        %v530 = vld [vmem:[#allocation2] sm:$0xff]
        %v531 = vld [vmem:[#allocation2 + $0x8] sm:$0xff]
        %v532 = vld [vmem:[%s489] sm:$0xff]
        %v533 = vld [vmem:[%s489 + $0x8] sm:$0xff]
        %v534 = vld [vmem:[%s489 + $0x10] sm:$0xff]
        %v535 = vld [vmem:[%s489 + $0x18] sm:$0xff]
        %v536 = vld [vmem:[%s489 + $0x20] sm:$0xff]
        %v537 = vld [vmem:[%s489 + $0x28] sm:$0xff]
        %v538 = vld [vmem:[%s489 + $0x30] sm:$0xff]
        %v539 = vld [vmem:[%s489 + $0x38] sm:$0xff]
        %v540 = vld [vmem:[%s507] sm:$0x1]
        %v542 = vlaneseq
        %v543 = vshrl.u32 %v542, 7
        %v544 = vsub.s32 0, %v543
        %v545 = vrot.slane %v540, %v544
        %vm547 = vcmask 523264
        %v549 = vsel %vm547, %v530, 0
        %v552 = vsel %vm547, %v531, 0
        %554 = vmatprep.subr.mxu0 0.0
        %555 = vmatpush1.msra.mxu0 %v532
        %556 = vmatprep.subr.mxu0 0.0
        %557 = vmatpush1.msra.mxu0 %v533
        %558 = vmatprep.subr.mxu0 0.0
        %559 = vmatpush1.msra.mxu0 %v534
        %560 = vmatprep.subr.mxu0 0.0
        %561 = vmatpush1.msra.mxu0 %v535
        %562 = vmatprep.subr.mxu0 0.0
        %563 = vmatpush1.msra.mxu0 %v536
        %564 = vmatprep.subr.mxu0 0.0
        %565 = vmatpush1.msra.mxu0 %v537
        %566 = vmatprep.subr.mxu0 0.0
        %567 = vmatpush1.msra.mxu0 %v538
        %568 = vmatprep.subr.mxu0 0.0
        %569 = vmatpush1.msra.mxu0 %v539
        %570 = vmatprep.subr.mxu0 0.0
        %571 = vmatpush1.msra.mxu0 0.0
        %572 = vmatprep.subr.mxu0 0.0
        %573 = vmatpush1.msra.mxu0 0.0
        %574 = vmatprep.subr.mxu0 0.0
        %575 = vmatpush1.msra.mxu0 0.0
        %576 = vmatprep.subr.mxu0 0.0
        %577 = vmatpush1.msra.mxu0 0.0
        %578 = vmatprep.subr.mxu0 0.0
        %579 = vmatpush1.msra.mxu0 0.0
        %580 = vmatprep.subr.mxu0 0.0
        %581 = vmatpush1.msra.mxu0 0.0
        %582 = vmatprep.subr.mxu0 0.0
        %583 = vmatpush1.msra.mxu0 0.0
        %584 = vmatprep.subr.mxu0 0.0
        %585 = vmatpush1.msra.mxu0 0.0
        %586 = vmatprep.subr.mxu0 0.0
        %587 = vmatpush1.msra.mxu0 0.0
        %588 = vmatprep.subr.mxu0 0.0
        %589 = vmatpush1.msra.mxu0 0.0
        %590 = vmatprep.subr.mxu0 0.0
        %591 = vmatpush1.msra.mxu0 0.0
        %592 = vmatprep.subr.mxu0 0.0
        %593 = vmatpush1.msra.mxu0 0.0
        %594 = vmatprep.subr.mxu0 0.0
        %595 = vmatpush1.msra.mxu0 0.0
        %596 = vmatprep.subr.mxu0 0.0
        %597 = vmatpush1.msra.mxu0 0.0
        %598 = vmatprep.subr.mxu0 0.0
        %599 = vmatpush1.msra.mxu0 0.0
        %600 = vmatprep.subr.mxu0 0.0
        %601 = vmatpush1.msra.mxu0 0.0
        %602 = vmatprep.subr.mxu0 0.0
        %603 = vmatpush1.msra.mxu0 0.0
        %604 = vmatprep.subr.mxu0 0.0
        %605 = vmatpush1.msra.mxu0 0.0
        %606 = vmatprep.subr.mxu0 0.0
        %607 = vmatpush1.msra.mxu0 0.0
        %608 = vmatprep.subr.mxu0 0.0
        %609 = vmatpush1.msra.mxu0 0.0
        %610 = vmatprep.subr.mxu0 0.0
        %611 = vmatpush1.msra.mxu0 0.0
        %612 = vmatprep.subr.mxu0 0.0
        %613 = vmatpush1.msra.mxu0 0.0
        %614 = vmatprep.subr.mxu0 0.0
        %615 = vmatpush1.msra.mxu0 0.0
        %616 = vmatprep.subr.mxu0 0.0
        %617 = vmatpush1.msra.mxu0 0.0
        %618 = vmatprep.mubr.f32.mxu0 0.0
        %619 = vmatmul.mubr.f32.gmra.mrb[0].mxu0 %v549
        %v620 = vpop.f32.mrb[0].mxu0
        %v621 = vadd.f32 %v545, %v620
        %v622 = vpop.f32.mrb[0].mxu0
        %623 = vmatprep.mubr.f32.mxu0 0.0
        %624 = vmatmul.mubr.f32.gmra.mrb[0].mxu0 %v552
        %v625 = vpop.f32.mrb[0].mxu0
        %v626 = vadd.f32 %v545, %v625
        %v627 = vpop.f32.mrb[0].mxu0
        %628 = vdwg.mxu0
        %629 = vst [vmem:[#allocation3] sm:$0xff] %v621
        %630 = vst [vmem:[#allocation3 + $0x8] sm:$0xff] %v626
        %v631 = vld [vmem:[%s494] sm:$0xff]
        %v632 = vld [vmem:[%s494 + $0x8] sm:$0xff]
        %v633 = vld [vmem:[%s494 + $0x10] sm:$0xff]
        %v634 = vld [vmem:[%s494 + $0x18] sm:$0xff]
        %v635 = vld [vmem:[%s494 + $0x20] sm:$0xff]
        %v636 = vld [vmem:[%s494 + $0x28] sm:$0xff]
        %v637 = vld [vmem:[%s494 + $0x30] sm:$0xff]
        %v638 = vld [vmem:[%s494 + $0x38] sm:$0xff]
        %v639 = vld [vmem:[%s510] sm:$0x1]
        %v641 = vlaneseq
        %v642 = vshrl.u32 %v641, 7
        %v643 = vsub.s32 0, %v642
        %v644 = vrot.slane %v639, %v643
        %646 = vmatprep.subr.mxu0 0.0
        %647 = vmatpush1.msra.mxu0 %v631
        %648 = vmatprep.subr.mxu0 0.0
        %649 = vmatpush1.msra.mxu0 %v632
        %650 = vmatprep.subr.mxu0 0.0
        %651 = vmatpush1.msra.mxu0 %v633
        %652 = vmatprep.subr.mxu0 0.0
        %653 = vmatpush1.msra.mxu0 %v634
        %654 = vmatprep.subr.mxu0 0.0
        %655 = vmatpush1.msra.mxu0 %v635
        %656 = vmatprep.subr.mxu0 0.0
        %657 = vmatpush1.msra.mxu0 %v636
        %658 = vmatprep.subr.mxu0 0.0
        %659 = vmatpush1.msra.mxu0 %v637
        %660 = vmatprep.subr.mxu0 0.0
        %661 = vmatpush1.msra.mxu0 %v638
        %662 = vmatprep.subr.mxu0 0.0
        %663 = vmatpush1.msra.mxu0 0.0
        %664 = vmatprep.subr.mxu0 0.0
        %665 = vmatpush1.msra.mxu0 0.0
        %666 = vmatprep.subr.mxu0 0.0
        %667 = vmatpush1.msra.mxu0 0.0
        %668 = vmatprep.subr.mxu0 0.0
        %669 = vmatpush1.msra.mxu0 0.0
        %670 = vmatprep.subr.mxu0 0.0
        %671 = vmatpush1.msra.mxu0 0.0
        %672 = vmatprep.subr.mxu0 0.0
        %673 = vmatpush1.msra.mxu0 0.0
        %674 = vmatprep.subr.mxu0 0.0
        %675 = vmatpush1.msra.mxu0 0.0
        %676 = vmatprep.subr.mxu0 0.0
        %677 = vmatpush1.msra.mxu0 0.0
        %678 = vmatprep.subr.mxu0 0.0
        %679 = vmatpush1.msra.mxu0 0.0
        %680 = vmatprep.subr.mxu0 0.0
        %681 = vmatpush1.msra.mxu0 0.0
        %682 = vmatprep.subr.mxu0 0.0
        %683 = vmatpush1.msra.mxu0 0.0
        %684 = vmatprep.subr.mxu0 0.0
        %685 = vmatpush1.msra.mxu0 0.0
        %686 = vmatprep.subr.mxu0 0.0
        %687 = vmatpush1.msra.mxu0 0.0
        %688 = vmatprep.subr.mxu0 0.0
        %689 = vmatpush1.msra.mxu0 0.0
        %690 = vmatprep.subr.mxu0 0.0
        %691 = vmatpush1.msra.mxu0 0.0
        %692 = vmatprep.subr.mxu0 0.0
        %693 = vmatpush1.msra.mxu0 0.0
        %694 = vmatprep.subr.mxu0 0.0
        %695 = vmatpush1.msra.mxu0 0.0
        %696 = vmatprep.subr.mxu0 0.0
        %697 = vmatpush1.msra.mxu0 0.0
        %698 = vmatprep.subr.mxu0 0.0
        %699 = vmatpush1.msra.mxu0 0.0
        %700 = vmatprep.subr.mxu0 0.0
        %701 = vmatpush1.msra.mxu0 0.0
        %702 = vmatprep.subr.mxu0 0.0
        %703 = vmatpush1.msra.mxu0 0.0
        %704 = vmatprep.subr.mxu0 0.0
        %705 = vmatpush1.msra.mxu0 0.0
        %706 = vmatprep.subr.mxu0 0.0
        %707 = vmatpush1.msra.mxu0 0.0
        %708 = vmatprep.subr.mxu0 0.0
        %709 = vmatpush1.msra.mxu0 0.0
        %710 = vmatprep.mubr.f32.mxu0 0.0
        %711 = vmatmul.mubr.f32.gmra.mrb[0].mxu0 %v549
        %v712 = vpop.f32.mrb[0].mxu0
        %v713 = vadd.f32 %v644, %v712
        %v714 = vpop.f32.mrb[0].mxu0
        %715 = vmatprep.mubr.f32.mxu0 0.0
        %716 = vmatmul.mubr.f32.gmra.mrb[0].mxu0 %v552
        %v717 = vpop.f32.mrb[0].mxu0
        %v718 = vadd.f32 %v644, %v717
        %v719 = vpop.f32.mrb[0].mxu0
        %720 = vdwg.mxu0
        %721 = vst [vmem:[#allocation4] sm:$0xff] %v713
        %722 = vst [vmem:[#allocation4 + $0x8] sm:$0xff] %v718
        %v723 = vld [vmem:[%s499] sm:$0xff]
        %v724 = vld [vmem:[%s499 + $0x8] sm:$0xff]
        %v725 = vld [vmem:[%s499 + $0x10] sm:$0xff]
        %v726 = vld [vmem:[%s499 + $0x18] sm:$0xff]
        %v727 = vld [vmem:[%s504] sm:$0xff]
        %v728 = vld [vmem:[%s504 + $0x8] sm:$0xff]
        %v729 = vld [vmem:[%s504 + $0x10] sm:$0xff]
        %v730 = vld [vmem:[%s504 + $0x18] sm:$0xff]
        %v731 = vld [vmem:[%s515] sm:$0x3]
        %v732 = vld [vmem:[%s520] sm:$0x3]
        %s733 = scalar_lea.vmem %s515, 2
        %v734 = vld [vmem:[%s733] sm:$0x3]
        %s735 = scalar_lea.vmem %s520, 2
        %v736 = vld [vmem:[%s735] sm:$0x3]
        %v737 = vld [vmem:[#allocation3] sm:$0x3]
        %vm738 = vcmask 261120
        %v740 = vsel %vm738, %v731, 0
        %742 = vmatprep.subr.mxu0 0.0
        %743 = vmatpush1.msra.mxu0 %v723
        %744 = vmatprep.subr.mxu0 0.0
        %745 = vmatpush1.msra.mxu0 %v724
        %746 = vmatprep.subr.mxu0 0.0
        %747 = vmatpush1.msra.mxu0 %v725
        %748 = vmatprep.subr.mxu0 0.0
        %749 = vmatpush1.msra.mxu0 %v726
        %750 = vmatprep.subr.mxu0 0.0
        %751 = vmatpush1.msra.mxu0 0.0
        %752 = vmatprep.subr.mxu0 0.0
        %753 = vmatpush1.msra.mxu0 0.0
        %754 = vmatprep.subr.mxu0 0.0
        %755 = vmatpush1.msra.mxu0 0.0
        %756 = vmatprep.subr.mxu0 0.0
        %757 = vmatpush1.msra.mxu0 0.0
        %758 = vmatprep.subr.mxu0 0.0
        %759 = vmatpush1.msra.mxu0 0.0
        %760 = vmatprep.subr.mxu0 0.0
        %761 = vmatpush1.msra.mxu0 0.0
        %762 = vmatprep.subr.mxu0 0.0
        %763 = vmatpush1.msra.mxu0 0.0
        %764 = vmatprep.subr.mxu0 0.0
        %765 = vmatpush1.msra.mxu0 0.0
        %766 = vmatprep.subr.mxu0 0.0
        %767 = vmatpush1.msra.mxu0 0.0
        %768 = vmatprep.subr.mxu0 0.0
        %769 = vmatpush1.msra.mxu0 0.0
        %770 = vmatprep.subr.mxu0 0.0
        %771 = vmatpush1.msra.mxu0 0.0
        %772 = vmatprep.subr.mxu0 0.0
        %773 = vmatpush1.msra.mxu0 0.0
        %774 = vmatprep.subr.mxu0 0.0
        %775 = vmatpush1.msra.mxu0 0.0
        %776 = vmatprep.subr.mxu0 0.0
        %777 = vmatpush1.msra.mxu0 0.0
        %778 = vmatprep.subr.mxu0 0.0
        %779 = vmatpush1.msra.mxu0 0.0
        %780 = vmatprep.subr.mxu0 0.0
        %781 = vmatpush1.msra.mxu0 0.0
        %782 = vmatprep.subr.mxu0 0.0
        %783 = vmatpush1.msra.mxu0 0.0
        %784 = vmatprep.subr.mxu0 0.0
        %785 = vmatpush1.msra.mxu0 0.0
        %786 = vmatprep.subr.mxu0 0.0
        %787 = vmatpush1.msra.mxu0 0.0
        %788 = vmatprep.subr.mxu0 0.0
        %789 = vmatpush1.msra.mxu0 0.0
        %790 = vmatprep.subr.mxu0 0.0
        %791 = vmatpush1.msra.mxu0 0.0
        %792 = vmatprep.subr.mxu0 0.0
        %793 = vmatpush1.msra.mxu0 0.0
        %794 = vmatprep.subr.mxu0 0.0
        %795 = vmatpush1.msra.mxu0 0.0
        %796 = vmatprep.subr.mxu0 0.0
        %797 = vmatpush1.msra.mxu0 0.0
        %798 = vmatprep.subr.mxu0 0.0
        %799 = vmatpush1.msra.mxu0 0.0
        %800 = vmatprep.subr.mxu0 0.0
        %801 = vmatpush1.msra.mxu0 0.0
        %802 = vmatprep.subr.mxu0 0.0
        %803 = vmatpush1.msra.mxu0 0.0
        %804 = vmatprep.subr.mxu0 0.0
        %805 = vmatpush1.msra.mxu0 0.0
        %806 = vmatprep.mubr.f32.mxu0 0.0
        %807 = vmatmul.mubr.f32.gmra.mrb[0].mxu0 %v740
        %v808 = vpop.f32.mrb[0].mxu0
        %v809 = vadd.f32 %v737, %v808
        %v810 = vpop.f32.mrb[0].mxu0
        %811 = vdwg.mxu0
        %v812 = vld [vmem:[#allocation4 + $0xe] sm:$0x3]
        %v814 = vsel %vm738, %v734, 0
        %816 = vmatprep.subr.mxu0 0.0
        %817 = vmatpush1.msra.mxu0 %v727
        %818 = vmatprep.subr.mxu0 0.0
        %819 = vmatpush1.msra.mxu0 %v728
        %820 = vmatprep.subr.mxu0 0.0
        %821 = vmatpush1.msra.mxu0 %v729
        %822 = vmatprep.subr.mxu0 0.0
        %823 = vmatpush1.msra.mxu0 %v730
        %824 = vmatprep.subr.mxu0 0.0
        %825 = vmatpush1.msra.mxu0 0.0
        %826 = vmatprep.subr.mxu0 0.0
        %827 = vmatpush1.msra.mxu0 0.0
        %828 = vmatprep.subr.mxu0 0.0
        %829 = vmatpush1.msra.mxu0 0.0
        %830 = vmatprep.subr.mxu0 0.0
        %831 = vmatpush1.msra.mxu0 0.0
        %832 = vmatprep.subr.mxu0 0.0
        %833 = vmatpush1.msra.mxu0 0.0
        %834 = vmatprep.subr.mxu0 0.0
        %835 = vmatpush1.msra.mxu0 0.0
        %836 = vmatprep.subr.mxu0 0.0
        %837 = vmatpush1.msra.mxu0 0.0
        %838 = vmatprep.subr.mxu0 0.0
        %839 = vmatpush1.msra.mxu0 0.0
        %840 = vmatprep.subr.mxu0 0.0
        %841 = vmatpush1.msra.mxu0 0.0
        %842 = vmatprep.subr.mxu0 0.0
        %843 = vmatpush1.msra.mxu0 0.0
        %844 = vmatprep.subr.mxu0 0.0
        %845 = vmatpush1.msra.mxu0 0.0
        %846 = vmatprep.subr.mxu0 0.0
        %847 = vmatpush1.msra.mxu0 0.0
        %848 = vmatprep.subr.mxu0 0.0
        %849 = vmatpush1.msra.mxu0 0.0
        %850 = vmatprep.subr.mxu0 0.0
        %851 = vmatpush1.msra.mxu0 0.0
        %852 = vmatprep.subr.mxu0 0.0
        %853 = vmatpush1.msra.mxu0 0.0
        %854 = vmatprep.subr.mxu0 0.0
        %855 = vmatpush1.msra.mxu0 0.0
        %856 = vmatprep.subr.mxu0 0.0
        %857 = vmatpush1.msra.mxu0 0.0
        %858 = vmatprep.subr.mxu0 0.0
        %859 = vmatpush1.msra.mxu0 0.0
        %860 = vmatprep.subr.mxu0 0.0
        %861 = vmatpush1.msra.mxu0 0.0
        %862 = vmatprep.subr.mxu0 0.0
        %863 = vmatpush1.msra.mxu0 0.0
        %864 = vmatprep.subr.mxu0 0.0
        %865 = vmatpush1.msra.mxu0 0.0
        %866 = vmatprep.subr.mxu0 0.0
        %867 = vmatpush1.msra.mxu0 0.0
        %868 = vmatprep.subr.mxu0 0.0
        %869 = vmatpush1.msra.mxu0 0.0
        %870 = vmatprep.subr.mxu0 0.0
        %871 = vmatpush1.msra.mxu0 0.0
        %872 = vmatprep.subr.mxu0 0.0
        %873 = vmatpush1.msra.mxu0 0.0
        %874 = vmatprep.subr.mxu0 0.0
        %875 = vmatpush1.msra.mxu0 0.0
        %876 = vmatprep.subr.mxu0 0.0
        %877 = vmatpush1.msra.mxu0 0.0
        %878 = vmatprep.subr.mxu0 0.0
        %879 = vmatpush1.msra.mxu0 0.0
        %880 = vmatprep.mubr.f32.mxu0 0.0
        %881 = vmatmul.mubr.f32.gmra.mrb[0].mxu0 %v814
        %v882 = vpop.f32.mrb[0].mxu0
        %v883 = vadd.f32 %v812, %v882
        %v884 = vpop.f32.mrb[0].mxu0
        %885 = vdwg.mxu0
        %v886 = vxor.u32 %v809, 2147483648
        %v887 = vmul.f32 %v886, 1.442695
        %v888 = vpow.pop %v887
        %v889 = vadd.f32 %v888, 1.0
        %v890 = vrcp.pop %v889
        %v891 = vmul.f32 1.0, %v890
        %v892 = vmul.f32 %v891, 2.0
        %v893 = vsub.f32 %v892, 1.0
        %895 = vrot.lane.b32.xlu0 %v732, 32
        %v896 = vpop.permute.xlu0 %895
        %v898 = vmul.f32 %v891, %v896
        %900 = vrot.lane.b32.xlu0 %v893, 64
        %v901 = vpop.permute.xlu0 %900
        %v903 = vmul.f32 %v891, %v901
        %905 = vrot.lane.b32.xlu0 %v903, 32
        %v906 = vpop.permute.xlu0 %905
        %v908 = vadd.f32 %v898, %v906
        %v909 = vtanh.pop %v908
        %911 = vrot.lane.b32.xlu0 %v909, 64
        %v912 = vpop.permute.xlu0 %911
        %v914 = vmul.f32 %v891, %v912
        %v915 = vxor.u32 %v883, 2147483648
        %v916 = vmul.f32 %v915, 1.442695
        %v917 = vpow.pop %v916
        %v918 = vadd.f32 %v917, 1.0
        %v919 = vrcp.pop %v918
        %v920 = vmul.f32 1.0, %v919
        %v921 = vmul.f32 %v920, 2.0
        %v922 = vsub.f32 %v921, 1.0
        %924 = vrot.lane.b32.xlu0 %v736, 32
        %v925 = vpop.permute.xlu0 %924
        %v927 = vmul.f32 %v920, %v925
        %929 = vrot.lane.b32.xlu0 %v922, 64
        %v930 = vpop.permute.xlu0 %929
        %v932 = vmul.f32 %v920, %v930
        %934 = vrot.lane.b32.xlu0 %v932, 32
        %v935 = vpop.permute.xlu0 %934
        %v937 = vadd.f32 %v927, %v935
        %v938 = vtanh.pop %v937
        %940 = vrot.lane.b32.xlu0 %v938, 64
        %v941 = vpop.permute.xlu0 %940
        %v943 = vmul.f32 %v920, %v941
        %945 = vrot.lane.b32.xlu0 %v914, 32
        %v946 = vpop.permute.xlu0 %945
        %vm948 = vcmask 254976
        %949 = vst.msk [vmem:[#allocation2] sm:$0x3] %vm948, %v946
        %951 = vrot.lane.b32.xlu0 %v943, 64
        %v952 = vpop.permute.xlu0 %951
        %vm954 = vcmask 517376
        %955 = vst.msk [vmem:[#allocation2 + $0xe] sm:$0x3] %vm954, %v952
        %v956 = vld [vmem:[#allocation3 + $0x2] sm:$0x3]
        %v957 = vsel %vm738, %v946, 0
        %959 = vmatprep.subr.mxu0 0.0
        %960 = vmatpush1.msra.mxu0 %v723
        %961 = vmatprep.subr.mxu0 0.0
        %962 = vmatpush1.msra.mxu0 %v724
        %963 = vmatprep.subr.mxu0 0.0
        %964 = vmatpush1.msra.mxu0 %v725
        %965 = vmatprep.subr.mxu0 0.0
        %966 = vmatpush1.msra.mxu0 %v726
        %967 = vmatprep.subr.mxu0 0.0
        %968 = vmatpush1.msra.mxu0 0.0
        %969 = vmatprep.subr.mxu0 0.0
        %970 = vmatpush1.msra.mxu0 0.0
        %971 = vmatprep.subr.mxu0 0.0
        %972 = vmatpush1.msra.mxu0 0.0
        %973 = vmatprep.subr.mxu0 0.0
        %974 = vmatpush1.msra.mxu0 0.0
        %975 = vmatprep.subr.mxu0 0.0
        %976 = vmatpush1.msra.mxu0 0.0
        %977 = vmatprep.subr.mxu0 0.0
        %978 = vmatpush1.msra.mxu0 0.0
        %979 = vmatprep.subr.mxu0 0.0
        %980 = vmatpush1.msra.mxu0 0.0
        %981 = vmatprep.subr.mxu0 0.0
        %982 = vmatpush1.msra.mxu0 0.0
        %983 = vmatprep.subr.mxu0 0.0
        %984 = vmatpush1.msra.mxu0 0.0
        %985 = vmatprep.subr.mxu0 0.0
        %986 = vmatpush1.msra.mxu0 0.0
        %987 = vmatprep.subr.mxu0 0.0
        %988 = vmatpush1.msra.mxu0 0.0
        %989 = vmatprep.subr.mxu0 0.0
        %990 = vmatpush1.msra.mxu0 0.0
        %991 = vmatprep.subr.mxu0 0.0
        %992 = vmatpush1.msra.mxu0 0.0
        %993 = vmatprep.subr.mxu0 0.0
        %994 = vmatpush1.msra.mxu0 0.0
        %995 = vmatprep.subr.mxu0 0.0
        %996 = vmatpush1.msra.mxu0 0.0
        %997 = vmatprep.subr.mxu0 0.0
        %998 = vmatpush1.msra.mxu0 0.0
        %999 = vmatprep.subr.mxu0 0.0
        %1000 = vmatpush1.msra.mxu0 0.0
        %1001 = vmatprep.subr.mxu0 0.0
        %1002 = vmatpush1.msra.mxu0 0.0
        %1003 = vmatprep.subr.mxu0 0.0
        %1004 = vmatpush1.msra.mxu0 0.0
        %1005 = vmatprep.subr.mxu0 0.0
        %1006 = vmatpush1.msra.mxu0 0.0
        %1007 = vmatprep.subr.mxu0 0.0
        %1008 = vmatpush1.msra.mxu0 0.0
        %1009 = vmatprep.subr.mxu0 0.0
        %1010 = vmatpush1.msra.mxu0 0.0
        %1011 = vmatprep.subr.mxu0 0.0
        %1012 = vmatpush1.msra.mxu0 0.0
        %1013 = vmatprep.subr.mxu0 0.0
        %1014 = vmatpush1.msra.mxu0 0.0
        %1015 = vmatprep.subr.mxu0 0.0
        %1016 = vmatpush1.msra.mxu0 0.0
        %1017 = vmatprep.subr.mxu0 0.0
        %1018 = vmatpush1.msra.mxu0 0.0
        %1019 = vmatprep.subr.mxu0 0.0
        %1020 = vmatpush1.msra.mxu0 0.0
        %1021 = vmatprep.subr.mxu0 0.0
        %1022 = vmatpush1.msra.mxu0 0.0
        %1023 = vmatprep.mubr.f32.mxu0 0.0
        %1024 = vmatmul.mubr.f32.gmra.mrb[0].mxu0 %v957
        %v1025 = vpop.f32.mrb[0].mxu0
        %v1026 = vadd.f32 %v956, %v1025
        %v1027 = vpop.f32.mrb[0].mxu0
        %1028 = vdwg.mxu0
        %v1029 = vld [vmem:[#allocation4 + $0xc] sm:$0x3]
        %1030 = vrot.lane.b32.xlu0 %v943, 32
        %v1031 = vpop.permute.xlu0 %1030
        %v1032 = vsel %vm738, %v1031, 0
        %1034 = vmatprep.subr.mxu0 0.0
        %1035 = vmatpush1.msra.mxu0 %v727
        %1036 = vmatprep.subr.mxu0 0.0
        %1037 = vmatpush1.msra.mxu0 %v728
        %1038 = vmatprep.subr.mxu0 0.0
        %1039 = vmatpush1.msra.mxu0 %v729
        %1040 = vmatprep.subr.mxu0 0.0
        %1041 = vmatpush1.msra.mxu0 %v730
        %1042 = vmatprep.subr.mxu0 0.0
        %1043 = vmatpush1.msra.mxu0 0.0
        %1044 = vmatprep.subr.mxu0 0.0
        %1045 = vmatpush1.msra.mxu0 0.0
        %1046 = vmatprep.subr.mxu0 0.0
        %1047 = vmatpush1.msra.mxu0 0.0
        %1048 = vmatprep.subr.mxu0 0.0
        %1049 = vmatpush1.msra.mxu0 0.0
        %1050 = vmatprep.subr.mxu0 0.0
        %1051 = vmatpush1.msra.mxu0 0.0
        %1052 = vmatprep.subr.mxu0 0.0
        %1053 = vmatpush1.msra.mxu0 0.0
        %1054 = vmatprep.subr.mxu0 0.0
        %1055 = vmatpush1.msra.mxu0 0.0
        %1056 = vmatprep.subr.mxu0 0.0
        %1057 = vmatpush1.msra.mxu0 0.0
        %1058 = vmatprep.subr.mxu0 0.0
        %1059 = vmatpush1.msra.mxu0 0.0
        %1060 = vmatprep.subr.mxu0 0.0
        %1061 = vmatpush1.msra.mxu0 0.0
        %1062 = vmatprep.subr.mxu0 0.0
        %1063 = vmatpush1.msra.mxu0 0.0
        %1064 = vmatprep.subr.mxu0 0.0
        %1065 = vmatpush1.msra.mxu0 0.0
        %1066 = vmatprep.subr.mxu0 0.0
        %1067 = vmatpush1.msra.mxu0 0.0
        %1068 = vmatprep.subr.mxu0 0.0
        %1069 = vmatpush1.msra.mxu0 0.0
        %1070 = vmatprep.subr.mxu0 0.0
        %1071 = vmatpush1.msra.mxu0 0.0
        %1072 = vmatprep.subr.mxu0 0.0
        %1073 = vmatpush1.msra.mxu0 0.0
        %1074 = vmatprep.subr.mxu0 0.0
        %1075 = vmatpush1.msra.mxu0 0.0
        %1076 = vmatprep.subr.mxu0 0.0
        %1077 = vmatpush1.msra.mxu0 0.0
        %1078 = vmatprep.subr.mxu0 0.0
        %1079 = vmatpush1.msra.mxu0 0.0
        %1080 = vmatprep.subr.mxu0 0.0
        %1081 = vmatpush1.msra.mxu0 0.0
        %1082 = vmatprep.subr.mxu0 0.0
        %1083 = vmatpush1.msra.mxu0 0.0
        %1084 = vmatprep.subr.mxu0 0.0
        %1085 = vmatpush1.msra.mxu0 0.0
        %1086 = vmatprep.subr.mxu0 0.0
        %1087 = vmatpush1.msra.mxu0 0.0
        %1088 = vmatprep.subr.mxu0 0.0
        %1089 = vmatpush1.msra.mxu0 0.0
        %1090 = vmatprep.subr.mxu0 0.0
        %1091 = vmatpush1.msra.mxu0 0.0
        %1092 = vmatprep.subr.mxu0 0.0
        %1093 = vmatpush1.msra.mxu0 0.0
        %1094 = vmatprep.subr.mxu0 0.0
        %1095 = vmatpush1.msra.mxu0 0.0
        %1096 = vmatprep.subr.mxu0 0.0
        %1097 = vmatpush1.msra.mxu0 0.0
        %1098 = vmatprep.mubr.f32.mxu0 0.0
        %1099 = vmatmul.mubr.f32.gmra.mrb[0].mxu0 %v1032
        %v1100 = vpop.f32.mrb[0].mxu0
        %v1101 = vadd.f32 %v1029, %v1100
        %v1102 = vpop.f32.mrb[0].mxu0
        %1103 = vdwg.mxu0
        %v1104 = vxor.u32 %v1026, 2147483648
        %v1105 = vmul.f32 %v1104, 1.442695
        %v1106 = vpow.pop %v1105
        %v1107 = vadd.f32 %v1106, 1.0
        %v1108 = vrcp.pop %v1107
        %v1109 = vmul.f32 1.0, %v1108
        %v1110 = vmul.f32 %v1109, 2.0
        %v1111 = vsub.f32 %v1110, 1.0
        %v1112 = vmul.f32 %v1109, %v908
        %1114 = vrot.lane.b32.xlu0 %v1111, 64
        %v1115 = vpop.permute.xlu0 %1114
        %v1117 = vmul.f32 %v1109, %v1115
        %1119 = vrot.lane.b32.xlu0 %v1117, 32
        %v1120 = vpop.permute.xlu0 %1119
        %v1122 = vadd.f32 %v1112, %v1120
        %v1123 = vtanh.pop %v1122
        %1125 = vrot.lane.b32.xlu0 %v1123, 64
        %v1126 = vpop.permute.xlu0 %1125
        %v1128 = vmul.f32 %v1109, %v1126
        %v1129 = vxor.u32 %v1101, 2147483648
        %v1130 = vmul.f32 %v1129, 1.442695
        %v1131 = vpow.pop %v1130
        %v1132 = vadd.f32 %v1131, 1.0
        %v1133 = vrcp.pop %v1132
        %v1134 = vmul.f32 1.0, %v1133
        %v1135 = vmul.f32 %v1134, 2.0
        %v1136 = vsub.f32 %v1135, 1.0
        %v1137 = vmul.f32 %v1134, %v937
        %1139 = vrot.lane.b32.xlu0 %v1136, 64
        %v1140 = vpop.permute.xlu0 %1139
        %v1142 = vmul.f32 %v1134, %v1140
        %1144 = vrot.lane.b32.xlu0 %v1142, 32
        %v1145 = vpop.permute.xlu0 %1144
        %v1147 = vadd.f32 %v1137, %v1145
        %v1148 = vtanh.pop %v1147
        %1150 = vrot.lane.b32.xlu0 %v1148, 64
        %v1151 = vpop.permute.xlu0 %1150
        %v1153 = vmul.f32 %v1134, %v1151
        %1155 = vrot.lane.b32.xlu0 %v1128, 32
        %v1156 = vpop.permute.xlu0 %1155
        %1158 = vst.msk [vmem:[#allocation2 + $0x2] sm:$0x3] %vm948, %v1156
        %1160 = vrot.lane.b32.xlu0 %v1153, 64
        %v1161 = vpop.permute.xlu0 %1160
        %1163 = vst.msk [vmem:[#allocation2 + $0xc] sm:$0x3] %vm954, %v1161
        %v1164 = vld [vmem:[#allocation3 + $0x4] sm:$0x3]
        %v1165 = vsel %vm738, %v1156, 0
        %1167 = vmatprep.subr.mxu0 0.0
        %1168 = vmatpush1.msra.mxu0 %v723
        %1169 = vmatprep.subr.mxu0 0.0
        %1170 = vmatpush1.msra.mxu0 %v724
        %1171 = vmatprep.subr.mxu0 0.0
        %1172 = vmatpush1.msra.mxu0 %v725
        %1173 = vmatprep.subr.mxu0 0.0
        %1174 = vmatpush1.msra.mxu0 %v726
        %1175 = vmatprep.subr.mxu0 0.0
        %1176 = vmatpush1.msra.mxu0 0.0
        %1177 = vmatprep.subr.mxu0 0.0
        %1178 = vmatpush1.msra.mxu0 0.0
        %1179 = vmatprep.subr.mxu0 0.0
        %1180 = vmatpush1.msra.mxu0 0.0
        %1181 = vmatprep.subr.mxu0 0.0
        %1182 = vmatpush1.msra.mxu0 0.0
        %1183 = vmatprep.subr.mxu0 0.0
        %1184 = vmatpush1.msra.mxu0 0.0
        %1185 = vmatprep.subr.mxu0 0.0
        %1186 = vmatpush1.msra.mxu0 0.0
        %1187 = vmatprep.subr.mxu0 0.0
        %1188 = vmatpush1.msra.mxu0 0.0
        %1189 = vmatprep.subr.mxu0 0.0
        %1190 = vmatpush1.msra.mxu0 0.0
        %1191 = vmatprep.subr.mxu0 0.0
        %1192 = vmatpush1.msra.mxu0 0.0
        %1193 = vmatprep.subr.mxu0 0.0
        %1194 = vmatpush1.msra.mxu0 0.0
        %1195 = vmatprep.subr.mxu0 0.0
        %1196 = vmatpush1.msra.mxu0 0.0
        %1197 = vmatprep.subr.mxu0 0.0
        %1198 = vmatpush1.msra.mxu0 0.0
        %1199 = vmatprep.subr.mxu0 0.0
        %1200 = vmatpush1.msra.mxu0 0.0
        %1201 = vmatprep.subr.mxu0 0.0
        %1202 = vmatpush1.msra.mxu0 0.0
        %1203 = vmatprep.subr.mxu0 0.0
        %1204 = vmatpush1.msra.mxu0 0.0
        %1205 = vmatprep.subr.mxu0 0.0
        %1206 = vmatpush1.msra.mxu0 0.0
        %1207 = vmatprep.subr.mxu0 0.0
        %1208 = vmatpush1.msra.mxu0 0.0
        %1209 = vmatprep.subr.mxu0 0.0
        %1210 = vmatpush1.msra.mxu0 0.0
        %1211 = vmatprep.subr.mxu0 0.0
        %1212 = vmatpush1.msra.mxu0 0.0
        %1213 = vmatprep.subr.mxu0 0.0
        %1214 = vmatpush1.msra.mxu0 0.0
        %1215 = vmatprep.subr.mxu0 0.0
        %1216 = vmatpush1.msra.mxu0 0.0
        %1217 = vmatprep.subr.mxu0 0.0
        %1218 = vmatpush1.msra.mxu0 0.0
        %1219 = vmatprep.subr.mxu0 0.0
        %1220 = vmatpush1.msra.mxu0 0.0
        %1221 = vmatprep.subr.mxu0 0.0
        %1222 = vmatpush1.msra.mxu0 0.0
        %1223 = vmatprep.subr.mxu0 0.0
        %1224 = vmatpush1.msra.mxu0 0.0
        %1225 = vmatprep.subr.mxu0 0.0
        %1226 = vmatpush1.msra.mxu0 0.0
        %1227 = vmatprep.subr.mxu0 0.0
        %1228 = vmatpush1.msra.mxu0 0.0
        %1229 = vmatprep.subr.mxu0 0.0
        %1230 = vmatpush1.msra.mxu0 0.0
        %1231 = vmatprep.mubr.f32.mxu0 0.0
        %1232 = vmatmul.mubr.f32.gmra.mrb[0].mxu0 %v1165
        %v1233 = vpop.f32.mrb[0].mxu0
        %v1234 = vadd.f32 %v1164, %v1233
        %v1235 = vpop.f32.mrb[0].mxu0
        %1236 = vdwg.mxu0
        %v1237 = vld [vmem:[#allocation4 + $0xa] sm:$0x3]
        %1238 = vrot.lane.b32.xlu0 %v1153, 32
        %v1239 = vpop.permute.xlu0 %1238
        %v1240 = vsel %vm738, %v1239, 0
        %1242 = vmatprep.subr.mxu0 0.0
        %1243 = vmatpush1.msra.mxu0 %v727
        %1244 = vmatprep.subr.mxu0 0.0
        %1245 = vmatpush1.msra.mxu0 %v728
        %1246 = vmatprep.subr.mxu0 0.0
        %1247 = vmatpush1.msra.mxu0 %v729
        %1248 = vmatprep.subr.mxu0 0.0
        %1249 = vmatpush1.msra.mxu0 %v730
        %1250 = vmatprep.subr.mxu0 0.0
        %1251 = vmatpush1.msra.mxu0 0.0
        %1252 = vmatprep.subr.mxu0 0.0
        %1253 = vmatpush1.msra.mxu0 0.0
        %1254 = vmatprep.subr.mxu0 0.0
        %1255 = vmatpush1.msra.mxu0 0.0
        %1256 = vmatprep.subr.mxu0 0.0
        %1257 = vmatpush1.msra.mxu0 0.0
        %1258 = vmatprep.subr.mxu0 0.0
        %1259 = vmatpush1.msra.mxu0 0.0
        %1260 = vmatprep.subr.mxu0 0.0
        %1261 = vmatpush1.msra.mxu0 0.0
        %1262 = vmatprep.subr.mxu0 0.0
        %1263 = vmatpush1.msra.mxu0 0.0
        %1264 = vmatprep.subr.mxu0 0.0
        %1265 = vmatpush1.msra.mxu0 0.0
        %1266 = vmatprep.subr.mxu0 0.0
        %1267 = vmatpush1.msra.mxu0 0.0
        %1268 = vmatprep.subr.mxu0 0.0
        %1269 = vmatpush1.msra.mxu0 0.0
        %1270 = vmatprep.subr.mxu0 0.0
        %1271 = vmatpush1.msra.mxu0 0.0
        %1272 = vmatprep.subr.mxu0 0.0
        %1273 = vmatpush1.msra.mxu0 0.0
        %1274 = vmatprep.subr.mxu0 0.0
        %1275 = vmatpush1.msra.mxu0 0.0
        %1276 = vmatprep.subr.mxu0 0.0
        %1277 = vmatpush1.msra.mxu0 0.0
        %1278 = vmatprep.subr.mxu0 0.0
        %1279 = vmatpush1.msra.mxu0 0.0
        %1280 = vmatprep.subr.mxu0 0.0
        %1281 = vmatpush1.msra.mxu0 0.0
        %1282 = vmatprep.subr.mxu0 0.0
        %1283 = vmatpush1.msra.mxu0 0.0
        %1284 = vmatprep.subr.mxu0 0.0
        %1285 = vmatpush1.msra.mxu0 0.0
        %1286 = vmatprep.subr.mxu0 0.0
        %1287 = vmatpush1.msra.mxu0 0.0
        %1288 = vmatprep.subr.mxu0 0.0
        %1289 = vmatpush1.msra.mxu0 0.0
        %1290 = vmatprep.subr.mxu0 0.0
        %1291 = vmatpush1.msra.mxu0 0.0
        %1292 = vmatprep.subr.mxu0 0.0
        %1293 = vmatpush1.msra.mxu0 0.0
        %1294 = vmatprep.subr.mxu0 0.0
        %1295 = vmatpush1.msra.mxu0 0.0
        %1296 = vmatprep.subr.mxu0 0.0
        %1297 = vmatpush1.msra.mxu0 0.0
        %1298 = vmatprep.subr.mxu0 0.0
        %1299 = vmatpush1.msra.mxu0 0.0
        %1300 = vmatprep.subr.mxu0 0.0
        %1301 = vmatpush1.msra.mxu0 0.0
        %1302 = vmatprep.subr.mxu0 0.0
        %1303 = vmatpush1.msra.mxu0 0.0
        %1304 = vmatprep.subr.mxu0 0.0
        %1305 = vmatpush1.msra.mxu0 0.0
        %1306 = vmatprep.mubr.f32.mxu0 0.0
        %1307 = vmatmul.mubr.f32.gmra.mrb[0].mxu0 %v1240
        %v1308 = vpop.f32.mrb[0].mxu0
        %v1309 = vadd.f32 %v1237, %v1308
        %v1310 = vpop.f32.mrb[0].mxu0
        %1311 = vdwg.mxu0
        %v1312 = vxor.u32 %v1234, 2147483648
        %v1313 = vmul.f32 %v1312, 1.442695
        %v1314 = vpow.pop %v1313
        %v1315 = vadd.f32 %v1314, 1.0
        %v1316 = vrcp.pop %v1315
        %v1317 = vmul.f32 1.0, %v1316
        %v1318 = vmul.f32 %v1317, 2.0
        %v1319 = vsub.f32 %v1318, 1.0
        %v1320 = vmul.f32 %v1317, %v1122
        %1322 = vrot.lane.b32.xlu0 %v1319, 64
        %v1323 = vpop.permute.xlu0 %1322
        %v1325 = vmul.f32 %v1317, %v1323
        %1327 = vrot.lane.b32.xlu0 %v1325, 32
        %v1328 = vpop.permute.xlu0 %1327
        %v1330 = vadd.f32 %v1320, %v1328
        %v1331 = vtanh.pop %v1330
        %1333 = vrot.lane.b32.xlu0 %v1331, 64
        %v1334 = vpop.permute.xlu0 %1333
        %v1336 = vmul.f32 %v1317, %v1334
        %v1337 = vxor.u32 %v1309, 2147483648
        %v1338 = vmul.f32 %v1337, 1.442695
        %v1339 = vpow.pop %v1338
        %v1340 = vadd.f32 %v1339, 1.0
        %v1341 = vrcp.pop %v1340
        %v1342 = vmul.f32 1.0, %v1341
        %v1343 = vmul.f32 %v1342, 2.0
        %v1344 = vsub.f32 %v1343, 1.0
        %v1345 = vmul.f32 %v1342, %v1147
        %1347 = vrot.lane.b32.xlu0 %v1344, 64
        %v1348 = vpop.permute.xlu0 %1347
        %v1350 = vmul.f32 %v1342, %v1348
        %1352 = vrot.lane.b32.xlu0 %v1350, 32
        %v1353 = vpop.permute.xlu0 %1352
        %v1355 = vadd.f32 %v1345, %v1353
        %v1356 = vtanh.pop %v1355
        %1358 = vrot.lane.b32.xlu0 %v1356, 64
        %v1359 = vpop.permute.xlu0 %1358
        %v1361 = vmul.f32 %v1342, %v1359
        %1363 = vrot.lane.b32.xlu0 %v1336, 32
        %v1364 = vpop.permute.xlu0 %1363
        %1366 = vst.msk [vmem:[#allocation2 + $0x4] sm:$0x3] %vm948, %v1364
        %1368 = vrot.lane.b32.xlu0 %v1361, 64
        %v1369 = vpop.permute.xlu0 %1368
        %1371 = vst.msk [vmem:[#allocation2 + $0xa] sm:$0x3] %vm954, %v1369
        %v1372 = vld [vmem:[#allocation3 + $0x6] sm:$0x3]
        %v1373 = vsel %vm738, %v1364, 0
        %1375 = vmatprep.subr.mxu0 0.0
        %1376 = vmatpush1.msra.mxu0 %v723
        %1377 = vmatprep.subr.mxu0 0.0
        %1378 = vmatpush1.msra.mxu0 %v724
        %1379 = vmatprep.subr.mxu0 0.0
        %1380 = vmatpush1.msra.mxu0 %v725
        %1381 = vmatprep.subr.mxu0 0.0
        %1382 = vmatpush1.msra.mxu0 %v726
        %1383 = vmatprep.subr.mxu0 0.0
        %1384 = vmatpush1.msra.mxu0 0.0
        %1385 = vmatprep.subr.mxu0 0.0
        %1386 = vmatpush1.msra.mxu0 0.0
        %1387 = vmatprep.subr.mxu0 0.0
        %1388 = vmatpush1.msra.mxu0 0.0
        %1389 = vmatprep.subr.mxu0 0.0
        %1390 = vmatpush1.msra.mxu0 0.0
        %1391 = vmatprep.subr.mxu0 0.0
        %1392 = vmatpush1.msra.mxu0 0.0
        %1393 = vmatprep.subr.mxu0 0.0
        %1394 = vmatpush1.msra.mxu0 0.0
        %1395 = vmatprep.subr.mxu0 0.0
        %1396 = vmatpush1.msra.mxu0 0.0
        %1397 = vmatprep.subr.mxu0 0.0
        %1398 = vmatpush1.msra.mxu0 0.0
        %1399 = vmatprep.subr.mxu0 0.0
        %1400 = vmatpush1.msra.mxu0 0.0
        %1401 = vmatprep.subr.mxu0 0.0
        %1402 = vmatpush1.msra.mxu0 0.0
        %1403 = vmatprep.subr.mxu0 0.0
        %1404 = vmatpush1.msra.mxu0 0.0
        %1405 = vmatprep.subr.mxu0 0.0
        %1406 = vmatpush1.msra.mxu0 0.0
        %1407 = vmatprep.subr.mxu0 0.0
        %1408 = vmatpush1.msra.mxu0 0.0
        %1409 = vmatprep.subr.mxu0 0.0
        %1410 = vmatpush1.msra.mxu0 0.0
        %1411 = vmatprep.subr.mxu0 0.0
        %1412 = vmatpush1.msra.mxu0 0.0
        %1413 = vmatprep.subr.mxu0 0.0
        %1414 = vmatpush1.msra.mxu0 0.0
        %1415 = vmatprep.subr.mxu0 0.0
        %1416 = vmatpush1.msra.mxu0 0.0
        %1417 = vmatprep.subr.mxu0 0.0
        %1418 = vmatpush1.msra.mxu0 0.0
        %1419 = vmatprep.subr.mxu0 0.0
        %1420 = vmatpush1.msra.mxu0 0.0
        %1421 = vmatprep.subr.mxu0 0.0
        %1422 = vmatpush1.msra.mxu0 0.0
        %1423 = vmatprep.subr.mxu0 0.0
        %1424 = vmatpush1.msra.mxu0 0.0
        %1425 = vmatprep.subr.mxu0 0.0
        %1426 = vmatpush1.msra.mxu0 0.0
        %1427 = vmatprep.subr.mxu0 0.0
        %1428 = vmatpush1.msra.mxu0 0.0
        %1429 = vmatprep.subr.mxu0 0.0
        %1430 = vmatpush1.msra.mxu0 0.0
        %1431 = vmatprep.subr.mxu0 0.0
        %1432 = vmatpush1.msra.mxu0 0.0
        %1433 = vmatprep.subr.mxu0 0.0
        %1434 = vmatpush1.msra.mxu0 0.0
        %1435 = vmatprep.subr.mxu0 0.0
        %1436 = vmatpush1.msra.mxu0 0.0
        %1437 = vmatprep.subr.mxu0 0.0
        %1438 = vmatpush1.msra.mxu0 0.0
        %1439 = vmatprep.mubr.f32.mxu0 0.0
        %1440 = vmatmul.mubr.f32.gmra.mrb[0].mxu0 %v1373
        %v1441 = vpop.f32.mrb[0].mxu0
        %v1442 = vadd.f32 %v1372, %v1441
        %v1443 = vpop.f32.mrb[0].mxu0
        %1444 = vdwg.mxu0
        %v1445 = vld [vmem:[#allocation4 + $0x8] sm:$0x3]
        %1446 = vrot.lane.b32.xlu0 %v1361, 32
        %v1447 = vpop.permute.xlu0 %1446
        %v1448 = vsel %vm738, %v1447, 0
        %1450 = vmatprep.subr.mxu0 0.0
        %1451 = vmatpush1.msra.mxu0 %v727
        %1452 = vmatprep.subr.mxu0 0.0
        %1453 = vmatpush1.msra.mxu0 %v728
        %1454 = vmatprep.subr.mxu0 0.0
        %1455 = vmatpush1.msra.mxu0 %v729
        %1456 = vmatprep.subr.mxu0 0.0
        %1457 = vmatpush1.msra.mxu0 %v730
        %1458 = vmatprep.subr.mxu0 0.0
        %1459 = vmatpush1.msra.mxu0 0.0
        %1460 = vmatprep.subr.mxu0 0.0
        %1461 = vmatpush1.msra.mxu0 0.0
        %1462 = vmatprep.subr.mxu0 0.0
        %1463 = vmatpush1.msra.mxu0 0.0
        %1464 = vmatprep.subr.mxu0 0.0
        %1465 = vmatpush1.msra.mxu0 0.0
        %1466 = vmatprep.subr.mxu0 0.0
        %1467 = vmatpush1.msra.mxu0 0.0
        %1468 = vmatprep.subr.mxu0 0.0
        %1469 = vmatpush1.msra.mxu0 0.0
        %1470 = vmatprep.subr.mxu0 0.0
        %1471 = vmatpush1.msra.mxu0 0.0
        %1472 = vmatprep.subr.mxu0 0.0
        %1473 = vmatpush1.msra.mxu0 0.0
        %1474 = vmatprep.subr.mxu0 0.0
        %1475 = vmatpush1.msra.mxu0 0.0
        %1476 = vmatprep.subr.mxu0 0.0
        %1477 = vmatpush1.msra.mxu0 0.0
        %1478 = vmatprep.subr.mxu0 0.0
        %1479 = vmatpush1.msra.mxu0 0.0
        %1480 = vmatprep.subr.mxu0 0.0
        %1481 = vmatpush1.msra.mxu0 0.0
        %1482 = vmatprep.subr.mxu0 0.0
        %1483 = vmatpush1.msra.mxu0 0.0
        %1484 = vmatprep.subr.mxu0 0.0
        %1485 = vmatpush1.msra.mxu0 0.0
        %1486 = vmatprep.subr.mxu0 0.0
        %1487 = vmatpush1.msra.mxu0 0.0
        %1488 = vmatprep.subr.mxu0 0.0
        %1489 = vmatpush1.msra.mxu0 0.0
        %1490 = vmatprep.subr.mxu0 0.0
        %1491 = vmatpush1.msra.mxu0 0.0
        %1492 = vmatprep.subr.mxu0 0.0
        %1493 = vmatpush1.msra.mxu0 0.0
        %1494 = vmatprep.subr.mxu0 0.0
        %1495 = vmatpush1.msra.mxu0 0.0
        %1496 = vmatprep.subr.mxu0 0.0
        %1497 = vmatpush1.msra.mxu0 0.0
        %1498 = vmatprep.subr.mxu0 0.0
        %1499 = vmatpush1.msra.mxu0 0.0
        %1500 = vmatprep.subr.mxu0 0.0
        %1501 = vmatpush1.msra.mxu0 0.0
        %1502 = vmatprep.subr.mxu0 0.0
        %1503 = vmatpush1.msra.mxu0 0.0
        %1504 = vmatprep.subr.mxu0 0.0
        %1505 = vmatpush1.msra.mxu0 0.0
        %1506 = vmatprep.subr.mxu0 0.0
        %1507 = vmatpush1.msra.mxu0 0.0
        %1508 = vmatprep.subr.mxu0 0.0
        %1509 = vmatpush1.msra.mxu0 0.0
        %1510 = vmatprep.subr.mxu0 0.0
        %1511 = vmatpush1.msra.mxu0 0.0
        %1512 = vmatprep.subr.mxu0 0.0
        %1513 = vmatpush1.msra.mxu0 0.0
        %1514 = vmatprep.mubr.f32.mxu0 0.0
        %1515 = vmatmul.mubr.f32.gmra.mrb[0].mxu0 %v1448
        %v1516 = vpop.f32.mrb[0].mxu0
        %v1517 = vadd.f32 %v1445, %v1516
        %v1518 = vpop.f32.mrb[0].mxu0
        %1519 = vdwg.mxu0
        %v1520 = vxor.u32 %v1442, 2147483648
        %v1521 = vmul.f32 %v1520, 1.442695
        %v1522 = vpow.pop %v1521
        %v1523 = vadd.f32 %v1522, 1.0
        %v1524 = vrcp.pop %v1523
        %v1525 = vmul.f32 1.0, %v1524
        %v1526 = vmul.f32 %v1525, 2.0
        %v1527 = vsub.f32 %v1526, 1.0
        %v1528 = vmul.f32 %v1525, %v1330
        %1530 = vrot.lane.b32.xlu0 %v1527, 64
        %v1531 = vpop.permute.xlu0 %1530
        %v1533 = vmul.f32 %v1525, %v1531
        %1535 = vrot.lane.b32.xlu0 %v1533, 32
        %v1536 = vpop.permute.xlu0 %1535
        %v1538 = vadd.f32 %v1528, %v1536
        %v1539 = vtanh.pop %v1538
        %1541 = vrot.lane.b32.xlu0 %v1539, 64
        %v1542 = vpop.permute.xlu0 %1541
        %v1544 = vmul.f32 %v1525, %v1542
        %v1545 = vxor.u32 %v1517, 2147483648
        %v1546 = vmul.f32 %v1545, 1.442695
        %v1547 = vpow.pop %v1546
        %v1548 = vadd.f32 %v1547, 1.0
        %v1549 = vrcp.pop %v1548
        %v1550 = vmul.f32 1.0, %v1549
        %v1551 = vmul.f32 %v1550, 2.0
        %v1552 = vsub.f32 %v1551, 1.0
        %v1553 = vmul.f32 %v1550, %v1355
        %1555 = vrot.lane.b32.xlu0 %v1552, 64
        %v1556 = vpop.permute.xlu0 %1555
        %v1558 = vmul.f32 %v1550, %v1556
        %1560 = vrot.lane.b32.xlu0 %v1558, 32
        %v1561 = vpop.permute.xlu0 %1560
        %v1563 = vadd.f32 %v1553, %v1561
        %v1564 = vtanh.pop %v1563
        %1566 = vrot.lane.b32.xlu0 %v1564, 64
        %v1567 = vpop.permute.xlu0 %1566
        %v1569 = vmul.f32 %v1550, %v1567
        %1571 = vrot.lane.b32.xlu0 %v1544, 32
        %v1572 = vpop.permute.xlu0 %1571
        %1574 = vst.msk [vmem:[#allocation2 + $0x6] sm:$0x3] %vm948, %v1572
        %1576 = vrot.lane.b32.xlu0 %v1569, 64
        %v1577 = vpop.permute.xlu0 %1576
        %1579 = vst.msk [vmem:[#allocation2 + $0x8] sm:$0x3] %vm954, %v1577
        %v1580 = vld [vmem:[#allocation3 + $0x8] sm:$0x3]
        %v1581 = vsel %vm738, %v1572, 0
        %1583 = vmatprep.subr.mxu0 0.0
        %1584 = vmatpush1.msra.mxu0 %v723
        %1585 = vmatprep.subr.mxu0 0.0
        %1586 = vmatpush1.msra.mxu0 %v724
        %1587 = vmatprep.subr.mxu0 0.0
        %1588 = vmatpush1.msra.mxu0 %v725
        %1589 = vmatprep.subr.mxu0 0.0
        %1590 = vmatpush1.msra.mxu0 %v726
        %1591 = vmatprep.subr.mxu0 0.0
        %1592 = vmatpush1.msra.mxu0 0.0
        %1593 = vmatprep.subr.mxu0 0.0
        %1594 = vmatpush1.msra.mxu0 0.0
        %1595 = vmatprep.subr.mxu0 0.0
        %1596 = vmatpush1.msra.mxu0 0.0
        %1597 = vmatprep.subr.mxu0 0.0
        %1598 = vmatpush1.msra.mxu0 0.0
        %1599 = vmatprep.subr.mxu0 0.0
        %1600 = vmatpush1.msra.mxu0 0.0
        %1601 = vmatprep.subr.mxu0 0.0
        %1602 = vmatpush1.msra.mxu0 0.0
        %1603 = vmatprep.subr.mxu0 0.0
        %1604 = vmatpush1.msra.mxu0 0.0
        %1605 = vmatprep.subr.mxu0 0.0
        %1606 = vmatpush1.msra.mxu0 0.0
        %1607 = vmatprep.subr.mxu0 0.0
        %1608 = vmatpush1.msra.mxu0 0.0
        %1609 = vmatprep.subr.mxu0 0.0
        %1610 = vmatpush1.msra.mxu0 0.0
        %1611 = vmatprep.subr.mxu0 0.0
        %1612 = vmatpush1.msra.mxu0 0.0
        %1613 = vmatprep.subr.mxu0 0.0
        %1614 = vmatpush1.msra.mxu0 0.0
        %1615 = vmatprep.subr.mxu0 0.0
        %1616 = vmatpush1.msra.mxu0 0.0
        %1617 = vmatprep.subr.mxu0 0.0
        %1618 = vmatpush1.msra.mxu0 0.0
        %1619 = vmatprep.subr.mxu0 0.0
        %1620 = vmatpush1.msra.mxu0 0.0
        %1621 = vmatprep.subr.mxu0 0.0
        %1622 = vmatpush1.msra.mxu0 0.0
        %1623 = vmatprep.subr.mxu0 0.0
        %1624 = vmatpush1.msra.mxu0 0.0
        %1625 = vmatprep.subr.mxu0 0.0
        %1626 = vmatpush1.msra.mxu0 0.0
        %1627 = vmatprep.subr.mxu0 0.0
        %1628 = vmatpush1.msra.mxu0 0.0
        %1629 = vmatprep.subr.mxu0 0.0
        %1630 = vmatpush1.msra.mxu0 0.0
        %1631 = vmatprep.subr.mxu0 0.0
        %1632 = vmatpush1.msra.mxu0 0.0
        %1633 = vmatprep.subr.mxu0 0.0
        %1634 = vmatpush1.msra.mxu0 0.0
        %1635 = vmatprep.subr.mxu0 0.0
        %1636 = vmatpush1.msra.mxu0 0.0
        %1637 = vmatprep.subr.mxu0 0.0
        %1638 = vmatpush1.msra.mxu0 0.0
        %1639 = vmatprep.subr.mxu0 0.0
        %1640 = vmatpush1.msra.mxu0 0.0
        %1641 = vmatprep.subr.mxu0 0.0
        %1642 = vmatpush1.msra.mxu0 0.0
        %1643 = vmatprep.subr.mxu0 0.0
        %1644 = vmatpush1.msra.mxu0 0.0
        %1645 = vmatprep.subr.mxu0 0.0
        %1646 = vmatpush1.msra.mxu0 0.0
        %1647 = vmatprep.mubr.f32.mxu0 0.0
        %1648 = vmatmul.mubr.f32.gmra.mrb[0].mxu0 %v1581
        %v1649 = vpop.f32.mrb[0].mxu0
        %v1650 = vadd.f32 %v1580, %v1649
        %v1651 = vpop.f32.mrb[0].mxu0
        %1652 = vdwg.mxu0
        %v1653 = vld [vmem:[#allocation4 + $0x6] sm:$0x3]
        %1654 = vrot.lane.b32.xlu0 %v1569, 32
        %v1655 = vpop.permute.xlu0 %1654
        %v1656 = vsel %vm738, %v1655, 0
        %1658 = vmatprep.subr.mxu0 0.0
        %1659 = vmatpush1.msra.mxu0 %v727
        %1660 = vmatprep.subr.mxu0 0.0
        %1661 = vmatpush1.msra.mxu0 %v728
        %1662 = vmatprep.subr.mxu0 0.0
        %1663 = vmatpush1.msra.mxu0 %v729
        %1664 = vmatprep.subr.mxu0 0.0
        %1665 = vmatpush1.msra.mxu0 %v730
        %1666 = vmatprep.subr.mxu0 0.0
        %1667 = vmatpush1.msra.mxu0 0.0
        %1668 = vmatprep.subr.mxu0 0.0
        %1669 = vmatpush1.msra.mxu0 0.0
        %1670 = vmatprep.subr.mxu0 0.0
        %1671 = vmatpush1.msra.mxu0 0.0
        %1672 = vmatprep.subr.mxu0 0.0
        %1673 = vmatpush1.msra.mxu0 0.0
        %1674 = vmatprep.subr.mxu0 0.0
        %1675 = vmatpush1.msra.mxu0 0.0
        %1676 = vmatprep.subr.mxu0 0.0
        %1677 = vmatpush1.msra.mxu0 0.0
        %1678 = vmatprep.subr.mxu0 0.0
        %1679 = vmatpush1.msra.mxu0 0.0
        %1680 = vmatprep.subr.mxu0 0.0
        %1681 = vmatpush1.msra.mxu0 0.0
        %1682 = vmatprep.subr.mxu0 0.0
        %1683 = vmatpush1.msra.mxu0 0.0
        %1684 = vmatprep.subr.mxu0 0.0
        %1685 = vmatpush1.msra.mxu0 0.0
        %1686 = vmatprep.subr.mxu0 0.0
        %1687 = vmatpush1.msra.mxu0 0.0
        %1688 = vmatprep.subr.mxu0 0.0
        %1689 = vmatpush1.msra.mxu0 0.0
        %1690 = vmatprep.subr.mxu0 0.0
        %1691 = vmatpush1.msra.mxu0 0.0
        %1692 = vmatprep.subr.mxu0 0.0
        %1693 = vmatpush1.msra.mxu0 0.0
        %1694 = vmatprep.subr.mxu0 0.0
        %1695 = vmatpush1.msra.mxu0 0.0
        %1696 = vmatprep.subr.mxu0 0.0
        %1697 = vmatpush1.msra.mxu0 0.0
        %1698 = vmatprep.subr.mxu0 0.0
        %1699 = vmatpush1.msra.mxu0 0.0
        %1700 = vmatprep.subr.mxu0 0.0
        %1701 = vmatpush1.msra.mxu0 0.0
        %1702 = vmatprep.subr.mxu0 0.0
        %1703 = vmatpush1.msra.mxu0 0.0
        %1704 = vmatprep.subr.mxu0 0.0
        %1705 = vmatpush1.msra.mxu0 0.0
        %1706 = vmatprep.subr.mxu0 0.0
        %1707 = vmatpush1.msra.mxu0 0.0
        %1708 = vmatprep.subr.mxu0 0.0
        %1709 = vmatpush1.msra.mxu0 0.0
        %1710 = vmatprep.subr.mxu0 0.0
        %1711 = vmatpush1.msra.mxu0 0.0
        %1712 = vmatprep.subr.mxu0 0.0
        %1713 = vmatpush1.msra.mxu0 0.0
        %1714 = vmatprep.subr.mxu0 0.0
        %1715 = vmatpush1.msra.mxu0 0.0
        %1716 = vmatprep.subr.mxu0 0.0
        %1717 = vmatpush1.msra.mxu0 0.0
        %1718 = vmatprep.subr.mxu0 0.0
        %1719 = vmatpush1.msra.mxu0 0.0
        %1720 = vmatprep.subr.mxu0 0.0
        %1721 = vmatpush1.msra.mxu0 0.0
        %1722 = vmatprep.mubr.f32.mxu0 0.0
        %1723 = vmatmul.mubr.f32.gmra.mrb[0].mxu0 %v1656
        %v1724 = vpop.f32.mrb[0].mxu0
        %v1725 = vadd.f32 %v1653, %v1724
        %v1726 = vpop.f32.mrb[0].mxu0
        %1727 = vdwg.mxu0
        %v1728 = vxor.u32 %v1650, 2147483648
        %v1729 = vmul.f32 %v1728, 1.442695
        %v1730 = vpow.pop %v1729
        %v1731 = vadd.f32 %v1730, 1.0
        %v1732 = vrcp.pop %v1731
        %v1733 = vmul.f32 1.0, %v1732
        %v1734 = vmul.f32 %v1733, 2.0
        %v1735 = vsub.f32 %v1734, 1.0
        %v1736 = vmul.f32 %v1733, %v1538
        %1738 = vrot.lane.b32.xlu0 %v1735, 64
        %v1739 = vpop.permute.xlu0 %1738
        %v1741 = vmul.f32 %v1733, %v1739
        %1743 = vrot.lane.b32.xlu0 %v1741, 32
        %v1744 = vpop.permute.xlu0 %1743
        %v1746 = vadd.f32 %v1736, %v1744
        %v1747 = vtanh.pop %v1746
        %1749 = vrot.lane.b32.xlu0 %v1747, 64
        %v1750 = vpop.permute.xlu0 %1749
        %v1752 = vmul.f32 %v1733, %v1750
        %v1753 = vxor.u32 %v1725, 2147483648
        %v1754 = vmul.f32 %v1753, 1.442695
        %v1755 = vpow.pop %v1754
        %v1756 = vadd.f32 %v1755, 1.0
        %v1757 = vrcp.pop %v1756
        %v1758 = vmul.f32 1.0, %v1757
        %v1759 = vmul.f32 %v1758, 2.0
        %v1760 = vsub.f32 %v1759, 1.0
        %v1761 = vmul.f32 %v1758, %v1563
        %1763 = vrot.lane.b32.xlu0 %v1760, 64
        %v1764 = vpop.permute.xlu0 %1763
        %v1766 = vmul.f32 %v1758, %v1764
        %1768 = vrot.lane.b32.xlu0 %v1766, 32
        %v1769 = vpop.permute.xlu0 %1768
        %v1771 = vadd.f32 %v1761, %v1769
        %v1772 = vtanh.pop %v1771
        %1774 = vrot.lane.b32.xlu0 %v1772, 64
        %v1775 = vpop.permute.xlu0 %1774
        %v1777 = vmul.f32 %v1758, %v1775
        %1779 = vrot.lane.b32.xlu0 %v1752, 32
        %v1780 = vpop.permute.xlu0 %1779
        %1782 = vst.msk [vmem:[#allocation2 + $0x8] sm:$0x3] %vm948, %v1780
        %1784 = vrot.lane.b32.xlu0 %v1777, 64
        %v1785 = vpop.permute.xlu0 %1784
        %1787 = vst.msk [vmem:[#allocation2 + $0x6] sm:$0x3] %vm954, %v1785
        %v1788 = vld [vmem:[#allocation3 + $0xa] sm:$0x3]
        %v1789 = vsel %vm738, %v1780, 0
        %1791 = vmatprep.subr.mxu0 0.0
        %1792 = vmatpush1.msra.mxu0 %v723
        %1793 = vmatprep.subr.mxu0 0.0
        %1794 = vmatpush1.msra.mxu0 %v724
        %1795 = vmatprep.subr.mxu0 0.0
        %1796 = vmatpush1.msra.mxu0 %v725
        %1797 = vmatprep.subr.mxu0 0.0
        %1798 = vmatpush1.msra.mxu0 %v726
        %1799 = vmatprep.subr.mxu0 0.0
        %1800 = vmatpush1.msra.mxu0 0.0
        %1801 = vmatprep.subr.mxu0 0.0
        %1802 = vmatpush1.msra.mxu0 0.0
        %1803 = vmatprep.subr.mxu0 0.0
        %1804 = vmatpush1.msra.mxu0 0.0
        %1805 = vmatprep.subr.mxu0 0.0
        %1806 = vmatpush1.msra.mxu0 0.0
        %1807 = vmatprep.subr.mxu0 0.0
        %1808 = vmatpush1.msra.mxu0 0.0
        %1809 = vmatprep.subr.mxu0 0.0
        %1810 = vmatpush1.msra.mxu0 0.0
        %1811 = vmatprep.subr.mxu0 0.0
        %1812 = vmatpush1.msra.mxu0 0.0
        %1813 = vmatprep.subr.mxu0 0.0
        %1814 = vmatpush1.msra.mxu0 0.0
        %1815 = vmatprep.subr.mxu0 0.0
        %1816 = vmatpush1.msra.mxu0 0.0
        %1817 = vmatprep.subr.mxu0 0.0
        %1818 = vmatpush1.msra.mxu0 0.0
        %1819 = vmatprep.subr.mxu0 0.0
        %1820 = vmatpush1.msra.mxu0 0.0
        %1821 = vmatprep.subr.mxu0 0.0
        %1822 = vmatpush1.msra.mxu0 0.0
        %1823 = vmatprep.subr.mxu0 0.0
        %1824 = vmatpush1.msra.mxu0 0.0
        %1825 = vmatprep.subr.mxu0 0.0
        %1826 = vmatpush1.msra.mxu0 0.0
        %1827 = vmatprep.subr.mxu0 0.0
        %1828 = vmatpush1.msra.mxu0 0.0
        %1829 = vmatprep.subr.mxu0 0.0
        %1830 = vmatpush1.msra.mxu0 0.0
        %1831 = vmatprep.subr.mxu0 0.0
        %1832 = vmatpush1.msra.mxu0 0.0
        %1833 = vmatprep.subr.mxu0 0.0
        %1834 = vmatpush1.msra.mxu0 0.0
        %1835 = vmatprep.subr.mxu0 0.0
        %1836 = vmatpush1.msra.mxu0 0.0
        %1837 = vmatprep.subr.mxu0 0.0
        %1838 = vmatpush1.msra.mxu0 0.0
        %1839 = vmatprep.subr.mxu0 0.0
        %1840 = vmatpush1.msra.mxu0 0.0
        %1841 = vmatprep.subr.mxu0 0.0
        %1842 = vmatpush1.msra.mxu0 0.0
        %1843 = vmatprep.subr.mxu0 0.0
        %1844 = vmatpush1.msra.mxu0 0.0
        %1845 = vmatprep.subr.mxu0 0.0
        %1846 = vmatpush1.msra.mxu0 0.0
        %1847 = vmatprep.subr.mxu0 0.0
        %1848 = vmatpush1.msra.mxu0 0.0
        %1849 = vmatprep.subr.mxu0 0.0
        %1850 = vmatpush1.msra.mxu0 0.0
        %1851 = vmatprep.subr.mxu0 0.0
        %1852 = vmatpush1.msra.mxu0 0.0
        %1853 = vmatprep.subr.mxu0 0.0
        %1854 = vmatpush1.msra.mxu0 0.0
        %1855 = vmatprep.mubr.f32.mxu0 0.0
        %1856 = vmatmul.mubr.f32.gmra.mrb[0].mxu0 %v1789
        %v1857 = vpop.f32.mrb[0].mxu0
        %v1858 = vadd.f32 %v1788, %v1857
        %v1859 = vpop.f32.mrb[0].mxu0
        %1860 = vdwg.mxu0
        %v1861 = vld [vmem:[#allocation4 + $0x4] sm:$0x3]
        %1862 = vrot.lane.b32.xlu0 %v1777, 32
        %v1863 = vpop.permute.xlu0 %1862
        %v1864 = vsel %vm738, %v1863, 0
        %1866 = vmatprep.subr.mxu0 0.0
        %1867 = vmatpush1.msra.mxu0 %v727
        %1868 = vmatprep.subr.mxu0 0.0
        %1869 = vmatpush1.msra.mxu0 %v728
        %1870 = vmatprep.subr.mxu0 0.0
        %1871 = vmatpush1.msra.mxu0 %v729
        %1872 = vmatprep.subr.mxu0 0.0
        %1873 = vmatpush1.msra.mxu0 %v730
        %1874 = vmatprep.subr.mxu0 0.0
        %1875 = vmatpush1.msra.mxu0 0.0
        %1876 = vmatprep.subr.mxu0 0.0
        %1877 = vmatpush1.msra.mxu0 0.0
        %1878 = vmatprep.subr.mxu0 0.0
        %1879 = vmatpush1.msra.mxu0 0.0
        %1880 = vmatprep.subr.mxu0 0.0
        %1881 = vmatpush1.msra.mxu0 0.0
        %1882 = vmatprep.subr.mxu0 0.0
        %1883 = vmatpush1.msra.mxu0 0.0
        %1884 = vmatprep.subr.mxu0 0.0
        %1885 = vmatpush1.msra.mxu0 0.0
        %1886 = vmatprep.subr.mxu0 0.0
        %1887 = vmatpush1.msra.mxu0 0.0
        %1888 = vmatprep.subr.mxu0 0.0
        %1889 = vmatpush1.msra.mxu0 0.0
        %1890 = vmatprep.subr.mxu0 0.0
        %1891 = vmatpush1.msra.mxu0 0.0
        %1892 = vmatprep.subr.mxu0 0.0
        %1893 = vmatpush1.msra.mxu0 0.0
        %1894 = vmatprep.subr.mxu0 0.0
        %1895 = vmatpush1.msra.mxu0 0.0
        %1896 = vmatprep.subr.mxu0 0.0
        %1897 = vmatpush1.msra.mxu0 0.0
        %1898 = vmatprep.subr.mxu0 0.0
        %1899 = vmatpush1.msra.mxu0 0.0
        %1900 = vmatprep.subr.mxu0 0.0
        %1901 = vmatpush1.msra.mxu0 0.0
        %1902 = vmatprep.subr.mxu0 0.0
        %1903 = vmatpush1.msra.mxu0 0.0
        %1904 = vmatprep.subr.mxu0 0.0
        %1905 = vmatpush1.msra.mxu0 0.0
        %1906 = vmatprep.subr.mxu0 0.0
        %1907 = vmatpush1.msra.mxu0 0.0
        %1908 = vmatprep.subr.mxu0 0.0
        %1909 = vmatpush1.msra.mxu0 0.0
        %1910 = vmatprep.subr.mxu0 0.0
        %1911 = vmatpush1.msra.mxu0 0.0
        %1912 = vmatprep.subr.mxu0 0.0
        %1913 = vmatpush1.msra.mxu0 0.0
        %1914 = vmatprep.subr.mxu0 0.0
        %1915 = vmatpush1.msra.mxu0 0.0
        %1916 = vmatprep.subr.mxu0 0.0
        %1917 = vmatpush1.msra.mxu0 0.0
        %1918 = vmatprep.subr.mxu0 0.0
        %1919 = vmatpush1.msra.mxu0 0.0
        %1920 = vmatprep.subr.mxu0 0.0
        %1921 = vmatpush1.msra.mxu0 0.0
        %1922 = vmatprep.subr.mxu0 0.0
        %1923 = vmatpush1.msra.mxu0 0.0
        %1924 = vmatprep.subr.mxu0 0.0
        %1925 = vmatpush1.msra.mxu0 0.0
        %1926 = vmatprep.subr.mxu0 0.0
        %1927 = vmatpush1.msra.mxu0 0.0
        %1928 = vmatprep.subr.mxu0 0.0
        %1929 = vmatpush1.msra.mxu0 0.0
        %1930 = vmatprep.mubr.f32.mxu0 0.0
        %1931 = vmatmul.mubr.f32.gmra.mrb[0].mxu0 %v1864
        %v1932 = vpop.f32.mrb[0].mxu0
        %v1933 = vadd.f32 %v1861, %v1932
        %v1934 = vpop.f32.mrb[0].mxu0
        %1935 = vdwg.mxu0
        %v1936 = vxor.u32 %v1858, 2147483648
        %v1937 = vmul.f32 %v1936, 1.442695
        %v1938 = vpow.pop %v1937
        %v1939 = vadd.f32 %v1938, 1.0
        %v1940 = vrcp.pop %v1939
        %v1941 = vmul.f32 1.0, %v1940
        %v1942 = vmul.f32 %v1941, 2.0
        %v1943 = vsub.f32 %v1942, 1.0
        %v1944 = vmul.f32 %v1941, %v1746
        %1946 = vrot.lane.b32.xlu0 %v1943, 64
        %v1947 = vpop.permute.xlu0 %1946
        %v1949 = vmul.f32 %v1941, %v1947
        %1951 = vrot.lane.b32.xlu0 %v1949, 32
        %v1952 = vpop.permute.xlu0 %1951
        %v1954 = vadd.f32 %v1944, %v1952
        %v1955 = vtanh.pop %v1954
        %1957 = vrot.lane.b32.xlu0 %v1955, 64
        %v1958 = vpop.permute.xlu0 %1957
        %v1960 = vmul.f32 %v1941, %v1958
        %v1961 = vxor.u32 %v1933, 2147483648
        %v1962 = vmul.f32 %v1961, 1.442695
        %v1963 = vpow.pop %v1962
        %v1964 = vadd.f32 %v1963, 1.0
        %v1965 = vrcp.pop %v1964
        %v1966 = vmul.f32 1.0, %v1965
        %v1967 = vmul.f32 %v1966, 2.0
        %v1968 = vsub.f32 %v1967, 1.0
        %v1969 = vmul.f32 %v1966, %v1771
        %1971 = vrot.lane.b32.xlu0 %v1968, 64
        %v1972 = vpop.permute.xlu0 %1971
        %v1974 = vmul.f32 %v1966, %v1972
        %1976 = vrot.lane.b32.xlu0 %v1974, 32
        %v1977 = vpop.permute.xlu0 %1976
        %v1979 = vadd.f32 %v1969, %v1977
        %v1980 = vtanh.pop %v1979
        %1982 = vrot.lane.b32.xlu0 %v1980, 64
        %v1983 = vpop.permute.xlu0 %1982
        %v1985 = vmul.f32 %v1966, %v1983
        %1987 = vrot.lane.b32.xlu0 %v1960, 32
        %v1988 = vpop.permute.xlu0 %1987
        %1990 = vst.msk [vmem:[#allocation2 + $0xa] sm:$0x3] %vm948, %v1988
        %1992 = vrot.lane.b32.xlu0 %v1985, 64
        %v1993 = vpop.permute.xlu0 %1992
        %1995 = vst.msk [vmem:[#allocation2 + $0x4] sm:$0x3] %vm954, %v1993
        %v1996 = vld [vmem:[#allocation3 + $0xc] sm:$0x3]
        %v1997 = vsel %vm738, %v1988, 0
        %1999 = vmatprep.subr.mxu0 0.0
        %2000 = vmatpush1.msra.mxu0 %v723
        %2001 = vmatprep.subr.mxu0 0.0
        %2002 = vmatpush1.msra.mxu0 %v724
        %2003 = vmatprep.subr.mxu0 0.0
        %2004 = vmatpush1.msra.mxu0 %v725
        %2005 = vmatprep.subr.mxu0 0.0
        %2006 = vmatpush1.msra.mxu0 %v726
        %2007 = vmatprep.subr.mxu0 0.0
        %2008 = vmatpush1.msra.mxu0 0.0
        %2009 = vmatprep.subr.mxu0 0.0
        %2010 = vmatpush1.msra.mxu0 0.0
        %2011 = vmatprep.subr.mxu0 0.0
        %2012 = vmatpush1.msra.mxu0 0.0
        %2013 = vmatprep.subr.mxu0 0.0
        %2014 = vmatpush1.msra.mxu0 0.0
        %2015 = vmatprep.subr.mxu0 0.0
        %2016 = vmatpush1.msra.mxu0 0.0
        %2017 = vmatprep.subr.mxu0 0.0
        %2018 = vmatpush1.msra.mxu0 0.0
        %2019 = vmatprep.subr.mxu0 0.0
        %2020 = vmatpush1.msra.mxu0 0.0
        %2021 = vmatprep.subr.mxu0 0.0
        %2022 = vmatpush1.msra.mxu0 0.0
        %2023 = vmatprep.subr.mxu0 0.0
        %2024 = vmatpush1.msra.mxu0 0.0
        %2025 = vmatprep.subr.mxu0 0.0
        %2026 = vmatpush1.msra.mxu0 0.0
        %2027 = vmatprep.subr.mxu0 0.0
        %2028 = vmatpush1.msra.mxu0 0.0
        %2029 = vmatprep.subr.mxu0 0.0
        %2030 = vmatpush1.msra.mxu0 0.0
        %2031 = vmatprep.subr.mxu0 0.0
        %2032 = vmatpush1.msra.mxu0 0.0
        %2033 = vmatprep.subr.mxu0 0.0
        %2034 = vmatpush1.msra.mxu0 0.0
        %2035 = vmatprep.subr.mxu0 0.0
        %2036 = vmatpush1.msra.mxu0 0.0
        %2037 = vmatprep.subr.mxu0 0.0
        %2038 = vmatpush1.msra.mxu0 0.0
        %2039 = vmatprep.subr.mxu0 0.0
        %2040 = vmatpush1.msra.mxu0 0.0
        %2041 = vmatprep.subr.mxu0 0.0
        %2042 = vmatpush1.msra.mxu0 0.0
        %2043 = vmatprep.subr.mxu0 0.0
        %2044 = vmatpush1.msra.mxu0 0.0
        %2045 = vmatprep.subr.mxu0 0.0
        %2046 = vmatpush1.msra.mxu0 0.0
        %2047 = vmatprep.subr.mxu0 0.0
        %2048 = vmatpush1.msra.mxu0 0.0
        %2049 = vmatprep.subr.mxu0 0.0
        %2050 = vmatpush1.msra.mxu0 0.0
        %2051 = vmatprep.subr.mxu0 0.0
        %2052 = vmatpush1.msra.mxu0 0.0
        %2053 = vmatprep.subr.mxu0 0.0
        %2054 = vmatpush1.msra.mxu0 0.0
        %2055 = vmatprep.subr.mxu0 0.0
        %2056 = vmatpush1.msra.mxu0 0.0
        %2057 = vmatprep.subr.mxu0 0.0
        %2058 = vmatpush1.msra.mxu0 0.0
        %2059 = vmatprep.subr.mxu0 0.0
        %2060 = vmatpush1.msra.mxu0 0.0
        %2061 = vmatprep.subr.mxu0 0.0
        %2062 = vmatpush1.msra.mxu0 0.0
        %2063 = vmatprep.mubr.f32.mxu0 0.0
        %2064 = vmatmul.mubr.f32.gmra.mrb[0].mxu0 %v1997
        %v2065 = vpop.f32.mrb[0].mxu0
        %v2066 = vadd.f32 %v1996, %v2065
        %v2067 = vpop.f32.mrb[0].mxu0
        %2068 = vdwg.mxu0
        %v2069 = vld [vmem:[#allocation4 + $0x2] sm:$0x3]
        %2070 = vrot.lane.b32.xlu0 %v1985, 32
        %v2071 = vpop.permute.xlu0 %2070
        %v2072 = vsel %vm738, %v2071, 0
        %2074 = vmatprep.subr.mxu0 0.0
        %2075 = vmatpush1.msra.mxu0 %v727
        %2076 = vmatprep.subr.mxu0 0.0
        %2077 = vmatpush1.msra.mxu0 %v728
        %2078 = vmatprep.subr.mxu0 0.0
        %2079 = vmatpush1.msra.mxu0 %v729
        %2080 = vmatprep.subr.mxu0 0.0
        %2081 = vmatpush1.msra.mxu0 %v730
        %2082 = vmatprep.subr.mxu0 0.0
        %2083 = vmatpush1.msra.mxu0 0.0
        %2084 = vmatprep.subr.mxu0 0.0
        %2085 = vmatpush1.msra.mxu0 0.0
        %2086 = vmatprep.subr.mxu0 0.0
        %2087 = vmatpush1.msra.mxu0 0.0
        %2088 = vmatprep.subr.mxu0 0.0
        %2089 = vmatpush1.msra.mxu0 0.0
        %2090 = vmatprep.subr.mxu0 0.0
        %2091 = vmatpush1.msra.mxu0 0.0
        %2092 = vmatprep.subr.mxu0 0.0
        %2093 = vmatpush1.msra.mxu0 0.0
        %2094 = vmatprep.subr.mxu0 0.0
        %2095 = vmatpush1.msra.mxu0 0.0
        %2096 = vmatprep.subr.mxu0 0.0
        %2097 = vmatpush1.msra.mxu0 0.0
        %2098 = vmatprep.subr.mxu0 0.0
        %2099 = vmatpush1.msra.mxu0 0.0
        %2100 = vmatprep.subr.mxu0 0.0
        %2101 = vmatpush1.msra.mxu0 0.0
        %2102 = vmatprep.subr.mxu0 0.0
        %2103 = vmatpush1.msra.mxu0 0.0
        %2104 = vmatprep.subr.mxu0 0.0
        %2105 = vmatpush1.msra.mxu0 0.0
        %2106 = vmatprep.subr.mxu0 0.0
        %2107 = vmatpush1.msra.mxu0 0.0
        %2108 = vmatprep.subr.mxu0 0.0
        %2109 = vmatpush1.msra.mxu0 0.0
        %2110 = vmatprep.subr.mxu0 0.0
        %2111 = vmatpush1.msra.mxu0 0.0
        %2112 = vmatprep.subr.mxu0 0.0
        %2113 = vmatpush1.msra.mxu0 0.0
        %2114 = vmatprep.subr.mxu0 0.0
        %2115 = vmatpush1.msra.mxu0 0.0
        %2116 = vmatprep.subr.mxu0 0.0
        %2117 = vmatpush1.msra.mxu0 0.0
        %2118 = vmatprep.subr.mxu0 0.0
        %2119 = vmatpush1.msra.mxu0 0.0
        %2120 = vmatprep.subr.mxu0 0.0
        %2121 = vmatpush1.msra.mxu0 0.0
        %2122 = vmatprep.subr.mxu0 0.0
        %2123 = vmatpush1.msra.mxu0 0.0
        %2124 = vmatprep.subr.mxu0 0.0
        %2125 = vmatpush1.msra.mxu0 0.0
        %2126 = vmatprep.subr.mxu0 0.0
        %2127 = vmatpush1.msra.mxu0 0.0
        %2128 = vmatprep.subr.mxu0 0.0
        %2129 = vmatpush1.msra.mxu0 0.0
        %2130 = vmatprep.subr.mxu0 0.0
        %2131 = vmatpush1.msra.mxu0 0.0
        %2132 = vmatprep.subr.mxu0 0.0
        %2133 = vmatpush1.msra.mxu0 0.0
        %2134 = vmatprep.subr.mxu0 0.0
        %2135 = vmatpush1.msra.mxu0 0.0
        %2136 = vmatprep.subr.mxu0 0.0
        %2137 = vmatpush1.msra.mxu0 0.0
        %2138 = vmatprep.mubr.f32.mxu0 0.0
        %2139 = vmatmul.mubr.f32.gmra.mrb[0].mxu0 %v2072
        %v2140 = vpop.f32.mrb[0].mxu0
        %v2141 = vadd.f32 %v2069, %v2140
        %v2142 = vpop.f32.mrb[0].mxu0
        %2143 = vdwg.mxu0
        %v2144 = vxor.u32 %v2066, 2147483648
        %v2145 = vmul.f32 %v2144, 1.442695
        %v2146 = vpow.pop %v2145
        %v2147 = vadd.f32 %v2146, 1.0
        %v2148 = vrcp.pop %v2147
        %v2149 = vmul.f32 1.0, %v2148
        %v2150 = vmul.f32 %v2149, 2.0
        %v2151 = vsub.f32 %v2150, 1.0
        %v2152 = vmul.f32 %v2149, %v1954
        %2154 = vrot.lane.b32.xlu0 %v2151, 64
        %v2155 = vpop.permute.xlu0 %2154
        %v2157 = vmul.f32 %v2149, %v2155
        %2159 = vrot.lane.b32.xlu0 %v2157, 32
        %v2160 = vpop.permute.xlu0 %2159
        %v2162 = vadd.f32 %v2152, %v2160
        %v2163 = vtanh.pop %v2162
        %2165 = vrot.lane.b32.xlu0 %v2163, 64
        %v2166 = vpop.permute.xlu0 %2165
        %v2168 = vmul.f32 %v2149, %v2166
        %v2169 = vxor.u32 %v2141, 2147483648
        %v2170 = vmul.f32 %v2169, 1.442695
        %v2171 = vpow.pop %v2170
        %v2172 = vadd.f32 %v2171, 1.0
        %v2173 = vrcp.pop %v2172
        %v2174 = vmul.f32 1.0, %v2173
        %v2175 = vmul.f32 %v2174, 2.0
        %v2176 = vsub.f32 %v2175, 1.0
        %v2177 = vmul.f32 %v2174, %v1979
        %2179 = vrot.lane.b32.xlu0 %v2176, 64
        %v2180 = vpop.permute.xlu0 %2179
        %v2182 = vmul.f32 %v2174, %v2180
        %2184 = vrot.lane.b32.xlu0 %v2182, 32
        %v2185 = vpop.permute.xlu0 %2184
        %v2187 = vadd.f32 %v2177, %v2185
        %v2188 = vtanh.pop %v2187
        %2190 = vrot.lane.b32.xlu0 %v2188, 64
        %v2191 = vpop.permute.xlu0 %2190
        %v2193 = vmul.f32 %v2174, %v2191
        %2195 = vrot.lane.b32.xlu0 %v2168, 32
        %v2196 = vpop.permute.xlu0 %2195
        %2198 = vst.msk [vmem:[#allocation2 + $0xc] sm:$0x3] %vm948, %v2196
        %2200 = vrot.lane.b32.xlu0 %v2193, 64
        %v2201 = vpop.permute.xlu0 %2200
        %2203 = vst.msk [vmem:[#allocation2 + $0x2] sm:$0x3] %vm954, %v2201
        %v2204 = vld [vmem:[#allocation3 + $0xe] sm:$0x3]
        %v2205 = vsel %vm738, %v2196, 0
        %2207 = vmatprep.subr.mxu0 0.0
        %2208 = vmatpush1.msra.mxu0 %v723
        %2209 = vmatprep.subr.mxu0 0.0
        %2210 = vmatpush1.msra.mxu0 %v724
        %2211 = vmatprep.subr.mxu0 0.0
        %2212 = vmatpush1.msra.mxu0 %v725
        %2213 = vmatprep.subr.mxu0 0.0
        %2214 = vmatpush1.msra.mxu0 %v726
        %2215 = vmatprep.subr.mxu0 0.0
        %2216 = vmatpush1.msra.mxu0 0.0
        %2217 = vmatprep.subr.mxu0 0.0
        %2218 = vmatpush1.msra.mxu0 0.0
        %2219 = vmatprep.subr.mxu0 0.0
        %2220 = vmatpush1.msra.mxu0 0.0
        %2221 = vmatprep.subr.mxu0 0.0
        %2222 = vmatpush1.msra.mxu0 0.0
        %2223 = vmatprep.subr.mxu0 0.0
        %2224 = vmatpush1.msra.mxu0 0.0
        %2225 = vmatprep.subr.mxu0 0.0
        %2226 = vmatpush1.msra.mxu0 0.0
        %2227 = vmatprep.subr.mxu0 0.0
        %2228 = vmatpush1.msra.mxu0 0.0
        %2229 = vmatprep.subr.mxu0 0.0
        %2230 = vmatpush1.msra.mxu0 0.0
        %2231 = vmatprep.subr.mxu0 0.0
        %2232 = vmatpush1.msra.mxu0 0.0
        %2233 = vmatprep.subr.mxu0 0.0
        %2234 = vmatpush1.msra.mxu0 0.0
        %2235 = vmatprep.subr.mxu0 0.0
        %2236 = vmatpush1.msra.mxu0 0.0
        %2237 = vmatprep.subr.mxu0 0.0
        %2238 = vmatpush1.msra.mxu0 0.0
        %2239 = vmatprep.subr.mxu0 0.0
        %2240 = vmatpush1.msra.mxu0 0.0
        %2241 = vmatprep.subr.mxu0 0.0
        %2242 = vmatpush1.msra.mxu0 0.0
        %2243 = vmatprep.subr.mxu0 0.0
        %2244 = vmatpush1.msra.mxu0 0.0
        %2245 = vmatprep.subr.mxu0 0.0
        %2246 = vmatpush1.msra.mxu0 0.0
        %2247 = vmatprep.subr.mxu0 0.0
        %2248 = vmatpush1.msra.mxu0 0.0
        %2249 = vmatprep.subr.mxu0 0.0
        %2250 = vmatpush1.msra.mxu0 0.0
        %2251 = vmatprep.subr.mxu0 0.0
        %2252 = vmatpush1.msra.mxu0 0.0
        %2253 = vmatprep.subr.mxu0 0.0
        %2254 = vmatpush1.msra.mxu0 0.0
        %2255 = vmatprep.subr.mxu0 0.0
        %2256 = vmatpush1.msra.mxu0 0.0
        %2257 = vmatprep.subr.mxu0 0.0
        %2258 = vmatpush1.msra.mxu0 0.0
        %2259 = vmatprep.subr.mxu0 0.0
        %2260 = vmatpush1.msra.mxu0 0.0
        %2261 = vmatprep.subr.mxu0 0.0
        %2262 = vmatpush1.msra.mxu0 0.0
        %2263 = vmatprep.subr.mxu0 0.0
        %2264 = vmatpush1.msra.mxu0 0.0
        %2265 = vmatprep.subr.mxu0 0.0
        %2266 = vmatpush1.msra.mxu0 0.0
        %2267 = vmatprep.subr.mxu0 0.0
        %2268 = vmatpush1.msra.mxu0 0.0
        %2269 = vmatprep.subr.mxu0 0.0
        %2270 = vmatpush1.msra.mxu0 0.0
        %2271 = vmatprep.mubr.f32.mxu0 0.0
        %2272 = vmatmul.mubr.f32.gmra.mrb[0].mxu0 %v2205
        %v2273 = vpop.f32.mrb[0].mxu0
        %v2274 = vadd.f32 %v2204, %v2273
        %v2275 = vpop.f32.mrb[0].mxu0
        %2276 = vdwg.mxu0
        %v2277 = vld [vmem:[#allocation4] sm:$0x3]
        %2278 = vrot.lane.b32.xlu0 %v2193, 32
        %v2279 = vpop.permute.xlu0 %2278
        %v2280 = vsel %vm738, %v2279, 0
        %2282 = vmatprep.subr.mxu0 0.0
        %2283 = vmatpush1.msra.mxu0 %v727
        %2284 = vmatprep.subr.mxu0 0.0
        %2285 = vmatpush1.msra.mxu0 %v728
        %2286 = vmatprep.subr.mxu0 0.0
        %2287 = vmatpush1.msra.mxu0 %v729
        %2288 = vmatprep.subr.mxu0 0.0
        %2289 = vmatpush1.msra.mxu0 %v730
        %2290 = vmatprep.subr.mxu0 0.0
        %2291 = vmatpush1.msra.mxu0 0.0
        %2292 = vmatprep.subr.mxu0 0.0
        %2293 = vmatpush1.msra.mxu0 0.0
        %2294 = vmatprep.subr.mxu0 0.0
        %2295 = vmatpush1.msra.mxu0 0.0
        %2296 = vmatprep.subr.mxu0 0.0
        %2297 = vmatpush1.msra.mxu0 0.0
        %2298 = vmatprep.subr.mxu0 0.0
        %2299 = vmatpush1.msra.mxu0 0.0
        %2300 = vmatprep.subr.mxu0 0.0
        %2301 = vmatpush1.msra.mxu0 0.0
        %2302 = vmatprep.subr.mxu0 0.0
        %2303 = vmatpush1.msra.mxu0 0.0
        %2304 = vmatprep.subr.mxu0 0.0
        %2305 = vmatpush1.msra.mxu0 0.0
        %2306 = vmatprep.subr.mxu0 0.0
        %2307 = vmatpush1.msra.mxu0 0.0
        %2308 = vmatprep.subr.mxu0 0.0
        %2309 = vmatpush1.msra.mxu0 0.0
        %2310 = vmatprep.subr.mxu0 0.0
        %2311 = vmatpush1.msra.mxu0 0.0
        %2312 = vmatprep.subr.mxu0 0.0
        %2313 = vmatpush1.msra.mxu0 0.0
        %2314 = vmatprep.subr.mxu0 0.0
        %2315 = vmatpush1.msra.mxu0 0.0
        %2316 = vmatprep.subr.mxu0 0.0
        %2317 = vmatpush1.msra.mxu0 0.0
        %2318 = vmatprep.subr.mxu0 0.0
        %2319 = vmatpush1.msra.mxu0 0.0
        %2320 = vmatprep.subr.mxu0 0.0
        %2321 = vmatpush1.msra.mxu0 0.0
        %2322 = vmatprep.subr.mxu0 0.0
        %2323 = vmatpush1.msra.mxu0 0.0
        %2324 = vmatprep.subr.mxu0 0.0
        %2325 = vmatpush1.msra.mxu0 0.0
        %2326 = vmatprep.subr.mxu0 0.0
        %2327 = vmatpush1.msra.mxu0 0.0
        %2328 = vmatprep.subr.mxu0 0.0
        %2329 = vmatpush1.msra.mxu0 0.0
        %2330 = vmatprep.subr.mxu0 0.0
        %2331 = vmatpush1.msra.mxu0 0.0
        %2332 = vmatprep.subr.mxu0 0.0
        %2333 = vmatpush1.msra.mxu0 0.0
        %2334 = vmatprep.subr.mxu0 0.0
        %2335 = vmatpush1.msra.mxu0 0.0
        %2336 = vmatprep.subr.mxu0 0.0
        %2337 = vmatpush1.msra.mxu0 0.0
        %2338 = vmatprep.subr.mxu0 0.0
        %2339 = vmatpush1.msra.mxu0 0.0
        %2340 = vmatprep.subr.mxu0 0.0
        %2341 = vmatpush1.msra.mxu0 0.0
        %2342 = vmatprep.subr.mxu0 0.0
        %2343 = vmatpush1.msra.mxu0 0.0
        %2344 = vmatprep.subr.mxu0 0.0
        %2345 = vmatpush1.msra.mxu0 0.0
        %2346 = vmatprep.mubr.f32.mxu0 0.0
        %2347 = vmatmul.mubr.f32.gmra.mrb[0].mxu0 %v2280
        %v2348 = vpop.f32.mrb[0].mxu0
        %v2349 = vadd.f32 %v2277, %v2348
        %v2350 = vpop.f32.mrb[0].mxu0
        %2351 = vdwg.mxu0
        %v2352 = vxor.u32 %v2274, 2147483648
        %v2353 = vmul.f32 %v2352, 1.442695
        %v2354 = vpow.pop %v2353
        %v2355 = vadd.f32 %v2354, 1.0
        %v2356 = vrcp.pop %v2355
        %v2357 = vmul.f32 1.0, %v2356
        %v2358 = vmul.f32 %v2357, 2.0
        %v2359 = vsub.f32 %v2358, 1.0
        %v2360 = vmul.f32 %v2357, %v2162
        %2362 = vrot.lane.b32.xlu0 %v2359, 64
        %v2363 = vpop.permute.xlu0 %2362
        %v2365 = vmul.f32 %v2357, %v2363
        %2367 = vrot.lane.b32.xlu0 %v2365, 32
        %v2368 = vpop.permute.xlu0 %2367
        %v2370 = vadd.f32 %v2360, %v2368
        %v2371 = vtanh.pop %v2370
        %2373 = vrot.lane.b32.xlu0 %v2371, 64
        %v2374 = vpop.permute.xlu0 %2373
        %v2376 = vmul.f32 %v2357, %v2374
        %v2377 = vxor.u32 %v2349, 2147483648
        %v2378 = vmul.f32 %v2377, 1.442695
        %v2379 = vpow.pop %v2378
        %v2380 = vadd.f32 %v2379, 1.0
        %v2381 = vrcp.pop %v2380
        %v2382 = vmul.f32 1.0, %v2381
        %v2383 = vmul.f32 %v2382, 2.0
        %v2384 = vsub.f32 %v2383, 1.0
        %v2385 = vmul.f32 %v2382, %v2187
        %2387 = vrot.lane.b32.xlu0 %v2384, 64
        %v2388 = vpop.permute.xlu0 %2387
        %v2390 = vmul.f32 %v2382, %v2388
        %2392 = vrot.lane.b32.xlu0 %v2390, 32
        %v2393 = vpop.permute.xlu0 %2392
        %v2395 = vadd.f32 %v2385, %v2393
        %v2396 = vtanh.pop %v2395
        %2398 = vrot.lane.b32.xlu0 %v2396, 64
        %v2399 = vpop.permute.xlu0 %2398
        %v2401 = vmul.f32 %v2382, %v2399
        %2403 = vrot.lane.b32.xlu0 %v2376, 32
        %v2404 = vpop.permute.xlu0 %2403
        %2406 = vst.msk [vmem:[#allocation2 + $0xe] sm:$0x3] %vm948, %v2404
        %2408 = vrot.lane.b32.xlu0 %v2401, 64
        %v2409 = vpop.permute.xlu0 %2408
        %2411 = vst.msk [vmem:[#allocation2] sm:$0x3] %vm954, %v2409
        %2412 = vst.msk [vmem:[%s477] sm:$0x3] %vm948, %v2404
        %2413 = vrot.lane.b32.xlu0 %v2401, 32
        %v2414 = vpop.permute.xlu0 %2413
        %s2416 = scalar_lea.vmem %s477, 2 [#allocation5]
        %2417 = vst.msk [vmem:[%s2416] sm:$0x3] %vm948, %v2414
        %2419 = vrot.lane.b32.xlu0 %v2370, 96
        %v2420 = vpop.permute.xlu0 %2419
        %2422 = vst.msk [vmem:[%s484] sm:$0x3] %vm948, %v2420
        %2424 = vrot.lane.b32.xlu0 %v2395, 96
        %v2425 = vpop.permute.xlu0 %2424
        %s2427 = scalar_lea.vmem %s484, 2 [#allocation7]
        %2428 = vst.msk [vmem:[%s2427] sm:$0x3] %vm948, %v2425
        %p2429 = scmp.eq.s32.totalorder %s29, 1
        // Predicated region
        $region61: #{decoder_forward.1} parent=55 // pred_check
          %p2430 = pneg %p2429
        $region62: #{decoder_forward.1} parent=55 // pred_check_branch
          %2432 = sbr.rel (%p2430) target = $region64
        $region63: #{decoder_forward.1} parent=55 // pred_region
          %v2433 = vld [vmem:[#allocation2] sm:$0xff]
          %v2434 = vld [vmem:[#allocation2 + $0x8] sm:$0xff]
          %2435 = vst.msk [vmem:[%s9] sm:$0xff] %vm547, %v2433
          %2436 = vst.msk [vmem:[%s9 + $0x8] sm:$0xff] %vm547, %v2434
        $region64: #{decoder_forward.1} parent=55 // pred_fallthru
          _
        %s2437 = sand.u32 %s287, 1
        %s2438 = scalar_lea.sflag [#allocation6], %s2437
        %s2439 = sand.u32 %s287, 1
        %s2440 = smul.addr %s2439, 4
        %s2441 = scalar_lea.vmem [#allocation5], %s2440
        %s2442 = sand.u32 %s313, 1
        %s2443 = scalar_lea.sflag [#allocation8], %s2442
        %s2444 = sand.u32 %s313, 1
        %s2445 = smul.addr %s2444, 4
        %s2446 = scalar_lea.vmem [#allocation7], %s2445
        // Predicated region
        $region65: #{decoder_forward.1} parent=55 // pred_check
          %p2447 = pneg %p271
        $region66: #{decoder_forward.1} parent=55 // pred_check_branch
          %2449 = sbr.rel (%p2447) target = $region68
        $region67: #{decoder_forward.1} parent=55 // pred_region
          _
        $region68: #{decoder_forward.1} parent=55 // pred_fallthru
          _
        // Predicated region
        $region69: #{decoder_forward.1} parent=55 // pred_check
          %p2450 = pneg %p297
        $region70: #{decoder_forward.1} parent=55 // pred_check_branch
          %2452 = sbr.rel (%p2450) target = $region72
        $region71: #{decoder_forward.1} parent=55 // pred_region
          %s2454 = ssub.s32 64, 64
          %2455 = vsyncadd %s2438, %s2454
          %s2456 = smul.addr %s29, 2
          %s2457 = smul.addr %s2456, 32
          %s2458 = scalar_lea.hbm %s10, %s2457
          %s2459 = sshll.u32 %s2441, 4
          %s2460 = int_to_ptr.vmem [resolvable:$true] %s2459
          %2465 = dma.vmem_to_hbm [thread:$0]  %s2460, 64, %s2458, %s2438, 32, 32, 2
        $region72: #{decoder_forward.1} parent=55 // pred_fallthru
          _
        // Predicated region
        $region73: #{decoder_forward.1} parent=55 // pred_check
          %p2466 = pneg %p323
        $region74: #{decoder_forward.1} parent=55 // pred_check_branch
          %2468 = sbr.rel (%p2466) target = $region76
        $region75: #{decoder_forward.1} parent=55 // pred_region
          %s2470 = ssub.s32 64, 64
          %2471 = vsyncadd %s2443, %s2470
          %s2472 = smul.addr %s29, 2
          %s2473 = smul.addr %s2472, 32
          %s2474 = scalar_lea.hbm %s11, %s2473
          %s2475 = sshll.u32 %s2446, 4
          %s2476 = int_to_ptr.vmem [resolvable:$true] %s2475
          %2481 = dma.vmem_to_hbm [thread:$0]  %s2476, 64, %s2474, %s2443, 32, 32, 2
        $region76: #{decoder_forward.1} parent=55 // pred_fallthru
          _
        // Predicated region
        $region77: #{decoder_forward.1} parent=55 // pred_check
          %p2482 = pneg %p271
        $region78: #{decoder_forward.1} parent=55 // pred_check_branch
          %2484 = sbr.rel (%p2482) target = $region80
        $region79: #{decoder_forward.1} parent=55 // pred_region
          _
        $region80: #{decoder_forward.1} parent=55 // pred_fallthru
          _
      $region56: #{decoder_forward.1} parent=5 // pred_fallthru
        _
      %p2485 = scmp.le.s32.totalorder 2, %s24
      // Predicated region
      $region81: #{decoder_forward.1} parent=5 // pred_check
        %p2486 = pneg %p2485
      $region82: #{decoder_forward.1} parent=5 // pred_check_branch
        %2488 = sbr.rel (%p2486) target = $region84
      $region83: #{decoder_forward.1} parent=5 // pred_region
        %s2489 = ssub.s32 %s24, 2
        // Predicated region
        $region85: #{decoder_forward.1} parent=83 // pred_check
          %p2490 = pneg %p303
        $region86: #{decoder_forward.1} parent=83 // pred_check_branch
          %2492 = sbr.rel (%p2490) target = $region88
        $region87: #{decoder_forward.1} parent=83 // pred_region
          %s2493 = sand.u32 %s288, 1
          %s2494 = scalar_lea.sflag [#allocation6], %s2493
          %s2495 = sand.u32 %s288, 1
          %s2496 = smul.addr %s2495, 4
          %s2497 = scalar_lea.vmem [#allocation5], %s2496
          %2498 = dma.done %s2494, 64
        $region88: #{decoder_forward.1} parent=83 // pred_fallthru
          _
        // Predicated region
        $region89: #{decoder_forward.1} parent=83 // pred_check
          %p2499 = pneg %p329
        $region90: #{decoder_forward.1} parent=83 // pred_check_branch
          %2501 = sbr.rel (%p2499) target = $region92
        $region91: #{decoder_forward.1} parent=83 // pred_region
          %s2502 = sand.u32 %s314, 1
          %s2503 = scalar_lea.sflag [#allocation8], %s2502
          %s2504 = sand.u32 %s314, 1
          %s2505 = smul.addr %s2504, 4
          %s2506 = scalar_lea.vmem [#allocation7], %s2505
          %2507 = dma.done %s2503, 64
        $region92: #{decoder_forward.1} parent=83 // pred_fallthru
          _
      $region84: #{decoder_forward.1} parent=5 // pred_fallthru
        _
    $region6: #{decoder_forward.1} parent=1 // loop_footer
      %s28 = sadd.s32 1, %s24
    $region7: #{decoder_forward.1} parent=1 // loop_footer_branch
      %23 = sbr.rel target = $region3
    $region8: #{decoder_forward.1} parent=1 // loop_exit
      _
    %2508 = vsyncpa [#allocation6], 1
    %s2509 = scalar_lea.sflag [#allocation6], 1
    %2510 = vsyncpa %s2509, 1
    %2511 = vsyncpa [#allocation8], 1
    %s2512 = scalar_lea.sflag [#allocation8], 1
    %2513 = vsyncpa %s2512, 1

</llo_original>
